<compile_context>
chip_gen: v7x
topology: tpu7x:2x2x1
jax: 0.10.0
libtpu: 0.0.40
codegen_flags: <defaults>
</compile_context>

<pallas_src>
import functools

import jax
import jax.numpy as jnp
from jax.experimental import pallas as pl
from jax.experimental.pallas import tpu as pltpu

# ----------------------------------------------------------------------------
# Small, ViT-B/16-shaped config (scaled down).
# ----------------------------------------------------------------------------
IMG = 32        # image size  (224 in the real model)
PATCH = 16      # patch size  (16)
CIN = 3         # input channels
HIDDEN = 32     # hidden dim  (768)
HEADS = 4       # attention heads (12)
MLP = 64        # MLP dim     (3072)
LAYERS = 2      # encoder blocks (12)
CLASSES = 10    # num_classes
EPS = 1e-6      # torchvision ViT uses LayerNorm(eps=1e-6)

OUT_PAD = 128   # lane-dense classifier logits; sliced back to CLASSES on host


# ----------------------------------------------------------------------------
# Kernel
# ----------------------------------------------------------------------------
def _layernorm(v, w, b):
    mu = jnp.mean(v, axis=-1, keepdims=True)
    var = jnp.mean((v - mu) ** 2, axis=-1, keepdims=True)
    return (v - mu) * jax.lax.rsqrt(var + EPS) * w + b


def vit_fused_kernel(patches_ref, pw_ref, pb_ref, cls_ref,
                     ln1w_ref, ln1b_ref, wqkv_ref, bqkvt_ref, woh_ref, bo_ref,
                     ln2w_ref, ln2b_ref, w1_ref, b1_ref, w2_ref, b2_ref,
                     clnw_ref, clnb_ref, cw_ref, cb_ref,
                     logits_ref, *, heads, layers, s_valid, s_pad):
    """One batch element of the full ViT forward; grid axis 0 = batch."""
    D = pw_ref.shape[1]
    dh = D // heads
    scale = 1.0 / float(dh) ** 0.5            # torch MHA scales q by 1/sqrt(dh)

    # --- patch embedding: one matmul for all patches of this image ----------
    patches = patches_ref[0]                                    # (P, C*p*p)
    tok = (jnp.dot(patches, pw_ref[...], preferred_element_type=jnp.float32)
           + pb_ref[...])                                       # (P, D)

    pad_rows = s_pad - s_valid
    x = jnp.concatenate(
        [cls_ref[...], tok, jnp.zeros((pad_rows, D), jnp.float32)],
        axis=0)                                                 # (S_pad, D)

    # key mask for the padded positions (applied before softmax)
    key_ids = jax.lax.broadcasted_iota(jnp.int32, (1, 1, s_pad), 2)
    key_mask = jnp.where(key_ids < s_valid, 0.0, -1e30).astype(jnp.float32)

    logit_rows = []
    for l in range(layers):                    # static & tiny -> unrolled
        # ---- LN1 + multi-head self-attention (heads batched, no loops) -----
        y = _layernorm(x, ln1w_ref[l], ln1b_ref[l])             # (S, D)

        # qkv^T directly: (3D, S) = Wqkv^T @ y^T (single transposed matmul)
        qkv_t = jax.lax.dot_general(
            wqkv_ref[l], y,
            dimension_numbers=(((0,), (1,)), ((), ())),
            preferred_element_type=jnp.float32) + bqkvt_ref[l]  # (3D, S)
        qkv_t = qkv_t.reshape(3, heads, dh, s_pad)              # major split only
        q_t = qkv_t[0] * scale                                  # (H, dh, S)
        k_t = qkv_t[1]                                          # (H, dh, S)
        v_t = qkv_t[2]                                          # (H, dh, S)

        s = jnp.einsum('hds,hdt->hst', q_t, k_t,
                       preferred_element_type=jnp.float32)      # (H, S, S)
        s = s + key_mask
        s = s - jnp.max(s, axis=-1, keepdims=True)
        p = jnp.exp(s)
        p = p * pl.reciprocal(jnp.sum(p, axis=-1, keepdims=True), approx=True)

        ctx = jnp.einsum('hst,hdt->hsd', p, v_t,
                         preferred_element_type=jnp.float32)    # (H, S, dh)
        proj = jnp.einsum('hsd,hdo->hso', ctx, woh_ref[l],
                          preferred_element_type=jnp.float32)   # (H, S, D)
        attn = jnp.sum(proj, axis=0) + bo_ref[l]                # (S, D)
        x = x + attn                                            # residual 1

        # ---- LN2 + MLP (Linear -> exact GELU -> Linear) ---------------------
        y2 = _layernorm(x, ln2w_ref[l], ln2b_ref[l])
        h1 = (jnp.dot(y2, w1_ref[l], preferred_element_type=jnp.float32)
              + b1_ref[l])
        h1 = 0.5 * h1 * (1.0 + jax.lax.erf(h1 * 0.7071067811865476))
        mlp = (jnp.dot(h1, w2_ref[l], preferred_element_type=jnp.float32)
               + b2_ref[l])
        x = x + mlp                                             # residual 2

        # ---- per-layer classifier on the cls token (row 0) ------------------
        yc = _layernorm(x[0:1, :], clnw_ref[l], clnb_ref[l])    # (1, D)
        logit_rows.append(
            jnp.dot(yc, cw_ref[l], preferred_element_type=jnp.float32)
            + cb_ref[l])                                        # (1, OUT_PAD)

    # single lane-dense store of all per-layer logits
    logits_ref[...] = jnp.concatenate(logit_rows, axis=0).reshape(
        1, layers, OUT_PAD)


# ----------------------------------------------------------------------------
# Wrapper (host-side layout glue only; all compute in one Pallas kernel)
# ----------------------------------------------------------------------------
def _rep_spec(arr):
    """Whole-array block, same block for every grid step."""
    nd = arr.ndim

    def idx(b, _nd=nd):
        return (0,) * _nd

    return pl.BlockSpec(arr.shape, idx)


def vit_forward(params, x):
    B, C, H, W = x.shape
    nh, nw = H // PATCH, W // PATCH
    P = nh * nw
    cpp = C * PATCH * PATCH
    s_valid = 1 + P
    s_pad = ((s_valid + 7) // 8) * 8          # sublane-align the sequence

    # Conv2d(kernel=stride=PATCH) rewritten as a patch gather (pure layout).
    patches = x.reshape(B, C, nh, PATCH, nw, PATCH)
    patches = patches.transpose(0, 2, 4, 1, 3, 5).reshape(B, P, cpp)

    pw = params["conv_w"].reshape(HIDDEN, cpp).T                 # (cpp, D)
    pb = params["conv_b"].reshape(1, HIDDEN)
    cls = params["cls_token"].reshape(1, HIDDEN)

    blocks = params["blocks"]
    heads = params["classifiers"]
    dh = HIDDEN // HEADS

    stack = lambda k: jnp.stack([blk[k] for blk in blocks], axis=0)
    cstack = lambda k: jnp.stack([c[k] for c in heads], axis=0)

    bqkv_t = jnp.stack([blk["bqkv"].reshape(3 * HIDDEN, 1) for blk in blocks])
    wo_h = jnp.stack([blk["wo"].reshape(HEADS, dh, HIDDEN) for blk in blocks])

    cw = jnp.pad(cstack("w"), ((0, 0), (0, 0), (0, OUT_PAD - CLASSES)))
    cb = jnp.pad(cstack("b"), ((0, 0), (0, 0), (0, OUT_PAD - CLASSES)))

    inputs = (patches, pw, pb, cls,
              stack("ln1_w"), stack("ln1_b"), stack("wqkv"), bqkv_t,
              wo_h, stack("bo"), stack("ln2_w"), stack("ln2_b"),
              stack("w1"), stack("b1"), stack("w2"), stack("b2"),
              cstack("ln_w"), cstack("ln_b"), cw, cb)

    in_specs = [pl.BlockSpec((1, P, cpp), lambda b: (b, 0, 0))]
    in_specs += [_rep_spec(a) for a in inputs[1:]]

    logits = pl.pallas_call(
        functools.partial(vit_fused_kernel, heads=HEADS, layers=LAYERS,
                          s_valid=s_valid, s_pad=s_pad),
        grid=(B,),
        out_shape=jax.ShapeDtypeStruct((B, LAYERS, OUT_PAD), jnp.float32),
        in_specs=in_specs,
        out_specs=pl.BlockSpec((1, LAYERS, OUT_PAD), lambda b: (b, 0, 0)),
        compiler_params=pltpu.CompilerParams(
            dimension_semantics=("parallel",)),
    )(*inputs)

    return [logits[:, l, :CLASSES] for l in range(LAYERS)]


# ----------------------------------------------------------------------------
# Deterministic synthetic parameters (same layout/convention as before)
# ----------------------------------------------------------------------------
def init_params(key):
    keys = iter(jax.random.split(key, 128))

    def nrm(shape, std=0.02):
        return std * jax.random.normal(next(keys), shape, jnp.float32)

    params = {
        "conv_w": nrm((HIDDEN, CIN, PATCH, PATCH)),
        "conv_b": nrm((HIDDEN,)),
        "cls_token": nrm((1, 1, HIDDEN)),
        "blocks": [],
        "classifiers": [],
    }
    for _ in range(LAYERS):
        params["blocks"].append(dict(
            ln1_w=jnp.ones((1, HIDDEN), jnp.float32),
            ln1_b=jnp.zeros((1, HIDDEN), jnp.float32),
            wqkv=nrm((HIDDEN, 3 * HIDDEN)),
            bqkv=nrm((1, 3 * HIDDEN)),
            wo=nrm((HIDDEN, HIDDEN)),
            bo=nrm((1, HIDDEN)),
            ln2_w=jnp.ones((1, HIDDEN), jnp.float32),
            ln2_b=jnp.zeros((1, HIDDEN), jnp.float32),
            w1=nrm((HIDDEN, MLP)),
            b1=nrm((1, MLP)),
            w2=nrm((MLP, HIDDEN)),
            b2=nrm((1, HIDDEN)),
        ))
        params["classifiers"].append(dict(
            ln_w=jnp.ones((1, HIDDEN), jnp.float32),
            ln_b=jnp.zeros((1, HIDDEN), jnp.float32),
            w=nrm((HIDDEN, CLASSES)),
            b=nrm((1, CLASSES)),
        ))
    return params


if __name__ == "__main__":
    key = jax.random.PRNGKey(0)
    pkey, xkey = jax.random.split(key)
    params = init_params(pkey)
    x = jax.random.normal(xkey, (2, CIN, IMG, IMG), jnp.float32)

    fwd = jax.jit(vit_forward)
    outs = jax.block_until_ready(fwd(params, x))

    assert len(outs) == LAYERS
    for o in outs:
        assert o.shape == (2, CLASSES), o.shape
        assert o.dtype == jnp.float32
        assert bool(jnp.all(jnp.isfinite(o)))
    print("KERNEL_OK")
</pallas_src>

<mosaic_0001>
module attributes {stable_mosaic.version = 11 : i64} {
  func.func @vit_fused_kernel(%arg0: i32, %arg1: memref<1x4x768xf32, #tpu.memory_space<vmem>>, %arg2: memref<768x32xf32, #tpu.memory_space<vmem>>, %arg3: memref<1x32xf32, #tpu.memory_space<vmem>>, %arg4: memref<1x32xf32, #tpu.memory_space<vmem>>, %arg5: memref<2x1x32xf32, #tpu.memory_space<vmem>>, %arg6: memref<2x1x32xf32, #tpu.memory_space<vmem>>, %arg7: memref<2x32x96xf32, #tpu.memory_space<vmem>>, %arg8: memref<2x96x1xf32, #tpu.memory_space<vmem>>, %arg9: memref<2x4x8x32xf32, #tpu.memory_space<vmem>>, %arg10: memref<2x1x32xf32, #tpu.memory_space<vmem>>, %arg11: memref<2x1x32xf32, #tpu.memory_space<vmem>>, %arg12: memref<2x1x32xf32, #tpu.memory_space<vmem>>, %arg13: memref<2x32x64xf32, #tpu.memory_space<vmem>>, %arg14: memref<2x1x64xf32, #tpu.memory_space<vmem>>, %arg15: memref<2x64x32xf32, #tpu.memory_space<vmem>>, %arg16: memref<2x1x32xf32, #tpu.memory_space<vmem>>, %arg17: memref<2x1x32xf32, #tpu.memory_space<vmem>>, %arg18: memref<2x1x32xf32, #tpu.memory_space<vmem>>, %arg19: memref<2x32x128xf32, #tpu.memory_space<vmem>>, %arg20: memref<2x1x128xf32, #tpu.memory_space<vmem>>, %arg21: memref<1x2x128xf32, #tpu.memory_space<vmem>>) attributes {dimension_semantics = [#tpu.dimension_semantics<parallel>], iteration_bounds = array<i64: 2>, scalar_prefetch = 0 : i64, scratch_operands = 0 : i64, tpu.core_type = #tpu.core_type<tc>, window_params = [{transform_indices = @transform_0, window_bounds = array<i64: 1, 4, 768>}, {pipeline_mode = #tpu.pipeline_mode<synchronous>, transform_indices = @transform_1, window_bounds = array<i64: 768, 32>}, {pipeline_mode = #tpu.pipeline_mode<synchronous>, transform_indices = @transform_2, window_bounds = array<i64: 1, 32>}, {pipeline_mode = #tpu.pipeline_mode<synchronous>, transform_indices = @transform_3, window_bounds = array<i64: 1, 32>}, {pipeline_mode = #tpu.pipeline_mode<synchronous>, transform_indices = @transform_4, window_bounds = array<i64: 2, 1, 32>}, {pipeline_mode = #tpu.pipeline_mode<synchronous>, transform_indices = @transform_5, window_bounds = array<i64: 2, 1, 32>}, {pipeline_mode = #tpu.pipeline_mode<synchronous>, transform_indices = @transform_6, window_bounds = array<i64: 2, 32, 96>}, {pipeline_mode = #tpu.pipeline_mode<synchronous>, transform_indices = @transform_7, window_bounds = array<i64: 2, 96, 1>}, {pipeline_mode = #tpu.pipeline_mode<synchronous>, transform_indices = @transform_8, window_bounds = array<i64: 2, 4, 8, 32>}, {pipeline_mode = #tpu.pipeline_mode<synchronous>, transform_indices = @transform_9, window_bounds = array<i64: 2, 1, 32>}, {pipeline_mode = #tpu.pipeline_mode<synchronous>, transform_indices = @transform_10, window_bounds = array<i64: 2, 1, 32>}, {pipeline_mode = #tpu.pipeline_mode<synchronous>, transform_indices = @transform_11, window_bounds = array<i64: 2, 1, 32>}, {pipeline_mode = #tpu.pipeline_mode<synchronous>, transform_indices = @transform_12, window_bounds = array<i64: 2, 32, 64>}, {pipeline_mode = #tpu.pipeline_mode<synchronous>, transform_indices = @transform_13, window_bounds = array<i64: 2, 1, 64>}, {pipeline_mode = #tpu.pipeline_mode<synchronous>, transform_indices = @transform_14, window_bounds = array<i64: 2, 64, 32>}, {pipeline_mode = #tpu.pipeline_mode<synchronous>, transform_indices = @transform_15, window_bounds = array<i64: 2, 1, 32>}, {pipeline_mode = #tpu.pipeline_mode<synchronous>, transform_indices = @transform_16, window_bounds = array<i64: 2, 1, 32>}, {pipeline_mode = #tpu.pipeline_mode<synchronous>, transform_indices = @transform_17, window_bounds = array<i64: 2, 1, 32>}, {pipeline_mode = #tpu.pipeline_mode<synchronous>, transform_indices = @transform_18, window_bounds = array<i64: 2, 32, 128>}, {pipeline_mode = #tpu.pipeline_mode<synchronous>, transform_indices = @transform_19, window_bounds = array<i64: 2, 1, 128>}, {transform_indices = @transform_20, window_bounds = array<i64: 1, 2, 128>}]} {
    %c0 = arith.constant 0 : index
    %c0_0 = arith.constant 0 : index
    %c0_1 = arith.constant 0 : index
    %0 = vector.load %arg1[%c0, %c0_0, %c0_1] : memref<1x4x768xf32, #tpu.memory_space<vmem>>, vector<1x4x768xf32>
    %1 = vector.shape_cast %0 : vector<1x4x768xf32> to vector<4x768xf32>
    %c0_2 = arith.constant 0 : index
    %c0_3 = arith.constant 0 : index
    %2 = vector.load %arg2[%c0_2, %c0_3] : memref<768x32xf32, #tpu.memory_space<vmem>>, vector<768x32xf32>
    %cst = arith.constant dense<0.000000e+00> : vector<4x32xf32>
    %3 = tpu.matmul %1, %2, %cst {dimension_numbers = #tpu.dot_dimension_numbers<[1], [0], [0], [1], [0, 0, 1, 1], [], []>} : vector<4x768xf32>, vector<768x32xf32>, vector<4x32xf32> -> vector<4x32xf32>
    %c0_4 = arith.constant 0 : index
    %c0_5 = arith.constant 0 : index
    %4 = vector.load %arg3[%c0_4, %c0_5] : memref<1x32xf32, #tpu.memory_space<vmem>>, vector<1x32xf32>
    %5 = vector.broadcast %4 : vector<1x32xf32> to vector<4x32xf32>
    %6 = arith.addf %3, %5 : vector<4x32xf32>
    %c0_6 = arith.constant 0 : index
    %c0_7 = arith.constant 0 : index
    %7 = vector.load %arg4[%c0_6, %c0_7] : memref<1x32xf32, #tpu.memory_space<vmem>>, vector<1x32xf32>
    %cst_8 = arith.constant 0.000000e+00 : f32
    %8 = vector.broadcast %cst_8 : f32 to vector<3x32xf32>
    %9 = tpu.concatenate %7, %6, %8 in 0 : vector<1x32xf32>, vector<4x32xf32>, vector<3x32xf32> -> vector<8x32xf32>
    %10 = tpu.iota {dimensions = array<i32: 2>} : vector<1x1x8xi32>
    %c5_i32 = arith.constant 5 : i32
    %11 = vector.broadcast %c5_i32 : i32 to vector<1x1x8xi32>
    %12 = arith.cmpi slt, %10, %11 : vector<1x1x8xi32>
    %cst_9 = arith.constant 0.000000e+00 : f32
    %cst_10 = arith.constant -1.000000e+30 : f32
    %13 = vector.broadcast %cst_9 : f32 to vector<1x1x8xf32>
    %14 = vector.broadcast %cst_10 : f32 to vector<1x1x8xf32>
    %15 = arith.select %12, %13, %14 : vector<1x1x8xi1>, vector<1x1x8xf32>
    %c0_11 = arith.constant 0 : index
    %c0_12 = arith.constant 0 : index
    %c0_13 = arith.constant 0 : index
    %16 = vector.load %arg5[%c0_11, %c0_12, %c0_13] : memref<2x1x32xf32, #tpu.memory_space<vmem>>, vector<1x1x32xf32>
    %17 = vector.shape_cast %16 : vector<1x1x32xf32> to vector<1x32xf32>
    %c0_14 = arith.constant 0 : index
    %c0_15 = arith.constant 0 : index
    %c0_16 = arith.constant 0 : index
    %18 = vector.load %arg6[%c0_14, %c0_15, %c0_16] : memref<2x1x32xf32, #tpu.memory_space<vmem>>, vector<1x1x32xf32>
    %19 = vector.shape_cast %18 : vector<1x1x32xf32> to vector<1x32xf32>
    %cst_17 = arith.constant dense<0.000000e+00> : vector<8xf32>
    %20 = vector.multi_reduction <add>, %9, %cst_17 [1] : vector<8x32xf32> to vector<8xf32>
    %21 = vector.shape_cast %20 : vector<8xf32> to vector<8x1xf32>
    %cst_18 = arith.constant 3.200000e+01 : f32
    %22 = vector.broadcast %cst_18 : f32 to vector<8x1xf32>
    %23 = arith.divf %21, %22 : vector<8x1xf32>
    %24 = vector.broadcast %23 : vector<8x1xf32> to vector<8x32xf32>
    %25 = arith.subf %9, %24 : vector<8x32xf32>
    %26 = arith.mulf %25, %25 : vector<8x32xf32>
    %cst_19 = arith.constant dense<0.000000e+00> : vector<8xf32>
    %27 = vector.multi_reduction <add>, %26, %cst_19 [1] : vector<8x32xf32> to vector<8xf32>
    %28 = vector.shape_cast %27 : vector<8xf32> to vector<8x1xf32>
    %cst_20 = arith.constant 3.200000e+01 : f32
    %29 = vector.broadcast %cst_20 : f32 to vector<8x1xf32>
    %30 = arith.divf %28, %29 : vector<8x1xf32>
    %31 = vector.broadcast %23 : vector<8x1xf32> to vector<8x32xf32>
    %32 = arith.subf %9, %31 : vector<8x32xf32>
    %cst_21 = arith.constant 9.99999997E-7 : f32
    %33 = vector.broadcast %cst_21 : f32 to vector<8x1xf32>
    %34 = arith.addf %30, %33 : vector<8x1xf32>
    %35 = math.rsqrt %34 : vector<8x1xf32>
    %36 = vector.broadcast %35 : vector<8x1xf32> to vector<8x32xf32>
    %37 = arith.mulf %32, %36 : vector<8x32xf32>
    %38 = vector.broadcast %17 : vector<1x32xf32> to vector<8x32xf32>
    %39 = arith.mulf %37, %38 : vector<8x32xf32>
    %40 = vector.broadcast %19 : vector<1x32xf32> to vector<8x32xf32>
    %41 = arith.addf %39, %40 : vector<8x32xf32>
    %c0_22 = arith.constant 0 : index
    %c0_23 = arith.constant 0 : index
    %c0_24 = arith.constant 0 : index
    %42 = vector.load %arg7[%c0_22, %c0_23, %c0_24] : memref<2x32x96xf32, #tpu.memory_space<vmem>>, vector<1x32x96xf32>
    %43 = vector.shape_cast %42 : vector<1x32x96xf32> to vector<32x96xf32>
    %cst_25 = arith.constant dense<0.000000e+00> : vector<96x8xf32>
    %44 = tpu.matmul %43, %41, %cst_25 {dimension_numbers = #tpu.dot_dimension_numbers<[0], [1], [1], [0], [0, 1, 1, 0], [], []>} : vector<32x96xf32>, vector<8x32xf32>, vector<96x8xf32> -> vector<96x8xf32>
    %c0_26 = arith.constant 0 : index
    %c0_27 = arith.constant 0 : index
    %c0_28 = arith.constant 0 : index
    %45 = vector.load %arg8[%c0_26, %c0_27, %c0_28] : memref<2x96x1xf32, #tpu.memory_space<vmem>>, vector<1x96x1xf32>
    %46 = vector.shape_cast %45 : vector<1x96x1xf32> to vector<96x1xf32>
    %47 = vector.broadcast %46 : vector<96x1xf32> to vector<96x8xf32>
    %48 = arith.addf %44, %47 : vector<96x8xf32>
    %49 = vector.shape_cast %48 : vector<96x8xf32> to vector<3x4x8x8xf32>
    %50 = vector.extract_strided_slice %49 {offsets = [0, 0, 0, 0], sizes = [1, 4, 8, 8], strides = [1, 1, 1, 1]} : vector<3x4x8x8xf32> to vector<1x4x8x8xf32>
    %51 = vector.shape_cast %50 : vector<1x4x8x8xf32> to vector<4x8x8xf32>
    %cst_29 = arith.constant 0.353553385 : f32
    %52 = vector.broadcast %cst_29 : f32 to vector<4x8x8xf32>
    %53 = arith.mulf %51, %52 : vector<4x8x8xf32>
    %54 = vector.extract_strided_slice %49 {offsets = [1, 0, 0, 0], sizes = [1, 4, 8, 8], strides = [1, 1, 1, 1]} : vector<3x4x8x8xf32> to vector<1x4x8x8xf32>
    %55 = vector.shape_cast %54 : vector<1x4x8x8xf32> to vector<4x8x8xf32>
    %56 = vector.extract_strided_slice %49 {offsets = [2, 0, 0, 0], sizes = [1, 4, 8, 8], strides = [1, 1, 1, 1]} : vector<3x4x8x8xf32> to vector<1x4x8x8xf32>
    %57 = vector.shape_cast %56 : vector<1x4x8x8xf32> to vector<4x8x8xf32>
    "tpu.trace_start"() <{level = 10 : i32, message = "hds,hdt->hst"}> : () -> ()
    %cst_30 = arith.constant dense<0.000000e+00> : vector<4x8x8xf32>
    %58 = tpu.matmul %53, %55, %cst_30 {dimension_numbers = #tpu.dot_dimension_numbers<[1], [1], [2], [2], [0, 0, 0, 2, 1, 2], [0], [0]>} : vector<4x8x8xf32>, vector<4x8x8xf32>, vector<4x8x8xf32> -> vector<4x8x8xf32>
    "tpu.trace_stop"() : () -> ()
    %59 = vector.broadcast %15 : vector<1x1x8xf32> to vector<4x8x8xf32>
    %60 = arith.addf %58, %59 : vector<4x8x8xf32>
    %cst_31 = arith.constant dense<0xFF800000> : vector<4x8xf32>
    %61 = vector.multi_reduction <maximumf>, %60, %cst_31 [2] : vector<4x8x8xf32> to vector<4x8xf32>
    %62 = vector.shape_cast %61 : vector<4x8xf32> to vector<4x8x1xf32>
    %63 = vector.broadcast %62 : vector<4x8x1xf32> to vector<4x8x8xf32>
    %64 = arith.subf %60, %63 : vector<4x8x8xf32>
    %65 = math.exp %64 : vector<4x8x8xf32>
    %cst_32 = arith.constant dense<0.000000e+00> : vector<4x8xf32>
    %66 = vector.multi_reduction <add>, %65, %cst_32 [2] : vector<4x8x8xf32> to vector<4x8xf32>
    %67 = vector.shape_cast %66 : vector<4x8xf32> to vector<4x8x1xf32>
    %68 = tpu.reciprocal %67 {approx = true} : vector<4x8x1xf32> -> vector<4x8x1xf32>
    %69 = vector.broadcast %68 : vector<4x8x1xf32> to vector<4x8x8xf32>
    %70 = arith.mulf %65, %69 : vector<4x8x8xf32>
    "tpu.trace_start"() <{level = 10 : i32, message = "hst,hdt->hsd"}> : () -> ()
    %cst_33 = arith.constant dense<0.000000e+00> : vector<4x8x8xf32>
    %71 = tpu.matmul %70, %57, %cst_33 {dimension_numbers = #tpu.dot_dimension_numbers<[2], [2], [1], [1], [0, 0, 0, 1, 1, 1], [0], [0]>} : vector<4x8x8xf32>, vector<4x8x8xf32>, vector<4x8x8xf32> -> vector<4x8x8xf32>
    "tpu.trace_stop"() : () -> ()
    %c0_34 = arith.constant 0 : index
    %c0_35 = arith.constant 0 : index
    %c0_36 = arith.constant 0 : index
    %c0_37 = arith.constant 0 : index
    %72 = vector.load %arg9[%c0_34, %c0_35, %c0_36, %c0_37] : memref<2x4x8x32xf32, #tpu.memory_space<vmem>>, vector<1x4x8x32xf32>
    %73 = vector.shape_cast %72 : vector<1x4x8x32xf32> to vector<4x8x32xf32>
    "tpu.trace_start"() <{level = 10 : i32, message = "hsd,hdo->hso"}> : () -> ()
    %cst_38 = arith.constant dense<0.000000e+00> : vector<4x8x32xf32>
    %74 = tpu.matmul %71, %73, %cst_38 {dimension_numbers = #tpu.dot_dimension_numbers<[2], [1], [1], [2], [0, 0, 0, 1, 1, 2], [0], [0]>} : vector<4x8x8xf32>, vector<4x8x32xf32>, vector<4x8x32xf32> -> vector<4x8x32xf32>
    "tpu.trace_stop"() : () -> ()
    %cst_39 = arith.constant dense<0.000000e+00> : vector<8x32xf32>
    %75 = vector.multi_reduction <add>, %74, %cst_39 [0] : vector<4x8x32xf32> to vector<8x32xf32>
    %c0_40 = arith.constant 0 : index
    %c0_41 = arith.constant 0 : index
    %c0_42 = arith.constant 0 : index
    %76 = vector.load %arg10[%c0_40, %c0_41, %c0_42] : memref<2x1x32xf32, #tpu.memory_space<vmem>>, vector<1x1x32xf32>
    %77 = vector.shape_cast %76 : vector<1x1x32xf32> to vector<1x32xf32>
    %78 = vector.broadcast %77 : vector<1x32xf32> to vector<8x32xf32>
    %79 = arith.addf %75, %78 : vector<8x32xf32>
    %80 = arith.addf %9, %79 : vector<8x32xf32>
    %c0_43 = arith.constant 0 : index
    %c0_44 = arith.constant 0 : index
    %c0_45 = arith.constant 0 : index
    %81 = vector.load %arg11[%c0_43, %c0_44, %c0_45] : memref<2x1x32xf32, #tpu.memory_space<vmem>>, vector<1x1x32xf32>
    %82 = vector.shape_cast %81 : vector<1x1x32xf32> to vector<1x32xf32>
    %c0_46 = arith.constant 0 : index
    %c0_47 = arith.constant 0 : index
    %c0_48 = arith.constant 0 : index
    %83 = vector.load %arg12[%c0_46, %c0_47, %c0_48] : memref<2x1x32xf32, #tpu.memory_space<vmem>>, vector<1x1x32xf32>
    %84 = vector.shape_cast %83 : vector<1x1x32xf32> to vector<1x32xf32>
    %cst_49 = arith.constant dense<0.000000e+00> : vector<8xf32>
    %85 = vector.multi_reduction <add>, %80, %cst_49 [1] : vector<8x32xf32> to vector<8xf32>
    %86 = vector.shape_cast %85 : vector<8xf32> to vector<8x1xf32>
    %cst_50 = arith.constant 3.200000e+01 : f32
    %87 = vector.broadcast %cst_50 : f32 to vector<8x1xf32>
    %88 = arith.divf %86, %87 : vector<8x1xf32>
    %89 = vector.broadcast %88 : vector<8x1xf32> to vector<8x32xf32>
    %90 = arith.subf %80, %89 : vector<8x32xf32>
    %91 = arith.mulf %90, %90 : vector<8x32xf32>
    %cst_51 = arith.constant dense<0.000000e+00> : vector<8xf32>
    %92 = vector.multi_reduction <add>, %91, %cst_51 [1] : vector<8x32xf32> to vector<8xf32>
    %93 = vector.shape_cast %92 : vector<8xf32> to vector<8x1xf32>
    %cst_52 = arith.constant 3.200000e+01 : f32
    %94 = vector.broadcast %cst_52 : f32 to vector<8x1xf32>
    %95 = arith.divf %93, %94 : vector<8x1xf32>
    %96 = vector.broadcast %88 : vector<8x1xf32> to vector<8x32xf32>
    %97 = arith.subf %80, %96 : vector<8x32xf32>
    %cst_53 = arith.constant 9.99999997E-7 : f32
    %98 = vector.broadcast %cst_53 : f32 to vector<8x1xf32>
    %99 = arith.addf %95, %98 : vector<8x1xf32>
    %100 = math.rsqrt %99 : vector<8x1xf32>
    %101 = vector.broadcast %100 : vector<8x1xf32> to vector<8x32xf32>
    %102 = arith.mulf %97, %101 : vector<8x32xf32>
    %103 = vector.broadcast %82 : vector<1x32xf32> to vector<8x32xf32>
    %104 = arith.mulf %102, %103 : vector<8x32xf32>
    %105 = vector.broadcast %84 : vector<1x32xf32> to vector<8x32xf32>
    %106 = arith.addf %104, %105 : vector<8x32xf32>
    %c0_54 = arith.constant 0 : index
    %c0_55 = arith.constant 0 : index
    %c0_56 = arith.constant 0 : index
    %107 = vector.load %arg13[%c0_54, %c0_55, %c0_56] : memref<2x32x64xf32, #tpu.memory_space<vmem>>, vector<1x32x64xf32>
    %108 = vector.shape_cast %107 : vector<1x32x64xf32> to vector<32x64xf32>
    %cst_57 = arith.constant dense<0.000000e+00> : vector<8x64xf32>
    %109 = tpu.matmul %106, %108, %cst_57 {dimension_numbers = #tpu.dot_dimension_numbers<[1], [0], [0], [1], [0, 0, 1, 1], [], []>} : vector<8x32xf32>, vector<32x64xf32>, vector<8x64xf32> -> vector<8x64xf32>
    %c0_58 = arith.constant 0 : index
    %c0_59 = arith.constant 0 : index
    %c0_60 = arith.constant 0 : index
    %110 = vector.load %arg14[%c0_58, %c0_59, %c0_60] : memref<2x1x64xf32, #tpu.memory_space<vmem>>, vector<1x1x64xf32>
    %111 = vector.shape_cast %110 : vector<1x1x64xf32> to vector<1x64xf32>
    %112 = vector.broadcast %111 : vector<1x64xf32> to vector<8x64xf32>
    %113 = arith.addf %109, %112 : vector<8x64xf32>
    %cst_61 = arith.constant 5.000000e-01 : f32
    %114 = vector.broadcast %cst_61 : f32 to vector<8x64xf32>
    %115 = arith.mulf %114, %113 : vector<8x64xf32>
    %cst_62 = arith.constant 0.707106769 : f32
    %116 = vector.broadcast %cst_62 : f32 to vector<8x64xf32>
    %117 = arith.mulf %113, %116 : vector<8x64xf32>
    %118 = math.erf %117 : vector<8x64xf32>
    %cst_63 = arith.constant 1.000000e+00 : f32
    %119 = vector.broadcast %cst_63 : f32 to vector<8x64xf32>
    %120 = arith.addf %119, %118 : vector<8x64xf32>
    %121 = arith.mulf %115, %120 : vector<8x64xf32>
    %c0_64 = arith.constant 0 : index
    %c0_65 = arith.constant 0 : index
    %c0_66 = arith.constant 0 : index
    %122 = vector.load %arg15[%c0_64, %c0_65, %c0_66] : memref<2x64x32xf32, #tpu.memory_space<vmem>>, vector<1x64x32xf32>
    %123 = vector.shape_cast %122 : vector<1x64x32xf32> to vector<64x32xf32>
    %cst_67 = arith.constant dense<0.000000e+00> : vector<8x32xf32>
    %124 = tpu.matmul %121, %123, %cst_67 {dimension_numbers = #tpu.dot_dimension_numbers<[1], [0], [0], [1], [0, 0, 1, 1], [], []>} : vector<8x64xf32>, vector<64x32xf32>, vector<8x32xf32> -> vector<8x32xf32>
    %c0_68 = arith.constant 0 : index
    %c0_69 = arith.constant 0 : index
    %c0_70 = arith.constant 0 : index
    %125 = vector.load %arg16[%c0_68, %c0_69, %c0_70] : memref<2x1x32xf32, #tpu.memory_space<vmem>>, vector<1x1x32xf32>
    %126 = vector.shape_cast %125 : vector<1x1x32xf32> to vector<1x32xf32>
    %127 = vector.broadcast %126 : vector<1x32xf32> to vector<8x32xf32>
    %128 = arith.addf %124, %127 : vector<8x32xf32>
    %129 = arith.addf %80, %128 : vector<8x32xf32>
    %130 = vector.extract_strided_slice %129 {offsets = [0, 0], sizes = [1, 32], strides = [1, 1]} : vector<8x32xf32> to vector<1x32xf32>
    %c0_71 = arith.constant 0 : index
    %c0_72 = arith.constant 0 : index
    %c0_73 = arith.constant 0 : index
    %131 = vector.load %arg17[%c0_71, %c0_72, %c0_73] : memref<2x1x32xf32, #tpu.memory_space<vmem>>, vector<1x1x32xf32>
    %132 = vector.shape_cast %131 : vector<1x1x32xf32> to vector<1x32xf32>
    %c0_74 = arith.constant 0 : index
    %c0_75 = arith.constant 0 : index
    %c0_76 = arith.constant 0 : index
    %133 = vector.load %arg18[%c0_74, %c0_75, %c0_76] : memref<2x1x32xf32, #tpu.memory_space<vmem>>, vector<1x1x32xf32>
    %134 = vector.shape_cast %133 : vector<1x1x32xf32> to vector<1x32xf32>
    %cst_77 = arith.constant dense<0.000000e+00> : vector<1xf32>
    %135 = vector.multi_reduction <add>, %130, %cst_77 [1] : vector<1x32xf32> to vector<1xf32>
    %136 = vector.shape_cast %135 : vector<1xf32> to vector<1x1xf32>
    %cst_78 = arith.constant 3.200000e+01 : f32
    %137 = vector.broadcast %cst_78 : f32 to vector<1x1xf32>
    %138 = arith.divf %136, %137 : vector<1x1xf32>
    %139 = vector.broadcast %138 : vector<1x1xf32> to vector<1x32xf32>
    %140 = arith.subf %130, %139 : vector<1x32xf32>
    %141 = arith.mulf %140, %140 : vector<1x32xf32>
    %cst_79 = arith.constant dense<0.000000e+00> : vector<1xf32>
    %142 = vector.multi_reduction <add>, %141, %cst_79 [1] : vector<1x32xf32> to vector<1xf32>
    %143 = vector.shape_cast %142 : vector<1xf32> to vector<1x1xf32>
    %cst_80 = arith.constant 3.200000e+01 : f32
    %144 = vector.broadcast %cst_80 : f32 to vector<1x1xf32>
    %145 = arith.divf %143, %144 : vector<1x1xf32>
    %146 = vector.broadcast %138 : vector<1x1xf32> to vector<1x32xf32>
    %147 = arith.subf %130, %146 : vector<1x32xf32>
    %cst_81 = arith.constant 9.99999997E-7 : f32
    %148 = vector.broadcast %cst_81 : f32 to vector<1x1xf32>
    %149 = arith.addf %145, %148 : vector<1x1xf32>
    %150 = math.rsqrt %149 : vector<1x1xf32>
    %151 = vector.broadcast %150 : vector<1x1xf32> to vector<1x32xf32>
    %152 = arith.mulf %147, %151 : vector<1x32xf32>
    %153 = arith.mulf %152, %132 : vector<1x32xf32>
    %154 = arith.addf %153, %134 : vector<1x32xf32>
    %c0_82 = arith.constant 0 : index
    %c0_83 = arith.constant 0 : index
    %c0_84 = arith.constant 0 : index
    %155 = vector.load %arg19[%c0_82, %c0_83, %c0_84] : memref<2x32x128xf32, #tpu.memory_space<vmem>>, vector<1x32x128xf32>
    %156 = vector.shape_cast %155 : vector<1x32x128xf32> to vector<32x128xf32>
    %cst_85 = arith.constant dense<0.000000e+00> : vector<1x128xf32>
    %157 = tpu.matmul %154, %156, %cst_85 {dimension_numbers = #tpu.dot_dimension_numbers<[1], [0], [0], [1], [0, 0, 1, 1], [], []>} : vector<1x32xf32>, vector<32x128xf32>, vector<1x128xf32> -> vector<1x128xf32>
    %c0_86 = arith.constant 0 : index
    %c0_87 = arith.constant 0 : index
    %c0_88 = arith.constant 0 : index
    %158 = vector.load %arg20[%c0_86, %c0_87, %c0_88] : memref<2x1x128xf32, #tpu.memory_space<vmem>>, vector<1x1x128xf32>
    %159 = vector.shape_cast %158 : vector<1x1x128xf32> to vector<1x128xf32>
    %160 = arith.addf %157, %159 : vector<1x128xf32>
    %c1 = arith.constant 1 : index
    %c0_89 = arith.constant 0 : index
    %c0_90 = arith.constant 0 : index
    %161 = vector.load %arg5[%c1, %c0_89, %c0_90] : memref<2x1x32xf32, #tpu.memory_space<vmem>>, vector<1x1x32xf32>
    %162 = vector.shape_cast %161 : vector<1x1x32xf32> to vector<1x32xf32>
    %c1_91 = arith.constant 1 : index
    %c0_92 = arith.constant 0 : index
    %c0_93 = arith.constant 0 : index
    %163 = vector.load %arg6[%c1_91, %c0_92, %c0_93] : memref<2x1x32xf32, #tpu.memory_space<vmem>>, vector<1x1x32xf32>
    %164 = vector.shape_cast %163 : vector<1x1x32xf32> to vector<1x32xf32>
    %cst_94 = arith.constant dense<0.000000e+00> : vector<8xf32>
    %165 = vector.multi_reduction <add>, %129, %cst_94 [1] : vector<8x32xf32> to vector<8xf32>
    %166 = vector.shape_cast %165 : vector<8xf32> to vector<8x1xf32>
    %cst_95 = arith.constant 3.200000e+01 : f32
    %167 = vector.broadcast %cst_95 : f32 to vector<8x1xf32>
    %168 = arith.divf %166, %167 : vector<8x1xf32>
    %169 = vector.broadcast %168 : vector<8x1xf32> to vector<8x32xf32>
    %170 = arith.subf %129, %169 : vector<8x32xf32>
    %171 = arith.mulf %170, %170 : vector<8x32xf32>
    %cst_96 = arith.constant dense<0.000000e+00> : vector<8xf32>
    %172 = vector.multi_reduction <add>, %171, %cst_96 [1] : vector<8x32xf32> to vector<8xf32>
    %173 = vector.shape_cast %172 : vector<8xf32> to vector<8x1xf32>
    %cst_97 = arith.constant 3.200000e+01 : f32
    %174 = vector.broadcast %cst_97 : f32 to vector<8x1xf32>
    %175 = arith.divf %173, %174 : vector<8x1xf32>
    %176 = vector.broadcast %168 : vector<8x1xf32> to vector<8x32xf32>
    %177 = arith.subf %129, %176 : vector<8x32xf32>
    %cst_98 = arith.constant 9.99999997E-7 : f32
    %178 = vector.broadcast %cst_98 : f32 to vector<8x1xf32>
    %179 = arith.addf %175, %178 : vector<8x1xf32>
    %180 = math.rsqrt %179 : vector<8x1xf32>
    %181 = vector.broadcast %180 : vector<8x1xf32> to vector<8x32xf32>
    %182 = arith.mulf %177, %181 : vector<8x32xf32>
    %183 = vector.broadcast %162 : vector<1x32xf32> to vector<8x32xf32>
    %184 = arith.mulf %182, %183 : vector<8x32xf32>
    %185 = vector.broadcast %164 : vector<1x32xf32> to vector<8x32xf32>
    %186 = arith.addf %184, %185 : vector<8x32xf32>
    %c1_99 = arith.constant 1 : index
    %c0_100 = arith.constant 0 : index
    %c0_101 = arith.constant 0 : index
    %187 = vector.load %arg7[%c1_99, %c0_100, %c0_101] : memref<2x32x96xf32, #tpu.memory_space<vmem>>, vector<1x32x96xf32>
    %188 = vector.shape_cast %187 : vector<1x32x96xf32> to vector<32x96xf32>
    %cst_102 = arith.constant dense<0.000000e+00> : vector<96x8xf32>
    %189 = tpu.matmul %188, %186, %cst_102 {dimension_numbers = #tpu.dot_dimension_numbers<[0], [1], [1], [0], [0, 1, 1, 0], [], []>} : vector<32x96xf32>, vector<8x32xf32>, vector<96x8xf32> -> vector<96x8xf32>
    %c1_103 = arith.constant 1 : index
    %c0_104 = arith.constant 0 : index
    %c0_105 = arith.constant 0 : index
    %190 = vector.load %arg8[%c1_103, %c0_104, %c0_105] : memref<2x96x1xf32, #tpu.memory_space<vmem>>, vector<1x96x1xf32>
    %191 = vector.shape_cast %190 : vector<1x96x1xf32> to vector<96x1xf32>
    %192 = vector.broadcast %191 : vector<96x1xf32> to vector<96x8xf32>
    %193 = arith.addf %189, %192 : vector<96x8xf32>
    %194 = vector.shape_cast %193 : vector<96x8xf32> to vector<3x4x8x8xf32>
    %195 = vector.extract_strided_slice %194 {offsets = [0, 0, 0, 0], sizes = [1, 4, 8, 8], strides = [1, 1, 1, 1]} : vector<3x4x8x8xf32> to vector<1x4x8x8xf32>
    %196 = vector.shape_cast %195 : vector<1x4x8x8xf32> to vector<4x8x8xf32>
    %cst_106 = arith.constant 0.353553385 : f32
    %197 = vector.broadcast %cst_106 : f32 to vector<4x8x8xf32>
    %198 = arith.mulf %196, %197 : vector<4x8x8xf32>
    %199 = vector.extract_strided_slice %194 {offsets = [1, 0, 0, 0], sizes = [1, 4, 8, 8], strides = [1, 1, 1, 1]} : vector<3x4x8x8xf32> to vector<1x4x8x8xf32>
    %200 = vector.shape_cast %199 : vector<1x4x8x8xf32> to vector<4x8x8xf32>
    %201 = vector.extract_strided_slice %194 {offsets = [2, 0, 0, 0], sizes = [1, 4, 8, 8], strides = [1, 1, 1, 1]} : vector<3x4x8x8xf32> to vector<1x4x8x8xf32>
    %202 = vector.shape_cast %201 : vector<1x4x8x8xf32> to vector<4x8x8xf32>
    "tpu.trace_start"() <{level = 10 : i32, message = "hds,hdt->hst"}> : () -> ()
    %cst_107 = arith.constant dense<0.000000e+00> : vector<4x8x8xf32>
    %203 = tpu.matmul %198, %200, %cst_107 {dimension_numbers = #tpu.dot_dimension_numbers<[1], [1], [2], [2], [0, 0, 0, 2, 1, 2], [0], [0]>} : vector<4x8x8xf32>, vector<4x8x8xf32>, vector<4x8x8xf32> -> vector<4x8x8xf32>
    "tpu.trace_stop"() : () -> ()
    %204 = vector.broadcast %15 : vector<1x1x8xf32> to vector<4x8x8xf32>
    %205 = arith.addf %203, %204 : vector<4x8x8xf32>
    %cst_108 = arith.constant dense<0xFF800000> : vector<4x8xf32>
    %206 = vector.multi_reduction <maximumf>, %205, %cst_108 [2] : vector<4x8x8xf32> to vector<4x8xf32>
    %207 = vector.shape_cast %206 : vector<4x8xf32> to vector<4x8x1xf32>
    %208 = vector.broadcast %207 : vector<4x8x1xf32> to vector<4x8x8xf32>
    %209 = arith.subf %205, %208 : vector<4x8x8xf32>
    %210 = math.exp %209 : vector<4x8x8xf32>
    %cst_109 = arith.constant dense<0.000000e+00> : vector<4x8xf32>
    %211 = vector.multi_reduction <add>, %210, %cst_109 [2] : vector<4x8x8xf32> to vector<4x8xf32>
    %212 = vector.shape_cast %211 : vector<4x8xf32> to vector<4x8x1xf32>
    %213 = tpu.reciprocal %212 {approx = true} : vector<4x8x1xf32> -> vector<4x8x1xf32>
    %214 = vector.broadcast %213 : vector<4x8x1xf32> to vector<4x8x8xf32>
    %215 = arith.mulf %210, %214 : vector<4x8x8xf32>
    "tpu.trace_start"() <{level = 10 : i32, message = "hst,hdt->hsd"}> : () -> ()
    %cst_110 = arith.constant dense<0.000000e+00> : vector<4x8x8xf32>
    %216 = tpu.matmul %215, %202, %cst_110 {dimension_numbers = #tpu.dot_dimension_numbers<[2], [2], [1], [1], [0, 0, 0, 1, 1, 1], [0], [0]>} : vector<4x8x8xf32>, vector<4x8x8xf32>, vector<4x8x8xf32> -> vector<4x8x8xf32>
    "tpu.trace_stop"() : () -> ()
    %c1_111 = arith.constant 1 : index
    %c0_112 = arith.constant 0 : index
    %c0_113 = arith.constant 0 : index
    %c0_114 = arith.constant 0 : index
    %217 = vector.load %arg9[%c1_111, %c0_112, %c0_113, %c0_114] : memref<2x4x8x32xf32, #tpu.memory_space<vmem>>, vector<1x4x8x32xf32>
    %218 = vector.shape_cast %217 : vector<1x4x8x32xf32> to vector<4x8x32xf32>
    "tpu.trace_start"() <{level = 10 : i32, message = "hsd,hdo->hso"}> : () -> ()
    %cst_115 = arith.constant dense<0.000000e+00> : vector<4x8x32xf32>
    %219 = tpu.matmul %216, %218, %cst_115 {dimension_numbers = #tpu.dot_dimension_numbers<[2], [1], [1], [2], [0, 0, 0, 1, 1, 2], [0], [0]>} : vector<4x8x8xf32>, vector<4x8x32xf32>, vector<4x8x32xf32> -> vector<4x8x32xf32>
    "tpu.trace_stop"() : () -> ()
    %cst_116 = arith.constant dense<0.000000e+00> : vector<8x32xf32>
    %220 = vector.multi_reduction <add>, %219, %cst_116 [0] : vector<4x8x32xf32> to vector<8x32xf32>
    %c1_117 = arith.constant 1 : index
    %c0_118 = arith.constant 0 : index
    %c0_119 = arith.constant 0 : index
    %221 = vector.load %arg10[%c1_117, %c0_118, %c0_119] : memref<2x1x32xf32, #tpu.memory_space<vmem>>, vector<1x1x32xf32>
    %222 = vector.shape_cast %221 : vector<1x1x32xf32> to vector<1x32xf32>
    %223 = vector.broadcast %222 : vector<1x32xf32> to vector<8x32xf32>
    %224 = arith.addf %220, %223 : vector<8x32xf32>
    %225 = arith.addf %129, %224 : vector<8x32xf32>
    %c1_120 = arith.constant 1 : index
    %c0_121 = arith.constant 0 : index
    %c0_122 = arith.constant 0 : index
    %226 = vector.load %arg11[%c1_120, %c0_121, %c0_122] : memref<2x1x32xf32, #tpu.memory_space<vmem>>, vector<1x1x32xf32>
    %227 = vector.shape_cast %226 : vector<1x1x32xf32> to vector<1x32xf32>
    %c1_123 = arith.constant 1 : index
    %c0_124 = arith.constant 0 : index
    %c0_125 = arith.constant 0 : index
    %228 = vector.load %arg12[%c1_123, %c0_124, %c0_125] : memref<2x1x32xf32, #tpu.memory_space<vmem>>, vector<1x1x32xf32>
    %229 = vector.shape_cast %228 : vector<1x1x32xf32> to vector<1x32xf32>
    %cst_126 = arith.constant dense<0.000000e+00> : vector<8xf32>
    %230 = vector.multi_reduction <add>, %225, %cst_126 [1] : vector<8x32xf32> to vector<8xf32>
    %231 = vector.shape_cast %230 : vector<8xf32> to vector<8x1xf32>
    %cst_127 = arith.constant 3.200000e+01 : f32
    %232 = vector.broadcast %cst_127 : f32 to vector<8x1xf32>
    %233 = arith.divf %231, %232 : vector<8x1xf32>
    %234 = vector.broadcast %233 : vector<8x1xf32> to vector<8x32xf32>
    %235 = arith.subf %225, %234 : vector<8x32xf32>
    %236 = arith.mulf %235, %235 : vector<8x32xf32>
    %cst_128 = arith.constant dense<0.000000e+00> : vector<8xf32>
    %237 = vector.multi_reduction <add>, %236, %cst_128 [1] : vector<8x32xf32> to vector<8xf32>
    %238 = vector.shape_cast %237 : vector<8xf32> to vector<8x1xf32>
    %cst_129 = arith.constant 3.200000e+01 : f32
    %239 = vector.broadcast %cst_129 : f32 to vector<8x1xf32>
    %240 = arith.divf %238, %239 : vector<8x1xf32>
    %241 = vector.broadcast %233 : vector<8x1xf32> to vector<8x32xf32>
    %242 = arith.subf %225, %241 : vector<8x32xf32>
    %cst_130 = arith.constant 9.99999997E-7 : f32
    %243 = vector.broadcast %cst_130 : f32 to vector<8x1xf32>
    %244 = arith.addf %240, %243 : vector<8x1xf32>
    %245 = math.rsqrt %244 : vector<8x1xf32>
    %246 = vector.broadcast %245 : vector<8x1xf32> to vector<8x32xf32>
    %247 = arith.mulf %242, %246 : vector<8x32xf32>
    %248 = vector.broadcast %227 : vector<1x32xf32> to vector<8x32xf32>
    %249 = arith.mulf %247, %248 : vector<8x32xf32>
    %250 = vector.broadcast %229 : vector<1x32xf32> to vector<8x32xf32>
    %251 = arith.addf %249, %250 : vector<8x32xf32>
    %c1_131 = arith.constant 1 : index
    %c0_132 = arith.constant 0 : index
    %c0_133 = arith.constant 0 : index
    %252 = vector.load %arg13[%c1_131, %c0_132, %c0_133] : memref<2x32x64xf32, #tpu.memory_space<vmem>>, vector<1x32x64xf32>
    %253 = vector.shape_cast %252 : vector<1x32x64xf32> to vector<32x64xf32>
    %cst_134 = arith.constant dense<0.000000e+00> : vector<8x64xf32>
    %254 = tpu.matmul %251, %253, %cst_134 {dimension_numbers = #tpu.dot_dimension_numbers<[1], [0], [0], [1], [0, 0, 1, 1], [], []>} : vector<8x32xf32>, vector<32x64xf32>, vector<8x64xf32> -> vector<8x64xf32>
    %c1_135 = arith.constant 1 : index
    %c0_136 = arith.constant 0 : index
    %c0_137 = arith.constant 0 : index
    %255 = vector.load %arg14[%c1_135, %c0_136, %c0_137] : memref<2x1x64xf32, #tpu.memory_space<vmem>>, vector<1x1x64xf32>
    %256 = vector.shape_cast %255 : vector<1x1x64xf32> to vector<1x64xf32>
    %257 = vector.broadcast %256 : vector<1x64xf32> to vector<8x64xf32>
    %258 = arith.addf %254, %257 : vector<8x64xf32>
    %cst_138 = arith.constant 5.000000e-01 : f32
    %259 = vector.broadcast %cst_138 : f32 to vector<8x64xf32>
    %260 = arith.mulf %259, %258 : vector<8x64xf32>
    %cst_139 = arith.constant 0.707106769 : f32
    %261 = vector.broadcast %cst_139 : f32 to vector<8x64xf32>
    %262 = arith.mulf %258, %261 : vector<8x64xf32>
    %263 = math.erf %262 : vector<8x64xf32>
    %cst_140 = arith.constant 1.000000e+00 : f32
    %264 = vector.broadcast %cst_140 : f32 to vector<8x64xf32>
    %265 = arith.addf %264, %263 : vector<8x64xf32>
    %266 = arith.mulf %260, %265 : vector<8x64xf32>
    %c1_141 = arith.constant 1 : index
    %c0_142 = arith.constant 0 : index
    %c0_143 = arith.constant 0 : index
    %267 = vector.load %arg15[%c1_141, %c0_142, %c0_143] : memref<2x64x32xf32, #tpu.memory_space<vmem>>, vector<1x64x32xf32>
    %268 = vector.shape_cast %267 : vector<1x64x32xf32> to vector<64x32xf32>
    %cst_144 = arith.constant dense<0.000000e+00> : vector<8x32xf32>
    %269 = tpu.matmul %266, %268, %cst_144 {dimension_numbers = #tpu.dot_dimension_numbers<[1], [0], [0], [1], [0, 0, 1, 1], [], []>} : vector<8x64xf32>, vector<64x32xf32>, vector<8x32xf32> -> vector<8x32xf32>
    %c1_145 = arith.constant 1 : index
    %c0_146 = arith.constant 0 : index
    %c0_147 = arith.constant 0 : index
    %270 = vector.load %arg16[%c1_145, %c0_146, %c0_147] : memref<2x1x32xf32, #tpu.memory_space<vmem>>, vector<1x1x32xf32>
    %271 = vector.shape_cast %270 : vector<1x1x32xf32> to vector<1x32xf32>
    %272 = vector.broadcast %271 : vector<1x32xf32> to vector<8x32xf32>
    %273 = arith.addf %269, %272 : vector<8x32xf32>
    %274 = arith.addf %225, %273 : vector<8x32xf32>
    %275 = vector.extract_strided_slice %274 {offsets = [0, 0], sizes = [1, 32], strides = [1, 1]} : vector<8x32xf32> to vector<1x32xf32>
    %c1_148 = arith.constant 1 : index
    %c0_149 = arith.constant 0 : index
    %c0_150 = arith.constant 0 : index
    %276 = vector.load %arg17[%c1_148, %c0_149, %c0_150] : memref<2x1x32xf32, #tpu.memory_space<vmem>>, vector<1x1x32xf32>
    %277 = vector.shape_cast %276 : vector<1x1x32xf32> to vector<1x32xf32>
    %c1_151 = arith.constant 1 : index
    %c0_152 = arith.constant 0 : index
    %c0_153 = arith.constant 0 : index
    %278 = vector.load %arg18[%c1_151, %c0_152, %c0_153] : memref<2x1x32xf32, #tpu.memory_space<vmem>>, vector<1x1x32xf32>
    %279 = vector.shape_cast %278 : vector<1x1x32xf32> to vector<1x32xf32>
    %cst_154 = arith.constant dense<0.000000e+00> : vector<1xf32>
    %280 = vector.multi_reduction <add>, %275, %cst_154 [1] : vector<1x32xf32> to vector<1xf32>
    %281 = vector.shape_cast %280 : vector<1xf32> to vector<1x1xf32>
    %cst_155 = arith.constant 3.200000e+01 : f32
    %282 = vector.broadcast %cst_155 : f32 to vector<1x1xf32>
    %283 = arith.divf %281, %282 : vector<1x1xf32>
    %284 = vector.broadcast %283 : vector<1x1xf32> to vector<1x32xf32>
    %285 = arith.subf %275, %284 : vector<1x32xf32>
    %286 = arith.mulf %285, %285 : vector<1x32xf32>
    %cst_156 = arith.constant dense<0.000000e+00> : vector<1xf32>
    %287 = vector.multi_reduction <add>, %286, %cst_156 [1] : vector<1x32xf32> to vector<1xf32>
    %288 = vector.shape_cast %287 : vector<1xf32> to vector<1x1xf32>
    %cst_157 = arith.constant 3.200000e+01 : f32
    %289 = vector.broadcast %cst_157 : f32 to vector<1x1xf32>
    %290 = arith.divf %288, %289 : vector<1x1xf32>
    %291 = vector.broadcast %283 : vector<1x1xf32> to vector<1x32xf32>
    %292 = arith.subf %275, %291 : vector<1x32xf32>
    %cst_158 = arith.constant 9.99999997E-7 : f32
    %293 = vector.broadcast %cst_158 : f32 to vector<1x1xf32>
    %294 = arith.addf %290, %293 : vector<1x1xf32>
    %295 = math.rsqrt %294 : vector<1x1xf32>
    %296 = vector.broadcast %295 : vector<1x1xf32> to vector<1x32xf32>
    %297 = arith.mulf %292, %296 : vector<1x32xf32>
    %298 = arith.mulf %297, %277 : vector<1x32xf32>
    %299 = arith.addf %298, %279 : vector<1x32xf32>
    %c1_159 = arith.constant 1 : index
    %c0_160 = arith.constant 0 : index
    %c0_161 = arith.constant 0 : index
    %300 = vector.load %arg19[%c1_159, %c0_160, %c0_161] : memref<2x32x128xf32, #tpu.memory_space<vmem>>, vector<1x32x128xf32>
    %301 = vector.shape_cast %300 : vector<1x32x128xf32> to vector<32x128xf32>
    %cst_162 = arith.constant dense<0.000000e+00> : vector<1x128xf32>
    %302 = tpu.matmul %299, %301, %cst_162 {dimension_numbers = #tpu.dot_dimension_numbers<[1], [0], [0], [1], [0, 0, 1, 1], [], []>} : vector<1x32xf32>, vector<32x128xf32>, vector<1x128xf32> -> vector<1x128xf32>
    %c1_163 = arith.constant 1 : index
    %c0_164 = arith.constant 0 : index
    %c0_165 = arith.constant 0 : index
    %303 = vector.load %arg20[%c1_163, %c0_164, %c0_165] : memref<2x1x128xf32, #tpu.memory_space<vmem>>, vector<1x1x128xf32>
    %304 = vector.shape_cast %303 : vector<1x1x128xf32> to vector<1x128xf32>
    %305 = arith.addf %302, %304 : vector<1x128xf32>
    %306 = tpu.concatenate %160, %305 in 0 : vector<1x128xf32>, vector<1x128xf32> -> vector<2x128xf32>
    %307 = vector.shape_cast %306 : vector<2x128xf32> to vector<1x2x128xf32>
    %c0_166 = arith.constant 0 : index
    %c0_167 = arith.constant 0 : index
    %c0_168 = arith.constant 0 : index
    %308 = vector.load %arg21[%c0_166, %c0_167, %c0_168] : memref<1x2x128xf32, #tpu.memory_space<vmem>>, vector<1x2x128xf32>
    tpu.vector_store %arg21[%c0_166, %c0_167, %c0_168], %307 {strides = array<i32>} : memref<1x2x128xf32, #tpu.memory_space<vmem>>, vector<1x2x128xf32>,
    return
  }
  func.func @transform_0(%arg0: i32) -> (i32, i32, i32) {
    %c0_i32 = arith.constant 0 : i32
    %c0_i32_0 = arith.constant 0 : i32
    %c0_i32_1 = arith.constant 0 : i32
    return %arg0, %c0_i32, %c0_i32_0 : i32, i32, i32
  }
  func.func @transform_1(%arg0: i32) -> (i32, i32) {
    %c0_i32 = arith.constant 0 : i32
    %c0_i32_0 = arith.constant 0 : i32
    %c0_i32_1 = arith.constant 0 : i32
    return %c0_i32, %c0_i32_0 : i32, i32
  }
  func.func @transform_2(%arg0: i32) -> (i32, i32) {
    %c0_i32 = arith.constant 0 : i32
    %c0_i32_0 = arith.constant 0 : i32
    %c0_i32_1 = arith.constant 0 : i32
    return %c0_i32, %c0_i32_0 : i32, i32
  }
  func.func @transform_3(%arg0: i32) -> (i32, i32) {
    %c0_i32 = arith.constant 0 : i32
    %c0_i32_0 = arith.constant 0 : i32
    %c0_i32_1 = arith.constant 0 : i32
    return %c0_i32, %c0_i32_0 : i32, i32
  }
  func.func @transform_4(%arg0: i32) -> (i32, i32, i32) {
    %c0_i32 = arith.constant 0 : i32
    %c0_i32_0 = arith.constant 0 : i32
    %c0_i32_1 = arith.constant 0 : i32
    %c0_i32_2 = arith.constant 0 : i32
    return %c0_i32, %c0_i32_0, %c0_i32_1 : i32, i32, i32
  }
  func.func @transform_5(%arg0: i32) -> (i32, i32, i32) {
    %c0_i32 = arith.constant 0 : i32
    %c0_i32_0 = arith.constant 0 : i32
    %c0_i32_1 = arith.constant 0 : i32
    %c0_i32_2 = arith.constant 0 : i32
    return %c0_i32, %c0_i32_0, %c0_i32_1 : i32, i32, i32
  }
  func.func @transform_6(%arg0: i32) -> (i32, i32, i32) {
    %c0_i32 = arith.constant 0 : i32
    %c0_i32_0 = arith.constant 0 : i32
    %c0_i32_1 = arith.constant 0 : i32
    %c0_i32_2 = arith.constant 0 : i32
    return %c0_i32, %c0_i32_0, %c0_i32_1 : i32, i32, i32
  }
  func.func @transform_7(%arg0: i32) -> (i32, i32, i32) {
    %c0_i32 = arith.constant 0 : i32
    %c0_i32_0 = arith.constant 0 : i32
    %c0_i32_1 = arith.constant 0 : i32
    %c0_i32_2 = arith.constant 0 : i32
    return %c0_i32, %c0_i32_0, %c0_i32_1 : i32, i32, i32
  }
  func.func @transform_8(%arg0: i32) -> (i32, i32, i32, i32) {
    %c0_i32 = arith.constant 0 : i32
    %c0_i32_0 = arith.constant 0 : i32
    %c0_i32_1 = arith.constant 0 : i32
    %c0_i32_2 = arith.constant 0 : i32
    %c0_i32_3 = arith.constant 0 : i32
    return %c0_i32, %c0_i32_0, %c0_i32_1, %c0_i32_2 : i32, i32, i32, i32
  }
  func.func @transform_9(%arg0: i32) -> (i32, i32, i32) {
    %c0_i32 = arith.constant 0 : i32
    %c0_i32_0 = arith.constant 0 : i32
    %c0_i32_1 = arith.constant 0 : i32
    %c0_i32_2 = arith.constant 0 : i32
    return %c0_i32, %c0_i32_0, %c0_i32_1 : i32, i32, i32
  }
  func.func @transform_10(%arg0: i32) -> (i32, i32, i32) {
    %c0_i32 = arith.constant 0 : i32
    %c0_i32_0 = arith.constant 0 : i32
    %c0_i32_1 = arith.constant 0 : i32
    %c0_i32_2 = arith.constant 0 : i32
    return %c0_i32, %c0_i32_0, %c0_i32_1 : i32, i32, i32
  }
  func.func @transform_11(%arg0: i32) -> (i32, i32, i32) {
    %c0_i32 = arith.constant 0 : i32
    %c0_i32_0 = arith.constant 0 : i32
    %c0_i32_1 = arith.constant 0 : i32
    %c0_i32_2 = arith.constant 0 : i32
    return %c0_i32, %c0_i32_0, %c0_i32_1 : i32, i32, i32
  }
  func.func @transform_12(%arg0: i32) -> (i32, i32, i32) {
    %c0_i32 = arith.constant 0 : i32
    %c0_i32_0 = arith.constant 0 : i32
    %c0_i32_1 = arith.constant 0 : i32
    %c0_i32_2 = arith.constant 0 : i32
    return %c0_i32, %c0_i32_0, %c0_i32_1 : i32, i32, i32
  }
  func.func @transform_13(%arg0: i32) -> (i32, i32, i32) {
    %c0_i32 = arith.constant 0 : i32
    %c0_i32_0 = arith.constant 0 : i32
    %c0_i32_1 = arith.constant 0 : i32
    %c0_i32_2 = arith.constant 0 : i32
    return %c0_i32, %c0_i32_0, %c0_i32_1 : i32, i32, i32
  }
  func.func @transform_14(%arg0: i32) -> (i32, i32, i32) {
    %c0_i32 = arith.constant 0 : i32
    %c0_i32_0 = arith.constant 0 : i32
    %c0_i32_1 = arith.constant 0 : i32
    %c0_i32_2 = arith.constant 0 : i32
    return %c0_i32, %c0_i32_0, %c0_i32_1 : i32, i32, i32
  }
  func.func @transform_15(%arg0: i32) -> (i32, i32, i32) {
    %c0_i32 = arith.constant 0 : i32
    %c0_i32_0 = arith.constant 0 : i32
    %c0_i32_1 = arith.constant 0 : i32
    %c0_i32_2 = arith.constant 0 : i32
    return %c0_i32, %c0_i32_0, %c0_i32_1 : i32, i32, i32
  }
  func.func @transform_16(%arg0: i32) -> (i32, i32, i32) {
    %c0_i32 = arith.constant 0 : i32
    %c0_i32_0 = arith.constant 0 : i32
    %c0_i32_1 = arith.constant 0 : i32
    %c0_i32_2 = arith.constant 0 : i32
    return %c0_i32, %c0_i32_0, %c0_i32_1 : i32, i32, i32
  }
  func.func @transform_17(%arg0: i32) -> (i32, i32, i32) {
    %c0_i32 = arith.constant 0 : i32
    %c0_i32_0 = arith.constant 0 : i32
    %c0_i32_1 = arith.constant 0 : i32
    %c0_i32_2 = arith.constant 0 : i32
    return %c0_i32, %c0_i32_0, %c0_i32_1 : i32, i32, i32
  }
  func.func @transform_18(%arg0: i32) -> (i32, i32, i32) {
    %c0_i32 = arith.constant 0 : i32
    %c0_i32_0 = arith.constant 0 : i32
    %c0_i32_1 = arith.constant 0 : i32
    %c0_i32_2 = arith.constant 0 : i32
    return %c0_i32, %c0_i32_0, %c0_i32_1 : i32, i32, i32
  }
  func.func @transform_19(%arg0: i32) -> (i32, i32, i32) {
    %c0_i32 = arith.constant 0 : i32
    %c0_i32_0 = arith.constant 0 : i32
    %c0_i32_1 = arith.constant 0 : i32
    %c0_i32_2 = arith.constant 0 : i32
    return %c0_i32, %c0_i32_0, %c0_i32_1 : i32, i32, i32
  }
  func.func @transform_20(%arg0: i32) -> (i32, i32, i32) {
    %c0_i32 = arith.constant 0 : i32
    %c0_i32_0 = arith.constant 0 : i32
    %c0_i32_1 = arith.constant 0 : i32
    return %arg0, %c0_i32, %c0_i32_0 : i32, i32, i32
  }
}

</mosaic_0001>

<llo_original>
// kernel: vit_forward.1
$region0: #{vit_forward.1}
  #allocation0 [shape = 'u32[]', space=smem, size = 0x4, offset = 0x4, fixed_abs, tag = 'smem constant byte address 0x4 - core index']
  #allocation1 [shape = 'u32[144,128]{1,0:T(1,128)}', space=vmem, size = 0x12000, scoped, tag = 'internal scratch']
  %s0 = inlined_call_operand.vmem [shape: f32[2,4,768], index: 0, kind: input, shape index: {}]
  %s1 = inlined_call_operand.vmem [shape: f32[768,32], index: 1, kind: input, shape index: {}]
  %s2 = inlined_call_operand.vmem [shape: f32[1,32], index: 2, kind: input, shape index: {}]
  %s3 = inlined_call_operand.vmem [shape: f32[1,32], index: 3, kind: input, shape index: {}]
  %s4 = inlined_call_operand.vmem [shape: f32[2,1,32], index: 4, kind: input, shape index: {}]
  %s5 = inlined_call_operand.vmem [shape: f32[2,1,32], index: 5, kind: input, shape index: {}]
  %s6 = inlined_call_operand.vmem [shape: f32[2,32,96], index: 6, kind: input, shape index: {}]
  %s7 = inlined_call_operand.vmem [shape: f32[2,96,1], index: 7, kind: input, shape index: {}]
  %s8 = inlined_call_operand.vmem [shape: f32[2,4,8,32], index: 8, kind: input, shape index: {}]
  %s9 = inlined_call_operand.vmem [shape: f32[2,1,32], index: 9, kind: input, shape index: {}]
  %s10 = inlined_call_operand.vmem [shape: f32[2,1,32], index: 10, kind: input, shape index: {}]
  %s11 = inlined_call_operand.vmem [shape: f32[2,1,32], index: 11, kind: input, shape index: {}]
  %s12 = inlined_call_operand.vmem [shape: f32[2,32,64], index: 12, kind: input, shape index: {}]
  %s13 = inlined_call_operand.vmem [shape: f32[2,1,64], index: 13, kind: input, shape index: {}]
  %s14 = inlined_call_operand.vmem [shape: f32[2,64,32], index: 14, kind: input, shape index: {}]
  %s15 = inlined_call_operand.vmem [shape: f32[2,1,32], index: 15, kind: input, shape index: {}]
  %s16 = inlined_call_operand.vmem [shape: f32[2,1,32], index: 16, kind: input, shape index: {}]
  %s17 = inlined_call_operand.vmem [shape: f32[2,1,32], index: 17, kind: input, shape index: {}]
  %s18 = inlined_call_operand.vmem [shape: f32[2,32,128], index: 18, kind: input, shape index: {}]
  %s19 = inlined_call_operand.vmem [shape: f32[2,1,128], index: 19, kind: input, shape index: {}]
  %s20 = inlined_call_operand.vmem [shape: f32[2,2,128], index: 20, kind: output, shape index: {}]
  %s21 = sld [smem:[#allocation0]]
  $region113: #{vit_forward.1} parent=0
    _
  %s23 = ssub.s32 1, %s21
  %s24 = scalar_select 0, %s23, %s21
  loop: start=0, step=1, limit=4
  $region2: #{vit_forward.1} parent=0 // loop_pre_header
    _
  $region3: #{vit_forward.1} parent=0 // loop_header
    %s26 = sphi 0, %s30
    %p27 = scmp.ge.s32.totalorder %s26, 4
    %s36 = sphi 0, %s38
    %s39 = sphi 0, %s36
    %s40 = sphi 0, %s39
    %s56 = sphi 0, %s40
    %s60 = sphi 0, %s60
    %s62 = sphi 0, %s60
    %s63 = sphi 0, %s62
    %s77 = sphi 0, %s63
    %s81 = sphi 0, %s81
    %s83 = sphi 0, %s81
    %s84 = sphi 0, %s83
    %s98 = sphi 0, %s84
    %s102 = sphi 0, %s102
    %s104 = sphi 0, %s102
    %s105 = sphi 0, %s104
    %s119 = sphi 0, %s105
    %s123 = sphi 0, %s123
    %s125 = sphi 0, %s123
    %s126 = sphi 0, %s125
    %s140 = sphi 0, %s126
    %s144 = sphi 0, %s144
    %s146 = sphi 0, %s144
    %s147 = sphi 0, %s146
    %s161 = sphi 0, %s147
    %s165 = sphi 0, %s165
    %s167 = sphi 0, %s165
    %s168 = sphi 0, %s167
    %s182 = sphi 0, %s168
    %s186 = sphi 0, %s186
    %s188 = sphi 0, %s186
    %s189 = sphi 0, %s188
    %s203 = sphi 0, %s189
    %s207 = sphi 0, %s207
    %s209 = sphi 0, %s207
    %s210 = sphi 0, %s209
    %s224 = sphi 0, %s210
    %s228 = sphi 0, %s228
    %s230 = sphi 0, %s228
    %s231 = sphi 0, %s230
    %s245 = sphi 0, %s231
    %s249 = sphi 0, %s249
    %s251 = sphi 0, %s249
    %s252 = sphi 0, %s251
    %s266 = sphi 0, %s252
    %s270 = sphi 0, %s270
    %s272 = sphi 0, %s270
    %s273 = sphi 0, %s272
    %s287 = sphi 0, %s273
    %s291 = sphi 0, %s291
    %s293 = sphi 0, %s291
    %s294 = sphi 0, %s293
    %s308 = sphi 0, %s294
    %s312 = sphi 0, %s312
    %s314 = sphi 0, %s312
    %s315 = sphi 0, %s314
    %s329 = sphi 0, %s315
    %s333 = sphi 0, %s333
    %s335 = sphi 0, %s333
    %s336 = sphi 0, %s335
    %s350 = sphi 0, %s336
    %s354 = sphi 0, %s354
    %s356 = sphi 0, %s354
    %s357 = sphi 0, %s356
    %s371 = sphi 0, %s357
    %s375 = sphi 0, %s375
    %s377 = sphi 0, %s375
    %s378 = sphi 0, %s377
    %s392 = sphi 0, %s378
    %s396 = sphi 0, %s396
    %s398 = sphi 0, %s396
    %s399 = sphi 0, %s398
    %s413 = sphi 0, %s399
    %s417 = sphi 0, %s417
    %s419 = sphi 0, %s417
    %s420 = sphi 0, %s419
    %s434 = sphi 0, %s420
    %s438 = sphi 0, %s438
    %s440 = sphi 0, %s438
    %s441 = sphi 0, %s440
    %s455 = sphi 0, %s441
    %s461 = sphi 0, %s463
    %s464 = sphi 0, %s461
    %s465 = sphi 0, %s464
    %s481 = sphi 0, %s465
  $region4: #{vit_forward.1} parent=0 // loop_header_branch
    %29 = sbr.rel (%p27) target = $region8
  $region5: #{vit_forward.1} parent=0 // loop_body
    %s31 = ssub.s32 %s26, 1
    %s32 = ssub.s32 %s26, 2
    %s33 = sadd.s32 %s26, 1
    %s34 = ssub.s32 %s26, %s33
    %p35 = scmp.eq.s32.totalorder %s34, 0
    %s37 = sadd.s32 %s36, 1
    %s38 = scalar_select %p35, %s36, %s37
    %p41 = pneg %p35
    %p42 = scmp.eq.s32.totalorder %s26, 1
    %p43 = por %p41, %p42
    %p44 = scmp.ne.s32.totalorder %s36, %s39
    %p45 = scmp.eq.s32.totalorder %s26, 0
    %p46 = por %p44, %p45
    %p47 = scmp.ne.s32.totalorder %s36, %s39
    %p48 = scmp.eq.s32.totalorder %s31, 1
    %p49 = por %p47, %p48
    %p50 = scmp.ne.s32.totalorder %s39, %s40
    %p51 = scmp.eq.s32.totalorder %s31, 0
    %p52 = por %p50, %p51
    %p53 = scmp.ne.s32.totalorder %s39, %s40
    %p54 = scmp.eq.s32.totalorder %s32, 1
    %p55 = por %p53, %p54
    %p57 = scmp.ne.s32.totalorder %s40, %s56
    %p58 = scmp.eq.s32.totalorder %s32, 0
    %p59 = por %p57, %p58
    %s61 = sadd.s32 %s60, 1
    %p64 = scmp.eq.s32.totalorder %s26, 1
    %p65 = scmp.ne.s32.totalorder %s60, %s62
    %p66 = scmp.eq.s32.totalorder %s26, 0
    %p67 = por %p65, %p66
    %p68 = scmp.ne.s32.totalorder %s60, %s62
    %p69 = scmp.eq.s32.totalorder %s31, 1
    %p70 = por %p68, %p69
    %p71 = scmp.ne.s32.totalorder %s62, %s63
    %p72 = scmp.eq.s32.totalorder %s31, 0
    %p73 = por %p71, %p72
    %p74 = scmp.ne.s32.totalorder %s62, %s63
    %p75 = scmp.eq.s32.totalorder %s32, 1
    %p76 = por %p74, %p75
    %p78 = scmp.ne.s32.totalorder %s63, %s77
    %p79 = scmp.eq.s32.totalorder %s32, 0
    %p80 = por %p78, %p79
    %s82 = sadd.s32 %s81, 1
    %p85 = scmp.eq.s32.totalorder %s26, 1
    %p86 = scmp.ne.s32.totalorder %s81, %s83
    %p87 = scmp.eq.s32.totalorder %s26, 0
    %p88 = por %p86, %p87
    %p89 = scmp.ne.s32.totalorder %s81, %s83
    %p90 = scmp.eq.s32.totalorder %s31, 1
    %p91 = por %p89, %p90
    %p92 = scmp.ne.s32.totalorder %s83, %s84
    %p93 = scmp.eq.s32.totalorder %s31, 0
    %p94 = por %p92, %p93
    %p95 = scmp.ne.s32.totalorder %s83, %s84
    %p96 = scmp.eq.s32.totalorder %s32, 1
    %p97 = por %p95, %p96
    %p99 = scmp.ne.s32.totalorder %s84, %s98
    %p100 = scmp.eq.s32.totalorder %s32, 0
    %p101 = por %p99, %p100
    %s103 = sadd.s32 %s102, 1
    %p106 = scmp.eq.s32.totalorder %s26, 1
    %p107 = scmp.ne.s32.totalorder %s102, %s104
    %p108 = scmp.eq.s32.totalorder %s26, 0
    %p109 = por %p107, %p108
    %p110 = scmp.ne.s32.totalorder %s102, %s104
    %p111 = scmp.eq.s32.totalorder %s31, 1
    %p112 = por %p110, %p111
    %p113 = scmp.ne.s32.totalorder %s104, %s105
    %p114 = scmp.eq.s32.totalorder %s31, 0
    %p115 = por %p113, %p114
    %p116 = scmp.ne.s32.totalorder %s104, %s105
    %p117 = scmp.eq.s32.totalorder %s32, 1
    %p118 = por %p116, %p117
    %p120 = scmp.ne.s32.totalorder %s105, %s119
    %p121 = scmp.eq.s32.totalorder %s32, 0
    %p122 = por %p120, %p121
    %s124 = sadd.s32 %s123, 1
    %p127 = scmp.eq.s32.totalorder %s26, 1
    %p128 = scmp.ne.s32.totalorder %s123, %s125
    %p129 = scmp.eq.s32.totalorder %s26, 0
    %p130 = por %p128, %p129
    %p131 = scmp.ne.s32.totalorder %s123, %s125
    %p132 = scmp.eq.s32.totalorder %s31, 1
    %p133 = por %p131, %p132
    %p134 = scmp.ne.s32.totalorder %s125, %s126
    %p135 = scmp.eq.s32.totalorder %s31, 0
    %p136 = por %p134, %p135
    %p137 = scmp.ne.s32.totalorder %s125, %s126
    %p138 = scmp.eq.s32.totalorder %s32, 1
    %p139 = por %p137, %p138
    %p141 = scmp.ne.s32.totalorder %s126, %s140
    %p142 = scmp.eq.s32.totalorder %s32, 0
    %p143 = por %p141, %p142
    %s145 = sadd.s32 %s144, 1
    %p148 = scmp.eq.s32.totalorder %s26, 1
    %p149 = scmp.ne.s32.totalorder %s144, %s146
    %p150 = scmp.eq.s32.totalorder %s26, 0
    %p151 = por %p149, %p150
    %p152 = scmp.ne.s32.totalorder %s144, %s146
    %p153 = scmp.eq.s32.totalorder %s31, 1
    %p154 = por %p152, %p153
    %p155 = scmp.ne.s32.totalorder %s146, %s147
    %p156 = scmp.eq.s32.totalorder %s31, 0
    %p157 = por %p155, %p156
    %p158 = scmp.ne.s32.totalorder %s146, %s147
    %p159 = scmp.eq.s32.totalorder %s32, 1
    %p160 = por %p158, %p159
    %p162 = scmp.ne.s32.totalorder %s147, %s161
    %p163 = scmp.eq.s32.totalorder %s32, 0
    %p164 = por %p162, %p163
    %s166 = sadd.s32 %s165, 1
    %p169 = scmp.eq.s32.totalorder %s26, 1
    %p170 = scmp.ne.s32.totalorder %s165, %s167
    %p171 = scmp.eq.s32.totalorder %s26, 0
    %p172 = por %p170, %p171
    %p173 = scmp.ne.s32.totalorder %s165, %s167
    %p174 = scmp.eq.s32.totalorder %s31, 1
    %p175 = por %p173, %p174
    %p176 = scmp.ne.s32.totalorder %s167, %s168
    %p177 = scmp.eq.s32.totalorder %s31, 0
    %p178 = por %p176, %p177
    %p179 = scmp.ne.s32.totalorder %s167, %s168
    %p180 = scmp.eq.s32.totalorder %s32, 1
    %p181 = por %p179, %p180
    %p183 = scmp.ne.s32.totalorder %s168, %s182
    %p184 = scmp.eq.s32.totalorder %s32, 0
    %p185 = por %p183, %p184
    %s187 = sadd.s32 %s186, 1
    %p190 = scmp.eq.s32.totalorder %s26, 1
    %p191 = scmp.ne.s32.totalorder %s186, %s188
    %p192 = scmp.eq.s32.totalorder %s26, 0
    %p193 = por %p191, %p192
    %p194 = scmp.ne.s32.totalorder %s186, %s188
    %p195 = scmp.eq.s32.totalorder %s31, 1
    %p196 = por %p194, %p195
    %p197 = scmp.ne.s32.totalorder %s188, %s189
    %p198 = scmp.eq.s32.totalorder %s31, 0
    %p199 = por %p197, %p198
    %p200 = scmp.ne.s32.totalorder %s188, %s189
    %p201 = scmp.eq.s32.totalorder %s32, 1
    %p202 = por %p200, %p201
    %p204 = scmp.ne.s32.totalorder %s189, %s203
    %p205 = scmp.eq.s32.totalorder %s32, 0
    %p206 = por %p204, %p205
    %s208 = sadd.s32 %s207, 1
    %p211 = scmp.eq.s32.totalorder %s26, 1
    %p212 = scmp.ne.s32.totalorder %s207, %s209
    %p213 = scmp.eq.s32.totalorder %s26, 0
    %p214 = por %p212, %p213
    %p215 = scmp.ne.s32.totalorder %s207, %s209
    %p216 = scmp.eq.s32.totalorder %s31, 1
    %p217 = por %p215, %p216
    %p218 = scmp.ne.s32.totalorder %s209, %s210
    %p219 = scmp.eq.s32.totalorder %s31, 0
    %p220 = por %p218, %p219
    %p221 = scmp.ne.s32.totalorder %s209, %s210
    %p222 = scmp.eq.s32.totalorder %s32, 1
    %p223 = por %p221, %p222
    %p225 = scmp.ne.s32.totalorder %s210, %s224
    %p226 = scmp.eq.s32.totalorder %s32, 0
    %p227 = por %p225, %p226
    %s229 = sadd.s32 %s228, 1
    %p232 = scmp.eq.s32.totalorder %s26, 1
    %p233 = scmp.ne.s32.totalorder %s228, %s230
    %p234 = scmp.eq.s32.totalorder %s26, 0
    %p235 = por %p233, %p234
    %p236 = scmp.ne.s32.totalorder %s228, %s230
    %p237 = scmp.eq.s32.totalorder %s31, 1
    %p238 = por %p236, %p237
    %p239 = scmp.ne.s32.totalorder %s230, %s231
    %p240 = scmp.eq.s32.totalorder %s31, 0
    %p241 = por %p239, %p240
    %p242 = scmp.ne.s32.totalorder %s230, %s231
    %p243 = scmp.eq.s32.totalorder %s32, 1
    %p244 = por %p242, %p243
    %p246 = scmp.ne.s32.totalorder %s231, %s245
    %p247 = scmp.eq.s32.totalorder %s32, 0
    %p248 = por %p246, %p247
    %s250 = sadd.s32 %s249, 1
    %p253 = scmp.eq.s32.totalorder %s26, 1
    %p254 = scmp.ne.s32.totalorder %s249, %s251
    %p255 = scmp.eq.s32.totalorder %s26, 0
    %p256 = por %p254, %p255
    %p257 = scmp.ne.s32.totalorder %s249, %s251
    %p258 = scmp.eq.s32.totalorder %s31, 1
    %p259 = por %p257, %p258
    %p260 = scmp.ne.s32.totalorder %s251, %s252
    %p261 = scmp.eq.s32.totalorder %s31, 0
    %p262 = por %p260, %p261
    %p263 = scmp.ne.s32.totalorder %s251, %s252
    %p264 = scmp.eq.s32.totalorder %s32, 1
    %p265 = por %p263, %p264
    %p267 = scmp.ne.s32.totalorder %s252, %s266
    %p268 = scmp.eq.s32.totalorder %s32, 0
    %p269 = por %p267, %p268
    %s271 = sadd.s32 %s270, 1
    %p274 = scmp.eq.s32.totalorder %s26, 1
    %p275 = scmp.ne.s32.totalorder %s270, %s272
    %p276 = scmp.eq.s32.totalorder %s26, 0
    %p277 = por %p275, %p276
    %p278 = scmp.ne.s32.totalorder %s270, %s272
    %p279 = scmp.eq.s32.totalorder %s31, 1
    %p280 = por %p278, %p279
    %p281 = scmp.ne.s32.totalorder %s272, %s273
    %p282 = scmp.eq.s32.totalorder %s31, 0
    %p283 = por %p281, %p282
    %p284 = scmp.ne.s32.totalorder %s272, %s273
    %p285 = scmp.eq.s32.totalorder %s32, 1
    %p286 = por %p284, %p285
    %p288 = scmp.ne.s32.totalorder %s273, %s287
    %p289 = scmp.eq.s32.totalorder %s32, 0
    %p290 = por %p288, %p289
    %s292 = sadd.s32 %s291, 1
    %p295 = scmp.eq.s32.totalorder %s26, 1
    %p296 = scmp.ne.s32.totalorder %s291, %s293
    %p297 = scmp.eq.s32.totalorder %s26, 0
    %p298 = por %p296, %p297
    %p299 = scmp.ne.s32.totalorder %s291, %s293
    %p300 = scmp.eq.s32.totalorder %s31, 1
    %p301 = por %p299, %p300
    %p302 = scmp.ne.s32.totalorder %s293, %s294
    %p303 = scmp.eq.s32.totalorder %s31, 0
    %p304 = por %p302, %p303
    %p305 = scmp.ne.s32.totalorder %s293, %s294
    %p306 = scmp.eq.s32.totalorder %s32, 1
    %p307 = por %p305, %p306
    %p309 = scmp.ne.s32.totalorder %s294, %s308
    %p310 = scmp.eq.s32.totalorder %s32, 0
    %p311 = por %p309, %p310
    %s313 = sadd.s32 %s312, 1
    %p316 = scmp.eq.s32.totalorder %s26, 1
    %p317 = scmp.ne.s32.totalorder %s312, %s314
    %p318 = scmp.eq.s32.totalorder %s26, 0
    %p319 = por %p317, %p318
    %p320 = scmp.ne.s32.totalorder %s312, %s314
    %p321 = scmp.eq.s32.totalorder %s31, 1
    %p322 = por %p320, %p321
    %p323 = scmp.ne.s32.totalorder %s314, %s315
    %p324 = scmp.eq.s32.totalorder %s31, 0
    %p325 = por %p323, %p324
    %p326 = scmp.ne.s32.totalorder %s314, %s315
    %p327 = scmp.eq.s32.totalorder %s32, 1
    %p328 = por %p326, %p327
    %p330 = scmp.ne.s32.totalorder %s315, %s329
    %p331 = scmp.eq.s32.totalorder %s32, 0
    %p332 = por %p330, %p331
    %s334 = sadd.s32 %s333, 1
    %p337 = scmp.eq.s32.totalorder %s26, 1
    %p338 = scmp.ne.s32.totalorder %s333, %s335
    %p339 = scmp.eq.s32.totalorder %s26, 0
    %p340 = por %p338, %p339
    %p341 = scmp.ne.s32.totalorder %s333, %s335
    %p342 = scmp.eq.s32.totalorder %s31, 1
    %p343 = por %p341, %p342
    %p344 = scmp.ne.s32.totalorder %s335, %s336
    %p345 = scmp.eq.s32.totalorder %s31, 0
    %p346 = por %p344, %p345
    %p347 = scmp.ne.s32.totalorder %s335, %s336
    %p348 = scmp.eq.s32.totalorder %s32, 1
    %p349 = por %p347, %p348
    %p351 = scmp.ne.s32.totalorder %s336, %s350
    %p352 = scmp.eq.s32.totalorder %s32, 0
    %p353 = por %p351, %p352
    %s355 = sadd.s32 %s354, 1
    %p358 = scmp.eq.s32.totalorder %s26, 1
    %p359 = scmp.ne.s32.totalorder %s354, %s356
    %p360 = scmp.eq.s32.totalorder %s26, 0
    %p361 = por %p359, %p360
    %p362 = scmp.ne.s32.totalorder %s354, %s356
    %p363 = scmp.eq.s32.totalorder %s31, 1
    %p364 = por %p362, %p363
    %p365 = scmp.ne.s32.totalorder %s356, %s357
    %p366 = scmp.eq.s32.totalorder %s31, 0
    %p367 = por %p365, %p366
    %p368 = scmp.ne.s32.totalorder %s356, %s357
    %p369 = scmp.eq.s32.totalorder %s32, 1
    %p370 = por %p368, %p369
    %p372 = scmp.ne.s32.totalorder %s357, %s371
    %p373 = scmp.eq.s32.totalorder %s32, 0
    %p374 = por %p372, %p373
    %s376 = sadd.s32 %s375, 1
    %p379 = scmp.eq.s32.totalorder %s26, 1
    %p380 = scmp.ne.s32.totalorder %s375, %s377
    %p381 = scmp.eq.s32.totalorder %s26, 0
    %p382 = por %p380, %p381
    %p383 = scmp.ne.s32.totalorder %s375, %s377
    %p384 = scmp.eq.s32.totalorder %s31, 1
    %p385 = por %p383, %p384
    %p386 = scmp.ne.s32.totalorder %s377, %s378
    %p387 = scmp.eq.s32.totalorder %s31, 0
    %p388 = por %p386, %p387
    %p389 = scmp.ne.s32.totalorder %s377, %s378
    %p390 = scmp.eq.s32.totalorder %s32, 1
    %p391 = por %p389, %p390
    %p393 = scmp.ne.s32.totalorder %s378, %s392
    %p394 = scmp.eq.s32.totalorder %s32, 0
    %p395 = por %p393, %p394
    %s397 = sadd.s32 %s396, 1
    %p400 = scmp.eq.s32.totalorder %s26, 1
    %p401 = scmp.ne.s32.totalorder %s396, %s398
    %p402 = scmp.eq.s32.totalorder %s26, 0
    %p403 = por %p401, %p402
    %p404 = scmp.ne.s32.totalorder %s396, %s398
    %p405 = scmp.eq.s32.totalorder %s31, 1
    %p406 = por %p404, %p405
    %p407 = scmp.ne.s32.totalorder %s398, %s399
    %p408 = scmp.eq.s32.totalorder %s31, 0
    %p409 = por %p407, %p408
    %p410 = scmp.ne.s32.totalorder %s398, %s399
    %p411 = scmp.eq.s32.totalorder %s32, 1
    %p412 = por %p410, %p411
    %p414 = scmp.ne.s32.totalorder %s399, %s413
    %p415 = scmp.eq.s32.totalorder %s32, 0
    %p416 = por %p414, %p415
    %s418 = sadd.s32 %s417, 1
    %p421 = scmp.eq.s32.totalorder %s26, 1
    %p422 = scmp.ne.s32.totalorder %s417, %s419
    %p423 = scmp.eq.s32.totalorder %s26, 0
    %p424 = por %p422, %p423
    %p425 = scmp.ne.s32.totalorder %s417, %s419
    %p426 = scmp.eq.s32.totalorder %s31, 1
    %p427 = por %p425, %p426
    %p428 = scmp.ne.s32.totalorder %s419, %s420
    %p429 = scmp.eq.s32.totalorder %s31, 0
    %p430 = por %p428, %p429
    %p431 = scmp.ne.s32.totalorder %s419, %s420
    %p432 = scmp.eq.s32.totalorder %s32, 1
    %p433 = por %p431, %p432
    %p435 = scmp.ne.s32.totalorder %s420, %s434
    %p436 = scmp.eq.s32.totalorder %s32, 0
    %p437 = por %p435, %p436
    %s439 = sadd.s32 %s438, 1
    %p442 = scmp.eq.s32.totalorder %s26, 1
    %p443 = scmp.ne.s32.totalorder %s438, %s440
    %p444 = scmp.eq.s32.totalorder %s26, 0
    %p445 = por %p443, %p444
    %p446 = scmp.ne.s32.totalorder %s438, %s440
    %p447 = scmp.eq.s32.totalorder %s31, 1
    %p448 = por %p446, %p447
    %p449 = scmp.ne.s32.totalorder %s440, %s441
    %p450 = scmp.eq.s32.totalorder %s31, 0
    %p451 = por %p449, %p450
    %p452 = scmp.ne.s32.totalorder %s440, %s441
    %p453 = scmp.eq.s32.totalorder %s32, 1
    %p454 = por %p452, %p453
    %p456 = scmp.ne.s32.totalorder %s441, %s455
    %p457 = scmp.eq.s32.totalorder %s32, 0
    %p458 = por %p456, %p457
    %s459 = ssub.s32 %s26, %s33
    %p460 = scmp.eq.s32.totalorder %s459, 0
    %s462 = sadd.s32 %s461, 1
    %s463 = scalar_select %p460, %s461, %s462
    %p466 = pneg %p460
    %p467 = scmp.eq.s32.totalorder %s26, 1
    %p468 = por %p466, %p467
    %p469 = scmp.ne.s32.totalorder %s461, %s464
    %p470 = scmp.eq.s32.totalorder %s26, 0
    %p471 = por %p469, %p470
    %p472 = scmp.ne.s32.totalorder %s461, %s464
    %p473 = scmp.eq.s32.totalorder %s31, 1
    %p474 = por %p472, %p473
    %p475 = scmp.ne.s32.totalorder %s464, %s465
    %p476 = scmp.eq.s32.totalorder %s31, 0
    %p477 = por %p475, %p476
    %p478 = scmp.ne.s32.totalorder %s464, %s465
    %p479 = scmp.eq.s32.totalorder %s32, 1
    %p480 = por %p478, %p479
    %p482 = scmp.ne.s32.totalorder %s465, %s481
    %p483 = scmp.eq.s32.totalorder %s32, 0
    %p484 = por %p482, %p483
    %p485 = scmp.le.s32.totalorder 1, %s26
    %p486 = scmp.lt.s32.totalorder %s26, 3
    %p487 = pnand %p485, %p486
    %p488 = pneg %p487
    // Predicated region
    $region9: #{vit_forward.1} parent=5 // pred_check
      _
    $region10: #{vit_forward.1} parent=5 // pred_check_branch
      %490 = sbr.rel (%p487) target = $region12
    $region11: #{vit_forward.1} parent=5 // pred_region
      %s491 = ssub.s32 %s26, 1
      // Predicated region
      $region13: #{vit_forward.1} parent=11 // pred_check
        %p492 = pneg %p73
      $region14: #{vit_forward.1} parent=11 // pred_check_branch
        %494 = sbr.rel (%p492) target = $region16
      $region15: #{vit_forward.1} parent=11 // pred_region
        _
      $region16: #{vit_forward.1} parent=11 // pred_fallthru
        _
      // Predicated region
      $region17: #{vit_forward.1} parent=11 // pred_check
        %p495 = pneg %p94
      $region18: #{vit_forward.1} parent=11 // pred_check_branch
        %497 = sbr.rel (%p495) target = $region20
      $region19: #{vit_forward.1} parent=11 // pred_region
        _
      $region20: #{vit_forward.1} parent=11 // pred_fallthru
        _
      // Predicated region
      $region21: #{vit_forward.1} parent=11 // pred_check
        %p498 = pneg %p115
      $region22: #{vit_forward.1} parent=11 // pred_check_branch
        %500 = sbr.rel (%p498) target = $region24
      $region23: #{vit_forward.1} parent=11 // pred_region
        _
      $region24: #{vit_forward.1} parent=11 // pred_fallthru
        _
      // Predicated region
      $region25: #{vit_forward.1} parent=11 // pred_check
        %p501 = pneg %p136
      $region26: #{vit_forward.1} parent=11 // pred_check_branch
        %503 = sbr.rel (%p501) target = $region28
      $region27: #{vit_forward.1} parent=11 // pred_region
        _
      $region28: #{vit_forward.1} parent=11 // pred_fallthru
        _
      // Predicated region
      $region29: #{vit_forward.1} parent=11 // pred_check
        %p504 = pneg %p157
      $region30: #{vit_forward.1} parent=11 // pred_check_branch
        %506 = sbr.rel (%p504) target = $region32
      $region31: #{vit_forward.1} parent=11 // pred_region
        _
      $region32: #{vit_forward.1} parent=11 // pred_fallthru
        _
      // Predicated region
      $region33: #{vit_forward.1} parent=11 // pred_check
        %p507 = pneg %p178
      $region34: #{vit_forward.1} parent=11 // pred_check_branch
        %509 = sbr.rel (%p507) target = $region36
      $region35: #{vit_forward.1} parent=11 // pred_region
        _
      $region36: #{vit_forward.1} parent=11 // pred_fallthru
        _
      // Predicated region
      $region37: #{vit_forward.1} parent=11 // pred_check
        %p510 = pneg %p199
      $region38: #{vit_forward.1} parent=11 // pred_check_branch
        %512 = sbr.rel (%p510) target = $region40
      $region39: #{vit_forward.1} parent=11 // pred_region
        _
      $region40: #{vit_forward.1} parent=11 // pred_fallthru
        _
      // Predicated region
      $region41: #{vit_forward.1} parent=11 // pred_check
        %p513 = pneg %p220
      $region42: #{vit_forward.1} parent=11 // pred_check_branch
        %515 = sbr.rel (%p513) target = $region44
      $region43: #{vit_forward.1} parent=11 // pred_region
        _
      $region44: #{vit_forward.1} parent=11 // pred_fallthru
        _
      // Predicated region
      $region45: #{vit_forward.1} parent=11 // pred_check
        %p516 = pneg %p241
      $region46: #{vit_forward.1} parent=11 // pred_check_branch
        %518 = sbr.rel (%p516) target = $region48
      $region47: #{vit_forward.1} parent=11 // pred_region
        _
      $region48: #{vit_forward.1} parent=11 // pred_fallthru
        _
      // Predicated region
      $region49: #{vit_forward.1} parent=11 // pred_check
        %p519 = pneg %p262
      $region50: #{vit_forward.1} parent=11 // pred_check_branch
        %521 = sbr.rel (%p519) target = $region52
      $region51: #{vit_forward.1} parent=11 // pred_region
        _
      $region52: #{vit_forward.1} parent=11 // pred_fallthru
        _
      // Predicated region
      $region53: #{vit_forward.1} parent=11 // pred_check
        %p522 = pneg %p283
      $region54: #{vit_forward.1} parent=11 // pred_check_branch
        %524 = sbr.rel (%p522) target = $region56
      $region55: #{vit_forward.1} parent=11 // pred_region
        _
      $region56: #{vit_forward.1} parent=11 // pred_fallthru
        _
      // Predicated region
      $region57: #{vit_forward.1} parent=11 // pred_check
        %p525 = pneg %p304
      $region58: #{vit_forward.1} parent=11 // pred_check_branch
        %527 = sbr.rel (%p525) target = $region60
      $region59: #{vit_forward.1} parent=11 // pred_region
        _
      $region60: #{vit_forward.1} parent=11 // pred_fallthru
        _
      // Predicated region
      $region61: #{vit_forward.1} parent=11 // pred_check
        %p528 = pneg %p325
      $region62: #{vit_forward.1} parent=11 // pred_check_branch
        %530 = sbr.rel (%p528) target = $region64
      $region63: #{vit_forward.1} parent=11 // pred_region
        _
      $region64: #{vit_forward.1} parent=11 // pred_fallthru
        _
      // Predicated region
      $region65: #{vit_forward.1} parent=11 // pred_check
        %p531 = pneg %p346
      $region66: #{vit_forward.1} parent=11 // pred_check_branch
        %533 = sbr.rel (%p531) target = $region68
      $region67: #{vit_forward.1} parent=11 // pred_region
        _
      $region68: #{vit_forward.1} parent=11 // pred_fallthru
        _
      // Predicated region
      $region69: #{vit_forward.1} parent=11 // pred_check
        %p534 = pneg %p367
      $region70: #{vit_forward.1} parent=11 // pred_check_branch
        %536 = sbr.rel (%p534) target = $region72
      $region71: #{vit_forward.1} parent=11 // pred_region
        _
      $region72: #{vit_forward.1} parent=11 // pred_fallthru
        _
      // Predicated region
      $region73: #{vit_forward.1} parent=11 // pred_check
        %p537 = pneg %p388
      $region74: #{vit_forward.1} parent=11 // pred_check_branch
        %539 = sbr.rel (%p537) target = $region76
      $region75: #{vit_forward.1} parent=11 // pred_region
        _
      $region76: #{vit_forward.1} parent=11 // pred_fallthru
        _
      // Predicated region
      $region77: #{vit_forward.1} parent=11 // pred_check
        %p540 = pneg %p409
      $region78: #{vit_forward.1} parent=11 // pred_check_branch
        %542 = sbr.rel (%p540) target = $region80
      $region79: #{vit_forward.1} parent=11 // pred_region
        _
      $region80: #{vit_forward.1} parent=11 // pred_fallthru
        _
      // Predicated region
      $region81: #{vit_forward.1} parent=11 // pred_check
        %p543 = pneg %p430
      $region82: #{vit_forward.1} parent=11 // pred_check_branch
        %545 = sbr.rel (%p543) target = $region84
      $region83: #{vit_forward.1} parent=11 // pred_region
        _
      $region84: #{vit_forward.1} parent=11 // pred_fallthru
        _
      // Predicated region
      $region85: #{vit_forward.1} parent=11 // pred_check
        %p546 = pneg %p451
      $region86: #{vit_forward.1} parent=11 // pred_check_branch
        %548 = sbr.rel (%p546) target = $region88
      $region87: #{vit_forward.1} parent=11 // pred_region
        _
      $region88: #{vit_forward.1} parent=11 // pred_fallthru
        _
    $region12: #{vit_forward.1} parent=5 // pred_fallthru
      _
    %p549 = scmp.lt.s32.totalorder %s26, 2
    // Predicated region
    $region89: #{vit_forward.1} parent=5 // pred_check
      %p550 = pneg %p549
    $region90: #{vit_forward.1} parent=5 // pred_check_branch
      %552 = sbr.rel (%p550) target = $region92
    $region91: #{vit_forward.1} parent=5 // pred_region
      // Predicated region
      $region93: #{vit_forward.1} parent=91 // pred_check
        %p553 = pneg %p46
      $region94: #{vit_forward.1} parent=91 // pred_check_branch
        %555 = sbr.rel (%p553) target = $region96
      $region95: #{vit_forward.1} parent=91 // pred_region
        %p556 = scmp.lt.s32.totalorder %s26, 1
        %s557 = scalar_select %p556, %s26, 1
        %s558 = smul.addr %s557, 6
        %s559 = smul.addr %s558, 4
        %s560 = scalar_lea.vmem %s0, %s559
      $region96: #{vit_forward.1} parent=91 // pred_fallthru
        _
    $region92: #{vit_forward.1} parent=5 // pred_fallthru
      _
    %p561 = scmp.le.s32.totalorder 1, %s26
    %p562 = scmp.lt.s32.totalorder %s26, 3
    %p563 = pnand %p561, %p562
    %p564 = pneg %p563
    // Predicated region
    $region97: #{vit_forward.1} parent=5 // pred_check
      _
    $region98: #{vit_forward.1} parent=5 // pred_check_branch
      %566 = sbr.rel (%p563) target = $region100
    $region99: #{vit_forward.1} parent=5 // pred_region
      %s567 = ssub.s32 %s26, 1
      %p568 = scmp.lt.s32.totalorder %s31, 1
      %s569 = scalar_select %p568, %s31, 1
      %s570 = smul.addr %s569, 6
      %s571 = smul.addr %s570, 4
      %s572 = scalar_lea.vmem %s0, %s571
      %p573 = pneg %p52
      %p574 = pneg %p49
      %p575 = pneg %p73
      %p576 = pneg %p70
      %p577 = pneg %p94
      %p578 = pneg %p91
      %p579 = pneg %p115
      %p580 = pneg %p112
      %p581 = pneg %p136
      %p582 = pneg %p133
      %p583 = pneg %p157
      %p584 = pneg %p154
      %p585 = pneg %p178
      %p586 = pneg %p175
      %p587 = pneg %p199
      %p588 = pneg %p196
      %p589 = pneg %p220
      %p590 = pneg %p217
      %p591 = pneg %p241
      %p592 = pneg %p238
      %p593 = pneg %p262
      %p594 = pneg %p259
      %p595 = pneg %p283
      %p596 = pneg %p280
      %p597 = pneg %p304
      %p598 = pneg %p301
      %p599 = pneg %p325
      %p600 = pneg %p322
      %p601 = pneg %p346
      %p602 = pneg %p343
      %p603 = pneg %p367
      %p604 = pneg %p364
      %p605 = pneg %p388
      %p606 = pneg %p385
      %p607 = pneg %p409
      %p608 = pneg %p406
      %p609 = pneg %p430
      %p610 = pneg %p427
      %p611 = pneg %p451
      %p612 = pneg %p448
      %p613 = pneg %p477
      %p614 = pneg %p474
      %p615 = scmp.lt.s32.totalorder %s31, 1
      %s616 = scalar_select %p615, %s31, 1
      %s617 = smul.addr %s616, 2
      %s618 = scalar_lea.vmem %s20, %s617
      %p619 = scmp.lt.s32.totalorder %s31, 1
      %s620 = scalar_select %p619, %s31, 1
      %s621 = smul.addr %s620, 6
      %s622 = smul.addr %s621, 4
      %s623 = scalar_lea.vmem %s0, %s622
      %p624 = scmp.lt.s32.totalorder %s31, 1
      %s625 = scalar_select %p624, %s31, 1
      %s626 = smul.addr %s625, 2
      %s627 = scalar_lea.vmem %s20, %s626
      %v628 = vld [vmem:[%s623] sm:$0xff]
      %v629 = vld [vmem:[%s623 + $0x8] sm:$0xff]
      %v630 = vld [vmem:[%s623 + $0x10] sm:$0xff]
      %v631 = vld [vmem:[%s1] sm:$0xff]
      %v632 = vld [vmem:[%s1 + $0x8] sm:$0xff]
      %v633 = vld [vmem:[%s1 + $0x10] sm:$0xff]
      %v634 = vld [vmem:[%s1 + $0x18] sm:$0xff]
      %v635 = vld [vmem:[%s1 + $0x20] sm:$0xff]
      %v636 = vld [vmem:[%s1 + $0x28] sm:$0xff]
      %v637 = vld [vmem:[%s1 + $0x30] sm:$0xff]
      %v638 = vld [vmem:[%s1 + $0x38] sm:$0xff]
      %v639 = vld [vmem:[%s1 + $0x40] sm:$0xff]
      %v640 = vld [vmem:[%s1 + $0x48] sm:$0xff]
      %v641 = vld [vmem:[%s1 + $0x50] sm:$0xff]
      %v642 = vld [vmem:[%s1 + $0x58] sm:$0xff]
      %v643 = vld [vmem:[%s1 + $0x60] sm:$0xff]
      %v644 = vld [vmem:[%s1 + $0x68] sm:$0xff]
      %v645 = vld [vmem:[%s1 + $0x70] sm:$0xff]
      %v646 = vld [vmem:[%s1 + $0x78] sm:$0xff]
      %v647 = vld [vmem:[%s1 + $0x80] sm:$0xff]
      %v648 = vld [vmem:[%s1 + $0x88] sm:$0xff]
      %v649 = vld [vmem:[%s1 + $0x90] sm:$0xff]
      %v650 = vld [vmem:[%s1 + $0x98] sm:$0xff]
      %v651 = vld [vmem:[%s1 + $0xa0] sm:$0xff]
      %v652 = vld [vmem:[%s1 + $0xa8] sm:$0xff]
      %v653 = vld [vmem:[%s1 + $0xb0] sm:$0xff]
      %v654 = vld [vmem:[%s1 + $0xb8] sm:$0xff]
      %v655 = vld [vmem:[%s1 + $0xc0] sm:$0xff]
      %v656 = vld [vmem:[%s1 + $0xc8] sm:$0xff]
      %v657 = vld [vmem:[%s1 + $0xd0] sm:$0xff]
      %v658 = vld [vmem:[%s1 + $0xd8] sm:$0xff]
      %v659 = vld [vmem:[%s1 + $0xe0] sm:$0xff]
      %v660 = vld [vmem:[%s1 + $0xe8] sm:$0xff]
      %v661 = vld [vmem:[%s1 + $0xf0] sm:$0xff]
      %v662 = vld [vmem:[%s1 + $0xf8] sm:$0xff]
      %v663 = vld [vmem:[%s1 + $0x100] sm:$0xff]
      %v664 = vld [vmem:[%s1 + $0x108] sm:$0xff]
      %v665 = vld [vmem:[%s1 + $0x110] sm:$0xff]
      %v666 = vld [vmem:[%s1 + $0x118] sm:$0xff]
      %v667 = vld [vmem:[%s1 + $0x120] sm:$0xff]
      %v668 = vld [vmem:[%s1 + $0x128] sm:$0xff]
      %v669 = vld [vmem:[%s1 + $0x130] sm:$0xff]
      %v670 = vld [vmem:[%s1 + $0x138] sm:$0xff]
      %v671 = vld [vmem:[%s1 + $0x140] sm:$0xff]
      %v672 = vld [vmem:[%s1 + $0x148] sm:$0xff]
      %v673 = vld [vmem:[%s1 + $0x150] sm:$0xff]
      %v674 = vld [vmem:[%s1 + $0x158] sm:$0xff]
      %v675 = vld [vmem:[%s1 + $0x160] sm:$0xff]
      %v676 = vld [vmem:[%s1 + $0x168] sm:$0xff]
      %v677 = vld [vmem:[%s1 + $0x170] sm:$0xff]
      %v678 = vld [vmem:[%s1 + $0x178] sm:$0xff]
      %v679 = vld [vmem:[%s1 + $0x180] sm:$0xff]
      %v680 = vld [vmem:[%s1 + $0x188] sm:$0xff]
      %v681 = vld [vmem:[%s1 + $0x190] sm:$0xff]
      %v682 = vld [vmem:[%s1 + $0x198] sm:$0xff]
      %v683 = vld [vmem:[%s1 + $0x1a0] sm:$0xff]
      %v684 = vld [vmem:[%s1 + $0x1a8] sm:$0xff]
      %v685 = vld [vmem:[%s1 + $0x1b0] sm:$0xff]
      %v686 = vld [vmem:[%s1 + $0x1b8] sm:$0xff]
      %v687 = vld [vmem:[%s1 + $0x1c0] sm:$0xff]
      %v688 = vld [vmem:[%s1 + $0x1c8] sm:$0xff]
      %v689 = vld [vmem:[%s1 + $0x1d0] sm:$0xff]
      %v690 = vld [vmem:[%s1 + $0x1d8] sm:$0xff]
      %v691 = vld [vmem:[%s1 + $0x1e0] sm:$0xff]
      %v692 = vld [vmem:[%s1 + $0x1e8] sm:$0xff]
      %v693 = vld [vmem:[%s1 + $0x1f0] sm:$0xff]
      %v694 = vld [vmem:[%s1 + $0x1f8] sm:$0xff]
      %v695 = vld [vmem:[%s1 + $0x200] sm:$0xff]
      %v696 = vld [vmem:[%s1 + $0x208] sm:$0xff]
      %v697 = vld [vmem:[%s1 + $0x210] sm:$0xff]
      %v698 = vld [vmem:[%s1 + $0x218] sm:$0xff]
      %v699 = vld [vmem:[%s1 + $0x220] sm:$0xff]
      %v700 = vld [vmem:[%s1 + $0x228] sm:$0xff]
      %v701 = vld [vmem:[%s1 + $0x230] sm:$0xff]
      %v702 = vld [vmem:[%s1 + $0x238] sm:$0xff]
      %v703 = vld [vmem:[%s1 + $0x240] sm:$0xff]
      %v704 = vld [vmem:[%s1 + $0x248] sm:$0xff]
      %v705 = vld [vmem:[%s1 + $0x250] sm:$0xff]
      %v706 = vld [vmem:[%s1 + $0x258] sm:$0xff]
      %v707 = vld [vmem:[%s1 + $0x260] sm:$0xff]
      %v708 = vld [vmem:[%s1 + $0x268] sm:$0xff]
      %v709 = vld [vmem:[%s1 + $0x270] sm:$0xff]
      %v710 = vld [vmem:[%s1 + $0x278] sm:$0xff]
      %v711 = vld [vmem:[%s1 + $0x280] sm:$0xff]
      %v712 = vld [vmem:[%s1 + $0x288] sm:$0xff]
      %v713 = vld [vmem:[%s1 + $0x290] sm:$0xff]
      %v714 = vld [vmem:[%s1 + $0x298] sm:$0xff]
      %v715 = vld [vmem:[%s1 + $0x2a0] sm:$0xff]
      %v716 = vld [vmem:[%s1 + $0x2a8] sm:$0xff]
      %v717 = vld [vmem:[%s1 + $0x2b0] sm:$0xff]
      %v718 = vld [vmem:[%s1 + $0x2b8] sm:$0xff]
      %v719 = vld [vmem:[%s1 + $0x2c0] sm:$0xff]
      %v720 = vld [vmem:[%s1 + $0x2c8] sm:$0xff]
      %v721 = vld [vmem:[%s1 + $0x2d0] sm:$0xff]
      %v722 = vld [vmem:[%s1 + $0x2d8] sm:$0xff]
      %v723 = vld [vmem:[%s1 + $0x2e0] sm:$0xff]
      %v724 = vld [vmem:[%s1 + $0x2e8] sm:$0xff]
      %v725 = vld [vmem:[%s1 + $0x2f0] sm:$0xff]
      %v726 = vld [vmem:[%s1 + $0x2f8] sm:$0xff]
      %v727 = vld [vmem:[%s2] sm:$0x1]
      %v729 = vlaneseq
      %v730 = vshrl.u32 %v729, 7
      %v731 = vsub.s32 0, %v730
      %v732 = vrot.slane %v727, %v731
      %v737 = vcombine.high %v628, %v628
      %v738 = vcombine.high %v629, %v629
      %v739 = vcombine.high %v630, %v630
      %743 = vmatprep.subr.mxu0 0.0
      %744 = vmatpush1.msra.mxu0 %v631
      %745 = vmatprep.subr.mxu0 0.0
      %746 = vmatpush1.msra.mxu0 %v632
      %747 = vmatprep.subr.mxu0 0.0
      %748 = vmatpush1.msra.mxu0 %v633
      %749 = vmatprep.subr.mxu0 0.0
      %750 = vmatpush1.msra.mxu0 %v634
      %751 = vmatprep.subr.mxu0 0.0
      %752 = vmatpush1.msra.mxu0 %v635
      %753 = vmatprep.subr.mxu0 0.0
      %754 = vmatpush1.msra.mxu0 %v636
      %755 = vmatprep.subr.mxu0 0.0
      %756 = vmatpush1.msra.mxu0 %v637
      %757 = vmatprep.subr.mxu0 0.0
      %758 = vmatpush1.msra.mxu0 %v638
      %759 = vmatprep.subr.mxu0 0.0
      %760 = vmatpush1.msra.mxu0 %v639
      %761 = vmatprep.subr.mxu0 0.0
      %762 = vmatpush1.msra.mxu0 %v640
      %763 = vmatprep.subr.mxu0 0.0
      %764 = vmatpush1.msra.mxu0 %v641
      %765 = vmatprep.subr.mxu0 0.0
      %766 = vmatpush1.msra.mxu0 %v642
      %767 = vmatprep.subr.mxu0 0.0
      %768 = vmatpush1.msra.mxu0 %v643
      %769 = vmatprep.subr.mxu0 0.0
      %770 = vmatpush1.msra.mxu0 %v644
      %771 = vmatprep.subr.mxu0 0.0
      %772 = vmatpush1.msra.mxu0 %v645
      %773 = vmatprep.subr.mxu0 0.0
      %774 = vmatpush1.msra.mxu0 %v646
      %775 = vmatprep.subr.mxu0 0.0
      %776 = vmatpush1.msra.mxu0 %v647
      %777 = vmatprep.subr.mxu0 0.0
      %778 = vmatpush1.msra.mxu0 %v648
      %779 = vmatprep.subr.mxu0 0.0
      %780 = vmatpush1.msra.mxu0 %v649
      %781 = vmatprep.subr.mxu0 0.0
      %782 = vmatpush1.msra.mxu0 %v650
      %783 = vmatprep.subr.mxu0 0.0
      %784 = vmatpush1.msra.mxu0 %v651
      %785 = vmatprep.subr.mxu0 0.0
      %786 = vmatpush1.msra.mxu0 %v652
      %787 = vmatprep.subr.mxu0 0.0
      %788 = vmatpush1.msra.mxu0 %v653
      %789 = vmatprep.subr.mxu0 0.0
      %790 = vmatpush1.msra.mxu0 %v654
      %791 = vmatprep.subr.mxu0 0.0
      %792 = vmatpush1.msra.mxu0 %v655
      %793 = vmatprep.subr.mxu0 0.0
      %794 = vmatpush1.msra.mxu0 %v656
      %795 = vmatprep.subr.mxu0 0.0
      %796 = vmatpush1.msra.mxu0 %v657
      %797 = vmatprep.subr.mxu0 0.0
      %798 = vmatpush1.msra.mxu0 %v658
      %799 = vmatprep.subr.mxu0 0.0
      %800 = vmatpush1.msra.mxu0 %v659
      %801 = vmatprep.subr.mxu0 0.0
      %802 = vmatpush1.msra.mxu0 %v660
      %803 = vmatprep.subr.mxu0 0.0
      %804 = vmatpush1.msra.mxu0 %v661
      %805 = vmatprep.subr.mxu0 0.0
      %806 = vmatpush1.msra.mxu0 %v662
      %807 = vmatprep.mubr.f32.mxu0 %v737
      %808 = vmatmul.mubr.f32.gmra.mrb[0].mxu0 %v628
      %v809 = vpop.f32.mrb[0].mxu0
      %v810 = vadd.f32 %v732, %v809
      %v811 = vpop.f32.mrb[0].mxu0
      %812 = vdwg.mxu0
      %813 = vmatprep.subr.mxu0 0.0
      %814 = vmatpush1.msra.mxu0 %v663
      %815 = vmatprep.subr.mxu0 0.0
      %816 = vmatpush1.msra.mxu0 %v664
      %817 = vmatprep.subr.mxu0 0.0
      %818 = vmatpush1.msra.mxu0 %v665
      %819 = vmatprep.subr.mxu0 0.0
      %820 = vmatpush1.msra.mxu0 %v666
      %821 = vmatprep.subr.mxu0 0.0
      %822 = vmatpush1.msra.mxu0 %v667
      %823 = vmatprep.subr.mxu0 0.0
      %824 = vmatpush1.msra.mxu0 %v668
      %825 = vmatprep.subr.mxu0 0.0
      %826 = vmatpush1.msra.mxu0 %v669
      %827 = vmatprep.subr.mxu0 0.0
      %828 = vmatpush1.msra.mxu0 %v670
      %829 = vmatprep.subr.mxu0 0.0
      %830 = vmatpush1.msra.mxu0 %v671
      %831 = vmatprep.subr.mxu0 0.0
      %832 = vmatpush1.msra.mxu0 %v672
      %833 = vmatprep.subr.mxu0 0.0
      %834 = vmatpush1.msra.mxu0 %v673
      %835 = vmatprep.subr.mxu0 0.0
      %836 = vmatpush1.msra.mxu0 %v674
      %837 = vmatprep.subr.mxu0 0.0
      %838 = vmatpush1.msra.mxu0 %v675
      %839 = vmatprep.subr.mxu0 0.0
      %840 = vmatpush1.msra.mxu0 %v676
      %841 = vmatprep.subr.mxu0 0.0
      %842 = vmatpush1.msra.mxu0 %v677
      %843 = vmatprep.subr.mxu0 0.0
      %844 = vmatpush1.msra.mxu0 %v678
      %845 = vmatprep.subr.mxu0 0.0
      %846 = vmatpush1.msra.mxu0 %v679
      %847 = vmatprep.subr.mxu0 0.0
      %848 = vmatpush1.msra.mxu0 %v680
      %849 = vmatprep.subr.mxu0 0.0
      %850 = vmatpush1.msra.mxu0 %v681
      %851 = vmatprep.subr.mxu0 0.0
      %852 = vmatpush1.msra.mxu0 %v682
      %853 = vmatprep.subr.mxu0 0.0
      %854 = vmatpush1.msra.mxu0 %v683
      %855 = vmatprep.subr.mxu0 0.0
      %856 = vmatpush1.msra.mxu0 %v684
      %857 = vmatprep.subr.mxu0 0.0
      %858 = vmatpush1.msra.mxu0 %v685
      %859 = vmatprep.subr.mxu0 0.0
      %860 = vmatpush1.msra.mxu0 %v686
      %861 = vmatprep.subr.mxu0 0.0
      %862 = vmatpush1.msra.mxu0 %v687
      %863 = vmatprep.subr.mxu0 0.0
      %864 = vmatpush1.msra.mxu0 %v688
      %865 = vmatprep.subr.mxu0 0.0
      %866 = vmatpush1.msra.mxu0 %v689
      %867 = vmatprep.subr.mxu0 0.0
      %868 = vmatpush1.msra.mxu0 %v690
      %869 = vmatprep.subr.mxu0 0.0
      %870 = vmatpush1.msra.mxu0 %v691
      %871 = vmatprep.subr.mxu0 0.0
      %872 = vmatpush1.msra.mxu0 %v692
      %873 = vmatprep.subr.mxu0 0.0
      %874 = vmatpush1.msra.mxu0 %v693
      %875 = vmatprep.subr.mxu0 0.0
      %876 = vmatpush1.msra.mxu0 %v694
      %877 = vmatprep.mubr.f32.mxu0 %v738
      %878 = vmatmul.mubr.f32.gmra.mrb[0].mxu0 %v629
      %v879 = vpop.f32.mrb[0].mxu0
      %v880 = vadd.f32 %v810, %v879
      %v881 = vpop.f32.mrb[0].mxu0
      %882 = vdwg.mxu0
      %883 = vmatprep.subr.mxu0 0.0
      %884 = vmatpush1.msra.mxu0 %v695
      %885 = vmatprep.subr.mxu0 0.0
      %886 = vmatpush1.msra.mxu0 %v696
      %887 = vmatprep.subr.mxu0 0.0
      %888 = vmatpush1.msra.mxu0 %v697
      %889 = vmatprep.subr.mxu0 0.0
      %890 = vmatpush1.msra.mxu0 %v698
      %891 = vmatprep.subr.mxu0 0.0
      %892 = vmatpush1.msra.mxu0 %v699
      %893 = vmatprep.subr.mxu0 0.0
      %894 = vmatpush1.msra.mxu0 %v700
      %895 = vmatprep.subr.mxu0 0.0
      %896 = vmatpush1.msra.mxu0 %v701
      %897 = vmatprep.subr.mxu0 0.0
      %898 = vmatpush1.msra.mxu0 %v702
      %899 = vmatprep.subr.mxu0 0.0
      %900 = vmatpush1.msra.mxu0 %v703
      %901 = vmatprep.subr.mxu0 0.0
      %902 = vmatpush1.msra.mxu0 %v704
      %903 = vmatprep.subr.mxu0 0.0
      %904 = vmatpush1.msra.mxu0 %v705
      %905 = vmatprep.subr.mxu0 0.0
      %906 = vmatpush1.msra.mxu0 %v706
      %907 = vmatprep.subr.mxu0 0.0
      %908 = vmatpush1.msra.mxu0 %v707
      %909 = vmatprep.subr.mxu0 0.0
      %910 = vmatpush1.msra.mxu0 %v708
      %911 = vmatprep.subr.mxu0 0.0
      %912 = vmatpush1.msra.mxu0 %v709
      %913 = vmatprep.subr.mxu0 0.0
      %914 = vmatpush1.msra.mxu0 %v710
      %915 = vmatprep.subr.mxu0 0.0
      %916 = vmatpush1.msra.mxu0 %v711
      %917 = vmatprep.subr.mxu0 0.0
      %918 = vmatpush1.msra.mxu0 %v712
      %919 = vmatprep.subr.mxu0 0.0
      %920 = vmatpush1.msra.mxu0 %v713
      %921 = vmatprep.subr.mxu0 0.0
      %922 = vmatpush1.msra.mxu0 %v714
      %923 = vmatprep.subr.mxu0 0.0
      %924 = vmatpush1.msra.mxu0 %v715
      %925 = vmatprep.subr.mxu0 0.0
      %926 = vmatpush1.msra.mxu0 %v716
      %927 = vmatprep.subr.mxu0 0.0
      %928 = vmatpush1.msra.mxu0 %v717
      %929 = vmatprep.subr.mxu0 0.0
      %930 = vmatpush1.msra.mxu0 %v718
      %931 = vmatprep.subr.mxu0 0.0
      %932 = vmatpush1.msra.mxu0 %v719
      %933 = vmatprep.subr.mxu0 0.0
      %934 = vmatpush1.msra.mxu0 %v720
      %935 = vmatprep.subr.mxu0 0.0
      %936 = vmatpush1.msra.mxu0 %v721
      %937 = vmatprep.subr.mxu0 0.0
      %938 = vmatpush1.msra.mxu0 %v722
      %939 = vmatprep.subr.mxu0 0.0
      %940 = vmatpush1.msra.mxu0 %v723
      %941 = vmatprep.subr.mxu0 0.0
      %942 = vmatpush1.msra.mxu0 %v724
      %943 = vmatprep.subr.mxu0 0.0
      %944 = vmatpush1.msra.mxu0 %v725
      %945 = vmatprep.subr.mxu0 0.0
      %946 = vmatpush1.msra.mxu0 %v726
      %947 = vmatprep.mubr.f32.mxu0 %v739
      %948 = vmatmul.mubr.f32.gmra.mrb[0].mxu0 %v630
      %v949 = vpop.f32.mrb[0].mxu0
      %v950 = vadd.f32 %v880, %v949
      %v951 = vpop.f32.mrb[0].mxu0
      %952 = vdwg.mxu0
      %v953 = vld [vmem:[%s3] sm:$0x1]
      %v955 = vrot.slane %v950, 7
      %vm957 = vcmask 1040384
      %v958 = vsel %vm957, %v953, %v955
      %vm959 = vcmask 1044480
      %v960 = vsel %vm959, %v958, 0.0
      %v961 = vlaneseq
      %v962 = vand.u32 %v961, 127
      %vm963 = vcmp.lt.s32.totalorder %v962, 5
      %v964 = vsel %vm963, 0.0, -1e+30
      %v965 = vld [vmem:[%s4] sm:$0x1]
      %v966 = vld [vmem:[%s5] sm:$0x1]
      %vm967 = vcmask 261120
      %v968 = vsel %vm967, %v960, 0.0
      %969 = vadd.xlane.f32.xlu0 %v968
      %v970 = vpop.xlane.xlu0 %969
      %v971 = vrcp.pop 32.0
      %v972 = vmul.f32 %v970, %v971
      %v973 = vsub.f32 %v960, %v972
      %v974 = vmul.f32 %v973, %v973
      %v975 = vsel %vm967, %v974, 0.0
      %976 = vadd.xlane.f32.xlu0 %v975
      %v977 = vpop.xlane.xlu0 %976
      %v978 = vmul.f32 %v977, %v971
      %v979 = vadd.f32 %v978, 1e-06
      %v980 = vrsqrt.pop %v979
      %v981 = vmul.f32 %v973, %v980
      %v983 = vlaneseq
      %v984 = vshrl.u32 %v983, 7
      %v985 = vsub.s32 0, %v984
      %v986 = vrot.slane %v965, %v985
      %v988 = vmul.f32 %v981, %v986
      %v990 = vlaneseq
      %v991 = vshrl.u32 %v990, 7
      %v992 = vsub.s32 0, %v991
      %v993 = vrot.slane %v966, %v992
      %v995 = vadd.f32 %v988, %v993
      %v996 = vld [vmem:[%s6] sm:$0xff]
      %v997 = vld [vmem:[%s6 + $0x8] sm:$0xff]
      %v998 = vld [vmem:[%s6 + $0x10] sm:$0xff]
      %v999 = vld [vmem:[%s6 + $0x18] sm:$0xff]
      %v1000 = vld [vmem:[%s7] sm:$0xff]
      %v1001 = vld [vmem:[%s7 + $0x8] sm:$0xff]
      %v1002 = vld [vmem:[%s7 + $0x10] sm:$0xff]
      %v1003 = vld [vmem:[%s7 + $0x18] sm:$0xff]
      %v1004 = vld [vmem:[%s7 + $0x20] sm:$0xff]
      %v1005 = vld [vmem:[%s7 + $0x28] sm:$0xff]
      %v1006 = vld [vmem:[%s7 + $0x30] sm:$0xff]
      %v1007 = vld [vmem:[%s7 + $0x38] sm:$0xff]
      %v1008 = vld [vmem:[%s7 + $0x40] sm:$0xff]
      %v1009 = vld [vmem:[%s7 + $0x48] sm:$0xff]
      %v1010 = vld [vmem:[%s7 + $0x50] sm:$0xff]
      %v1011 = vld [vmem:[%s7 + $0x58] sm:$0xff]
      %1013 = vset.pattern.permute.xlu0 0
      %1014 = vperm.xlu0 %1013, %v1000
      %v1015 = vpop.permute.xlu0 %1014
      %1018 = vset.pattern.permute.xlu0 0
      %1019 = vperm.xlu0 %1018, %v1001
      %v1020 = vpop.permute.xlu0 %1019
      %1023 = vset.pattern.permute.xlu0 0
      %1024 = vperm.xlu0 %1023, %v1002
      %v1025 = vpop.permute.xlu0 %1024
      %1028 = vset.pattern.permute.xlu0 0
      %1029 = vperm.xlu0 %1028, %v1003
      %v1030 = vpop.permute.xlu0 %1029
      %1033 = vset.pattern.permute.xlu0 0
      %1034 = vperm.xlu0 %1033, %v1004
      %v1035 = vpop.permute.xlu0 %1034
      %1038 = vset.pattern.permute.xlu0 0
      %1039 = vperm.xlu0 %1038, %v1005
      %v1040 = vpop.permute.xlu0 %1039
      %1043 = vset.pattern.permute.xlu0 0
      %1044 = vperm.xlu0 %1043, %v1006
      %v1045 = vpop.permute.xlu0 %1044
      %1048 = vset.pattern.permute.xlu0 0
      %1049 = vperm.xlu0 %1048, %v1007
      %v1050 = vpop.permute.xlu0 %1049
      %1053 = vset.pattern.permute.xlu0 0
      %1054 = vperm.xlu0 %1053, %v1008
      %v1055 = vpop.permute.xlu0 %1054
      %1058 = vset.pattern.permute.xlu0 0
      %1059 = vperm.xlu0 %1058, %v1009
      %v1060 = vpop.permute.xlu0 %1059
      %1063 = vset.pattern.permute.xlu0 0
      %1064 = vperm.xlu0 %1063, %v1010
      %v1065 = vpop.permute.xlu0 %1064
      %1068 = vset.pattern.permute.xlu0 0
      %1069 = vperm.xlu0 %1068, %v1011
      %v1070 = vpop.permute.xlu0 %1069
      %1072 = vxpose.xlu0.b32.start [1/16] %v996, 128
      %1073 = vxpose.xlu0.b32.cont [2/16] %v997, 128
      %1074 = vxpose.xlu0.b32.cont [3/16] %v998, 128
      %1075 = vxpose.xlu0.b32.cont [4/16] %v999, 128
      %1076 = vxpose.xlu0.b32.cont [5/16] 0.0, 128
      %1077 = vxpose.xlu0.b32.cont [6/16] 0.0, 128
      %1078 = vxpose.xlu0.b32.cont [7/16] 0.0, 128
      %1079 = vxpose.xlu0.b32.cont [8/16] 0.0, 128
      %1080 = vxpose.xlu0.b32.cont [9/16] 0.0, 128
      %1081 = vxpose.xlu0.b32.cont [10/16] 0.0, 128
      %1082 = vxpose.xlu0.b32.cont [11/16] 0.0, 128
      %1083 = vxpose.xlu0.b32.cont [12/16] 0.0, 128
      %1084 = vxpose.xlu0.b32.cont [13/16] 0.0, 128
      %1085 = vxpose.xlu0.b32.cont [14/16] 0.0, 128
      %1086 = vxpose.xlu0.b32.cont [15/16] 0.0, 128
      %1087 = vxpose.xlu0.b32.end [16/16] 0.0, 128
      %v1088 = vpop.trf.xlu0
      %v1089 = vpop.trf.xlu0
      %v1090 = vpop.trf.xlu0
      %v1091 = vpop.trf.xlu0
      %v1092 = vpop.trf.xlu0
      %v1093 = vpop.trf.xlu0
      %v1094 = vpop.trf.xlu0
      %v1095 = vpop.trf.xlu0
      %v1096 = vpop.trf.xlu0
      %v1097 = vpop.trf.xlu0
      %v1098 = vpop.trf.xlu0
      %v1099 = vpop.trf.xlu0
      %v1100 = vpop.trf.xlu0
      %v1101 = vpop.trf.xlu0
      %v1102 = vpop.trf.xlu0
      %v1103 = vpop.trf.xlu0
      %v1105 = vsel %vm967, %v1088, 0
      %v1108 = vsel %vm967, %v1089, 0
      %v1111 = vsel %vm967, %v1090, 0
      %v1114 = vsel %vm967, %v1091, 0
      %v1117 = vsel %vm967, %v1092, 0
      %v1120 = vsel %vm967, %v1093, 0
      %v1123 = vsel %vm967, %v1094, 0
      %v1126 = vsel %vm967, %v1095, 0
      %v1129 = vsel %vm967, %v1096, 0
      %v1132 = vsel %vm967, %v1097, 0
      %v1135 = vsel %vm967, %v1098, 0
      %v1138 = vsel %vm967, %v1099, 0
      %v1141 = vsel %vm967, %v995, 0
      %1143 = vmatprep.subr.mxu0 0.0
      %1144 = vmatpush1.xpose.msra.mxu0 %v1141
      %1145 = vmatprep.subr.mxu0 0.0
      %1146 = vmatpush1.xpose.msra.mxu0 0.0
      %1147 = vmatprep.subr.mxu0 0.0
      %1148 = vmatpush1.xpose.msra.mxu0 0.0
      %1149 = vmatprep.subr.mxu0 0.0
      %1150 = vmatpush1.xpose.msra.mxu0 0.0
      %1151 = vmatprep.subr.mxu0 0.0
      %1152 = vmatpush1.xpose.msra.mxu0 0.0
      %1153 = vmatprep.subr.mxu0 0.0
      %1154 = vmatpush1.xpose.msra.mxu0 0.0
      %1155 = vmatprep.subr.mxu0 0.0
      %1156 = vmatpush1.xpose.msra.mxu0 0.0
      %1157 = vmatprep.subr.mxu0 0.0
      %1158 = vmatpush1.xpose.msra.mxu0 0.0
      %1159 = vmatprep.subr.mxu0 0.0
      %1160 = vmatpush1.xpose.msra.mxu0 0.0
      %1161 = vmatprep.subr.mxu0 0.0
      %1162 = vmatpush1.xpose.msra.mxu0 0.0
      %1163 = vmatprep.subr.mxu0 0.0
      %1164 = vmatpush1.xpose.msra.mxu0 0.0
      %1165 = vmatprep.subr.mxu0 0.0
      %1166 = vmatpush1.xpose.msra.mxu0 0.0
      %1167 = vmatprep.subr.mxu0 0.0
      %1168 = vmatpush1.xpose.msra.mxu0 0.0
      %1169 = vmatprep.subr.mxu0 0.0
      %1170 = vmatpush1.xpose.msra.mxu0 0.0
      %1171 = vmatprep.subr.mxu0 0.0
      %1172 = vmatpush1.xpose.msra.mxu0 0.0
      %1173 = vmatprep.subr.mxu0 0.0
      %1174 = vmatpush1.xpose.msra.mxu0 0.0
      %1175 = vmatprep.subr.mxu0 0.0
      %1176 = vmatpush1.xpose.msra.mxu0 0.0
      %1177 = vmatprep.subr.mxu0 0.0
      %1178 = vmatpush1.xpose.msra.mxu0 0.0
      %1179 = vmatprep.subr.mxu0 0.0
      %1180 = vmatpush1.xpose.msra.mxu0 0.0
      %1181 = vmatprep.subr.mxu0 0.0
      %1182 = vmatpush1.xpose.msra.mxu0 0.0
      %1183 = vmatprep.subr.mxu0 0.0
      %1184 = vmatpush1.xpose.msra.mxu0 0.0
      %1185 = vmatprep.subr.mxu0 0.0
      %1186 = vmatpush1.xpose.msra.mxu0 0.0
      %1187 = vmatprep.subr.mxu0 0.0
      %1188 = vmatpush1.xpose.msra.mxu0 0.0
      %1189 = vmatprep.subr.mxu0 0.0
      %1190 = vmatpush1.xpose.msra.mxu0 0.0
      %1191 = vmatprep.subr.mxu0 0.0
      %1192 = vmatpush1.xpose.msra.mxu0 0.0
      %1193 = vmatprep.subr.mxu0 0.0
      %1194 = vmatpush1.xpose.msra.mxu0 0.0
      %1195 = vmatprep.subr.mxu0 0.0
      %1196 = vmatpush1.xpose.msra.mxu0 0.0
      %1197 = vmatprep.subr.mxu0 0.0
      %1198 = vmatpush1.xpose.msra.mxu0 0.0
      %1199 = vmatprep.subr.mxu0 0.0
      %1200 = vmatpush1.xpose.msra.mxu0 0.0
      %1201 = vmatprep.subr.mxu0 0.0
      %1202 = vmatpush1.xpose.msra.mxu0 0.0
      %1203 = vmatprep.subr.mxu0 0.0
      %1204 = vmatpush1.xpose.msra.mxu0 0.0
      %1205 = vmatprep.subr.mxu0 0.0
      %1206 = vmatpush1.xpose.msra.mxu0 0.0
      %1207 = vmatprep.mubr.f32.mxu0 0.0
      %1208 = vmatmul.mubr.f32.gmra.mrb[0].mxu0 %v1105
      %v1209 = vpop.f32.mrb[0].mxu0
      %v1210 = vadd.f32 %v1015, %v1209
      %v1211 = vpop.f32.mrb[0].mxu0
      %1212 = vmatprep.mubr.f32.mxu0 0.0
      %1213 = vmatmul.mubr.f32.gmra.mrb[0].mxu0 %v1108
      %v1214 = vpop.f32.mrb[0].mxu0
      %v1215 = vadd.f32 %v1020, %v1214
      %v1216 = vpop.f32.mrb[0].mxu0
      %1217 = vmatprep.mubr.f32.mxu0 0.0
      %1218 = vmatmul.mubr.f32.gmra.mrb[0].mxu0 %v1111
      %v1219 = vpop.f32.mrb[0].mxu0
      %v1220 = vadd.f32 %v1025, %v1219
      %v1221 = vpop.f32.mrb[0].mxu0
      %1222 = vmatprep.mubr.f32.mxu0 0.0
      %1223 = vmatmul.mubr.f32.gmra.mrb[0].mxu0 %v1114
      %v1224 = vpop.f32.mrb[0].mxu0
      %v1225 = vadd.f32 %v1030, %v1224
      %v1226 = vpop.f32.mrb[0].mxu0
      %1227 = vmatprep.mubr.f32.mxu0 0.0
      %1228 = vmatmul.mubr.f32.gmra.mrb[0].mxu0 %v1117
      %v1229 = vpop.f32.mrb[0].mxu0
      %v1230 = vadd.f32 %v1035, %v1229
      %v1231 = vpop.f32.mrb[0].mxu0
      %1232 = vmatprep.mubr.f32.mxu0 0.0
      %1233 = vmatmul.mubr.f32.gmra.mrb[0].mxu0 %v1120
      %v1234 = vpop.f32.mrb[0].mxu0
      %v1235 = vadd.f32 %v1040, %v1234
      %v1236 = vpop.f32.mrb[0].mxu0
      %1237 = vmatprep.mubr.f32.mxu0 0.0
      %1238 = vmatmul.mubr.f32.gmra.mrb[0].mxu0 %v1123
      %v1239 = vpop.f32.mrb[0].mxu0
      %v1240 = vadd.f32 %v1045, %v1239
      %v1241 = vpop.f32.mrb[0].mxu0
      %1242 = vmatprep.mubr.f32.mxu0 0.0
      %1243 = vmatmul.mubr.f32.gmra.mrb[0].mxu0 %v1126
      %v1244 = vpop.f32.mrb[0].mxu0
      %v1245 = vadd.f32 %v1050, %v1244
      %v1246 = vpop.f32.mrb[0].mxu0
      %1247 = vmatprep.mubr.f32.mxu0 0.0
      %1248 = vmatmul.mubr.f32.gmra.mrb[0].mxu0 %v1129
      %v1249 = vpop.f32.mrb[0].mxu0
      %v1250 = vadd.f32 %v1055, %v1249
      %v1251 = vpop.f32.mrb[0].mxu0
      %1252 = vmatprep.mubr.f32.mxu0 0.0
      %1253 = vmatmul.mubr.f32.gmra.mrb[0].mxu0 %v1132
      %v1254 = vpop.f32.mrb[0].mxu0
      %v1255 = vadd.f32 %v1060, %v1254
      %v1256 = vpop.f32.mrb[0].mxu0
      %1257 = vmatprep.mubr.f32.mxu0 0.0
      %1258 = vmatmul.mubr.f32.gmra.mrb[0].mxu0 %v1135
      %v1259 = vpop.f32.mrb[0].mxu0
      %v1260 = vadd.f32 %v1065, %v1259
      %v1261 = vpop.f32.mrb[0].mxu0
      %1262 = vmatprep.mubr.f32.mxu0 0.0
      %1263 = vmatmul.mubr.f32.gmra.mrb[0].mxu0 %v1138
      %v1264 = vpop.f32.mrb[0].mxu0
      %v1265 = vadd.f32 %v1070, %v1264
      %v1266 = vpop.f32.mrb[0].mxu0
      %1267 = vdwg.mxu0
      %v1268 = vmul.f32 %v1210, 0.35355338
      %v1269 = vmul.f32 %v1215, 0.35355338
      %v1270 = vmul.f32 %v1220, 0.35355338
      %v1271 = vmul.f32 %v1225, 0.35355338
      %1272 = vxpose.xlu0.b32.start [1/16] %v1268, 128
      %1273 = vxpose.xlu0.b32.cont [2/16] 0.0, 128
      %1274 = vxpose.xlu0.b32.cont [3/16] 0.0, 128
      %1275 = vxpose.xlu0.b32.cont [4/16] 0.0, 128
      %1276 = vxpose.xlu0.b32.cont [5/16] 0.0, 128
      %1277 = vxpose.xlu0.b32.cont [6/16] 0.0, 128
      %1278 = vxpose.xlu0.b32.cont [7/16] 0.0, 128
      %1279 = vxpose.xlu0.b32.cont [8/16] 0.0, 128
      %1280 = vxpose.xlu0.b32.cont [9/16] 0.0, 128
      %1281 = vxpose.xlu0.b32.cont [10/16] 0.0, 128
      %1282 = vxpose.xlu0.b32.cont [11/16] 0.0, 128
      %1283 = vxpose.xlu0.b32.cont [12/16] 0.0, 128
      %1284 = vxpose.xlu0.b32.cont [13/16] 0.0, 128
      %1285 = vxpose.xlu0.b32.cont [14/16] 0.0, 128
      %1286 = vxpose.xlu0.b32.cont [15/16] 0.0, 128
      %1287 = vxpose.xlu0.b32.end [16/16] 0.0, 128
      %v1288 = vpop.trf.xlu0
      %v1289 = vpop.trf.xlu0
      %v1290 = vpop.trf.xlu0
      %v1291 = vpop.trf.xlu0
      %v1292 = vpop.trf.xlu0
      %v1293 = vpop.trf.xlu0
      %v1294 = vpop.trf.xlu0
      %v1295 = vpop.trf.xlu0
      %v1296 = vpop.trf.xlu0
      %v1297 = vpop.trf.xlu0
      %v1298 = vpop.trf.xlu0
      %v1299 = vpop.trf.xlu0
      %v1300 = vpop.trf.xlu0
      %v1301 = vpop.trf.xlu0
      %v1302 = vpop.trf.xlu0
      %v1303 = vpop.trf.xlu0
      %vm1304 = vcmask 64512
      %v1306 = vsel %vm1304, %v1288, 0
      %1308 = vmatprep.subr.mxu0 0.0
      %1309 = vmatpush1.msra.mxu0 %v1230
      %1310 = vmatprep.subr.mxu0 0.0
      %1311 = vmatpush1.msra.mxu0 0.0
      %1312 = vmatprep.subr.mxu0 0.0
      %1313 = vmatpush1.msra.mxu0 0.0
      %1314 = vmatprep.subr.mxu0 0.0
      %1315 = vmatpush1.msra.mxu0 0.0
      %1316 = vmatprep.subr.mxu0 0.0
      %1317 = vmatpush1.msra.mxu0 0.0
      %1318 = vmatprep.subr.mxu0 0.0
      %1319 = vmatpush1.msra.mxu0 0.0
      %1320 = vmatprep.subr.mxu0 0.0
      %1321 = vmatpush1.msra.mxu0 0.0
      %1322 = vmatprep.subr.mxu0 0.0
      %1323 = vmatpush1.msra.mxu0 0.0
      %1324 = vmatprep.subr.mxu0 0.0
      %1325 = vmatpush1.msra.mxu0 0.0
      %1326 = vmatprep.subr.mxu0 0.0
      %1327 = vmatpush1.msra.mxu0 0.0
      %1328 = vmatprep.subr.mxu0 0.0
      %1329 = vmatpush1.msra.mxu0 0.0
      %1330 = vmatprep.subr.mxu0 0.0
      %1331 = vmatpush1.msra.mxu0 0.0
      %1332 = vmatprep.subr.mxu0 0.0
      %1333 = vmatpush1.msra.mxu0 0.0
      %1334 = vmatprep.subr.mxu0 0.0
      %1335 = vmatpush1.msra.mxu0 0.0
      %1336 = vmatprep.subr.mxu0 0.0
      %1337 = vmatpush1.msra.mxu0 0.0
      %1338 = vmatprep.subr.mxu0 0.0
      %1339 = vmatpush1.msra.mxu0 0.0
      %1340 = vmatprep.subr.mxu0 0.0
      %1341 = vmatpush1.msra.mxu0 0.0
      %1342 = vmatprep.subr.mxu0 0.0
      %1343 = vmatpush1.msra.mxu0 0.0
      %1344 = vmatprep.subr.mxu0 0.0
      %1345 = vmatpush1.msra.mxu0 0.0
      %1346 = vmatprep.subr.mxu0 0.0
      %1347 = vmatpush1.msra.mxu0 0.0
      %1348 = vmatprep.subr.mxu0 0.0
      %1349 = vmatpush1.msra.mxu0 0.0
      %1350 = vmatprep.subr.mxu0 0.0
      %1351 = vmatpush1.msra.mxu0 0.0
      %1352 = vmatprep.subr.mxu0 0.0
      %1353 = vmatpush1.msra.mxu0 0.0
      %1354 = vmatprep.subr.mxu0 0.0
      %1355 = vmatpush1.msra.mxu0 0.0
      %1356 = vmatprep.subr.mxu0 0.0
      %1357 = vmatpush1.msra.mxu0 0.0
      %1358 = vmatprep.subr.mxu0 0.0
      %1359 = vmatpush1.msra.mxu0 0.0
      %1360 = vmatprep.subr.mxu0 0.0
      %1361 = vmatpush1.msra.mxu0 0.0
      %1362 = vmatprep.subr.mxu0 0.0
      %1363 = vmatpush1.msra.mxu0 0.0
      %1364 = vmatprep.subr.mxu0 0.0
      %1365 = vmatpush1.msra.mxu0 0.0
      %1366 = vmatprep.subr.mxu0 0.0
      %1367 = vmatpush1.msra.mxu0 0.0
      %1368 = vmatprep.subr.mxu0 0.0
      %1369 = vmatpush1.msra.mxu0 0.0
      %1370 = vmatprep.subr.mxu0 0.0
      %1371 = vmatpush1.msra.mxu0 0.0
      %1372 = vmatprep.mubr.f32.mxu0 0.0
      %1373 = vmatmul.mubr.f32.gmra.mrb[0].mxu0 %v1306
      %v1374 = vpop.f32.mrb[0].mxu0
      %v1375 = vadd.f32 %v964, %v1374
      %v1376 = vpop.f32.mrb[0].mxu0
      %1377 = vdwg.mxu0
      %1378 = vxpose.xlu0.b32.start [1/16] %v1269, 128
      %1379 = vxpose.xlu0.b32.cont [2/16] 0.0, 128
      %1380 = vxpose.xlu0.b32.cont [3/16] 0.0, 128
      %1381 = vxpose.xlu0.b32.cont [4/16] 0.0, 128
      %1382 = vxpose.xlu0.b32.cont [5/16] 0.0, 128
      %1383 = vxpose.xlu0.b32.cont [6/16] 0.0, 128
      %1384 = vxpose.xlu0.b32.cont [7/16] 0.0, 128
      %1385 = vxpose.xlu0.b32.cont [8/16] 0.0, 128
      %1386 = vxpose.xlu0.b32.cont [9/16] 0.0, 128
      %1387 = vxpose.xlu0.b32.cont [10/16] 0.0, 128
      %1388 = vxpose.xlu0.b32.cont [11/16] 0.0, 128
      %1389 = vxpose.xlu0.b32.cont [12/16] 0.0, 128
      %1390 = vxpose.xlu0.b32.cont [13/16] 0.0, 128
      %1391 = vxpose.xlu0.b32.cont [14/16] 0.0, 128
      %1392 = vxpose.xlu0.b32.cont [15/16] 0.0, 128
      %1393 = vxpose.xlu0.b32.end [16/16] 0.0, 128
      %v1394 = vpop.trf.xlu0
      %v1395 = vpop.trf.xlu0
      %v1396 = vpop.trf.xlu0
      %v1397 = vpop.trf.xlu0
      %v1398 = vpop.trf.xlu0
      %v1399 = vpop.trf.xlu0
      %v1400 = vpop.trf.xlu0
      %v1401 = vpop.trf.xlu0
      %v1402 = vpop.trf.xlu0
      %v1403 = vpop.trf.xlu0
      %v1404 = vpop.trf.xlu0
      %v1405 = vpop.trf.xlu0
      %v1406 = vpop.trf.xlu0
      %v1407 = vpop.trf.xlu0
      %v1408 = vpop.trf.xlu0
      %v1409 = vpop.trf.xlu0
      %v1411 = vsel %vm1304, %v1394, 0
      %1413 = vmatprep.subr.mxu0 0.0
      %1414 = vmatpush1.msra.mxu0 %v1235
      %1415 = vmatprep.subr.mxu0 0.0
      %1416 = vmatpush1.msra.mxu0 0.0
      %1417 = vmatprep.subr.mxu0 0.0
      %1418 = vmatpush1.msra.mxu0 0.0
      %1419 = vmatprep.subr.mxu0 0.0
      %1420 = vmatpush1.msra.mxu0 0.0
      %1421 = vmatprep.subr.mxu0 0.0
      %1422 = vmatpush1.msra.mxu0 0.0
      %1423 = vmatprep.subr.mxu0 0.0
      %1424 = vmatpush1.msra.mxu0 0.0
      %1425 = vmatprep.subr.mxu0 0.0
      %1426 = vmatpush1.msra.mxu0 0.0
      %1427 = vmatprep.subr.mxu0 0.0
      %1428 = vmatpush1.msra.mxu0 0.0
      %1429 = vmatprep.subr.mxu0 0.0
      %1430 = vmatpush1.msra.mxu0 0.0
      %1431 = vmatprep.subr.mxu0 0.0
      %1432 = vmatpush1.msra.mxu0 0.0
      %1433 = vmatprep.subr.mxu0 0.0
      %1434 = vmatpush1.msra.mxu0 0.0
      %1435 = vmatprep.subr.mxu0 0.0
      %1436 = vmatpush1.msra.mxu0 0.0
      %1437 = vmatprep.subr.mxu0 0.0
      %1438 = vmatpush1.msra.mxu0 0.0
      %1439 = vmatprep.subr.mxu0 0.0
      %1440 = vmatpush1.msra.mxu0 0.0
      %1441 = vmatprep.subr.mxu0 0.0
      %1442 = vmatpush1.msra.mxu0 0.0
      %1443 = vmatprep.subr.mxu0 0.0
      %1444 = vmatpush1.msra.mxu0 0.0
      %1445 = vmatprep.subr.mxu0 0.0
      %1446 = vmatpush1.msra.mxu0 0.0
      %1447 = vmatprep.subr.mxu0 0.0
      %1448 = vmatpush1.msra.mxu0 0.0
      %1449 = vmatprep.subr.mxu0 0.0
      %1450 = vmatpush1.msra.mxu0 0.0
      %1451 = vmatprep.subr.mxu0 0.0
      %1452 = vmatpush1.msra.mxu0 0.0
      %1453 = vmatprep.subr.mxu0 0.0
      %1454 = vmatpush1.msra.mxu0 0.0
      %1455 = vmatprep.subr.mxu0 0.0
      %1456 = vmatpush1.msra.mxu0 0.0
      %1457 = vmatprep.subr.mxu0 0.0
      %1458 = vmatpush1.msra.mxu0 0.0
      %1459 = vmatprep.subr.mxu0 0.0
      %1460 = vmatpush1.msra.mxu0 0.0
      %1461 = vmatprep.subr.mxu0 0.0
      %1462 = vmatpush1.msra.mxu0 0.0
      %1463 = vmatprep.subr.mxu0 0.0
      %1464 = vmatpush1.msra.mxu0 0.0
      %1465 = vmatprep.subr.mxu0 0.0
      %1466 = vmatpush1.msra.mxu0 0.0
      %1467 = vmatprep.subr.mxu0 0.0
      %1468 = vmatpush1.msra.mxu0 0.0
      %1469 = vmatprep.subr.mxu0 0.0
      %1470 = vmatpush1.msra.mxu0 0.0
      %1471 = vmatprep.subr.mxu0 0.0
      %1472 = vmatpush1.msra.mxu0 0.0
      %1473 = vmatprep.subr.mxu0 0.0
      %1474 = vmatpush1.msra.mxu0 0.0
      %1475 = vmatprep.subr.mxu0 0.0
      %1476 = vmatpush1.msra.mxu0 0.0
      %1477 = vmatprep.mubr.f32.mxu0 0.0
      %1478 = vmatmul.mubr.f32.gmra.mrb[0].mxu0 %v1411
      %v1479 = vpop.f32.mrb[0].mxu0
      %v1480 = vadd.f32 %v964, %v1479
      %v1481 = vpop.f32.mrb[0].mxu0
      %1482 = vdwg.mxu0
      %1483 = vxpose.xlu0.b32.start [1/16] %v1270, 128
      %1484 = vxpose.xlu0.b32.cont [2/16] 0.0, 128
      %1485 = vxpose.xlu0.b32.cont [3/16] 0.0, 128
      %1486 = vxpose.xlu0.b32.cont [4/16] 0.0, 128
      %1487 = vxpose.xlu0.b32.cont [5/16] 0.0, 128
      %1488 = vxpose.xlu0.b32.cont [6/16] 0.0, 128
      %1489 = vxpose.xlu0.b32.cont [7/16] 0.0, 128
      %1490 = vxpose.xlu0.b32.cont [8/16] 0.0, 128
      %1491 = vxpose.xlu0.b32.cont [9/16] 0.0, 128
      %1492 = vxpose.xlu0.b32.cont [10/16] 0.0, 128
      %1493 = vxpose.xlu0.b32.cont [11/16] 0.0, 128
      %1494 = vxpose.xlu0.b32.cont [12/16] 0.0, 128
      %1495 = vxpose.xlu0.b32.cont [13/16] 0.0, 128
      %1496 = vxpose.xlu0.b32.cont [14/16] 0.0, 128
      %1497 = vxpose.xlu0.b32.cont [15/16] 0.0, 128
      %1498 = vxpose.xlu0.b32.end [16/16] 0.0, 128
      %v1499 = vpop.trf.xlu0
      %v1500 = vpop.trf.xlu0
      %v1501 = vpop.trf.xlu0
      %v1502 = vpop.trf.xlu0
      %v1503 = vpop.trf.xlu0
      %v1504 = vpop.trf.xlu0
      %v1505 = vpop.trf.xlu0
      %v1506 = vpop.trf.xlu0
      %v1507 = vpop.trf.xlu0
      %v1508 = vpop.trf.xlu0
      %v1509 = vpop.trf.xlu0
      %v1510 = vpop.trf.xlu0
      %v1511 = vpop.trf.xlu0
      %v1512 = vpop.trf.xlu0
      %v1513 = vpop.trf.xlu0
      %v1514 = vpop.trf.xlu0
      %v1516 = vsel %vm1304, %v1499, 0
      %1518 = vmatprep.subr.mxu0 0.0
      %1519 = vmatpush1.msra.mxu0 %v1240
      %1520 = vmatprep.subr.mxu0 0.0
      %1521 = vmatpush1.msra.mxu0 0.0
      %1522 = vmatprep.subr.mxu0 0.0
      %1523 = vmatpush1.msra.mxu0 0.0
      %1524 = vmatprep.subr.mxu0 0.0
      %1525 = vmatpush1.msra.mxu0 0.0
      %1526 = vmatprep.subr.mxu0 0.0
      %1527 = vmatpush1.msra.mxu0 0.0
      %1528 = vmatprep.subr.mxu0 0.0
      %1529 = vmatpush1.msra.mxu0 0.0
      %1530 = vmatprep.subr.mxu0 0.0
      %1531 = vmatpush1.msra.mxu0 0.0
      %1532 = vmatprep.subr.mxu0 0.0
      %1533 = vmatpush1.msra.mxu0 0.0
      %1534 = vmatprep.subr.mxu0 0.0
      %1535 = vmatpush1.msra.mxu0 0.0
      %1536 = vmatprep.subr.mxu0 0.0
      %1537 = vmatpush1.msra.mxu0 0.0
      %1538 = vmatprep.subr.mxu0 0.0
      %1539 = vmatpush1.msra.mxu0 0.0
      %1540 = vmatprep.subr.mxu0 0.0
      %1541 = vmatpush1.msra.mxu0 0.0
      %1542 = vmatprep.subr.mxu0 0.0
      %1543 = vmatpush1.msra.mxu0 0.0
      %1544 = vmatprep.subr.mxu0 0.0
      %1545 = vmatpush1.msra.mxu0 0.0
      %1546 = vmatprep.subr.mxu0 0.0
      %1547 = vmatpush1.msra.mxu0 0.0
      %1548 = vmatprep.subr.mxu0 0.0
      %1549 = vmatpush1.msra.mxu0 0.0
      %1550 = vmatprep.subr.mxu0 0.0
      %1551 = vmatpush1.msra.mxu0 0.0
      %1552 = vmatprep.subr.mxu0 0.0
      %1553 = vmatpush1.msra.mxu0 0.0
      %1554 = vmatprep.subr.mxu0 0.0
      %1555 = vmatpush1.msra.mxu0 0.0
      %1556 = vmatprep.subr.mxu0 0.0
      %1557 = vmatpush1.msra.mxu0 0.0
      %1558 = vmatprep.subr.mxu0 0.0
      %1559 = vmatpush1.msra.mxu0 0.0
      %1560 = vmatprep.subr.mxu0 0.0
      %1561 = vmatpush1.msra.mxu0 0.0
      %1562 = vmatprep.subr.mxu0 0.0
      %1563 = vmatpush1.msra.mxu0 0.0
      %1564 = vmatprep.subr.mxu0 0.0
      %1565 = vmatpush1.msra.mxu0 0.0
      %1566 = vmatprep.subr.mxu0 0.0
      %1567 = vmatpush1.msra.mxu0 0.0
      %1568 = vmatprep.subr.mxu0 0.0
      %1569 = vmatpush1.msra.mxu0 0.0
      %1570 = vmatprep.subr.mxu0 0.0
      %1571 = vmatpush1.msra.mxu0 0.0
      %1572 = vmatprep.subr.mxu0 0.0
      %1573 = vmatpush1.msra.mxu0 0.0
      %1574 = vmatprep.subr.mxu0 0.0
      %1575 = vmatpush1.msra.mxu0 0.0
      %1576 = vmatprep.subr.mxu0 0.0
      %1577 = vmatpush1.msra.mxu0 0.0
      %1578 = vmatprep.subr.mxu0 0.0
      %1579 = vmatpush1.msra.mxu0 0.0
      %1580 = vmatprep.subr.mxu0 0.0
      %1581 = vmatpush1.msra.mxu0 0.0
      %1582 = vmatprep.mubr.f32.mxu0 0.0
      %1583 = vmatmul.mubr.f32.gmra.mrb[0].mxu0 %v1516
      %v1584 = vpop.f32.mrb[0].mxu0
      %v1585 = vadd.f32 %v964, %v1584
      %v1586 = vpop.f32.mrb[0].mxu0
      %1587 = vdwg.mxu0
      %1588 = vxpose.xlu0.b32.start [1/16] %v1271, 128
      %1589 = vxpose.xlu0.b32.cont [2/16] 0.0, 128
      %1590 = vxpose.xlu0.b32.cont [3/16] 0.0, 128
      %1591 = vxpose.xlu0.b32.cont [4/16] 0.0, 128
      %1592 = vxpose.xlu0.b32.cont [5/16] 0.0, 128
      %1593 = vxpose.xlu0.b32.cont [6/16] 0.0, 128
      %1594 = vxpose.xlu0.b32.cont [7/16] 0.0, 128
      %1595 = vxpose.xlu0.b32.cont [8/16] 0.0, 128
      %1596 = vxpose.xlu0.b32.cont [9/16] 0.0, 128
      %1597 = vxpose.xlu0.b32.cont [10/16] 0.0, 128
      %1598 = vxpose.xlu0.b32.cont [11/16] 0.0, 128
      %1599 = vxpose.xlu0.b32.cont [12/16] 0.0, 128
      %1600 = vxpose.xlu0.b32.cont [13/16] 0.0, 128
      %1601 = vxpose.xlu0.b32.cont [14/16] 0.0, 128
      %1602 = vxpose.xlu0.b32.cont [15/16] 0.0, 128
      %1603 = vxpose.xlu0.b32.end [16/16] 0.0, 128
      %v1604 = vpop.trf.xlu0
      %v1605 = vpop.trf.xlu0
      %v1606 = vpop.trf.xlu0
      %v1607 = vpop.trf.xlu0
      %v1608 = vpop.trf.xlu0
      %v1609 = vpop.trf.xlu0
      %v1610 = vpop.trf.xlu0
      %v1611 = vpop.trf.xlu0
      %v1612 = vpop.trf.xlu0
      %v1613 = vpop.trf.xlu0
      %v1614 = vpop.trf.xlu0
      %v1615 = vpop.trf.xlu0
      %v1616 = vpop.trf.xlu0
      %v1617 = vpop.trf.xlu0
      %v1618 = vpop.trf.xlu0
      %v1619 = vpop.trf.xlu0
      %v1621 = vsel %vm1304, %v1604, 0
      %1623 = vmatprep.subr.mxu0 0.0
      %1624 = vmatpush1.msra.mxu0 %v1245
      %1625 = vmatprep.subr.mxu0 0.0
      %1626 = vmatpush1.msra.mxu0 0.0
      %1627 = vmatprep.subr.mxu0 0.0
      %1628 = vmatpush1.msra.mxu0 0.0
      %1629 = vmatprep.subr.mxu0 0.0
      %1630 = vmatpush1.msra.mxu0 0.0
      %1631 = vmatprep.subr.mxu0 0.0
      %1632 = vmatpush1.msra.mxu0 0.0
      %1633 = vmatprep.subr.mxu0 0.0
      %1634 = vmatpush1.msra.mxu0 0.0
      %1635 = vmatprep.subr.mxu0 0.0
      %1636 = vmatpush1.msra.mxu0 0.0
      %1637 = vmatprep.subr.mxu0 0.0
      %1638 = vmatpush1.msra.mxu0 0.0
      %1639 = vmatprep.subr.mxu0 0.0
      %1640 = vmatpush1.msra.mxu0 0.0
      %1641 = vmatprep.subr.mxu0 0.0
      %1642 = vmatpush1.msra.mxu0 0.0
      %1643 = vmatprep.subr.mxu0 0.0
      %1644 = vmatpush1.msra.mxu0 0.0
      %1645 = vmatprep.subr.mxu0 0.0
      %1646 = vmatpush1.msra.mxu0 0.0
      %1647 = vmatprep.subr.mxu0 0.0
      %1648 = vmatpush1.msra.mxu0 0.0
      %1649 = vmatprep.subr.mxu0 0.0
      %1650 = vmatpush1.msra.mxu0 0.0
      %1651 = vmatprep.subr.mxu0 0.0
      %1652 = vmatpush1.msra.mxu0 0.0
      %1653 = vmatprep.subr.mxu0 0.0
      %1654 = vmatpush1.msra.mxu0 0.0
      %1655 = vmatprep.subr.mxu0 0.0
      %1656 = vmatpush1.msra.mxu0 0.0
      %1657 = vmatprep.subr.mxu0 0.0
      %1658 = vmatpush1.msra.mxu0 0.0
      %1659 = vmatprep.subr.mxu0 0.0
      %1660 = vmatpush1.msra.mxu0 0.0
      %1661 = vmatprep.subr.mxu0 0.0
      %1662 = vmatpush1.msra.mxu0 0.0
      %1663 = vmatprep.subr.mxu0 0.0
      %1664 = vmatpush1.msra.mxu0 0.0
      %1665 = vmatprep.subr.mxu0 0.0
      %1666 = vmatpush1.msra.mxu0 0.0
      %1667 = vmatprep.subr.mxu0 0.0
      %1668 = vmatpush1.msra.mxu0 0.0
      %1669 = vmatprep.subr.mxu0 0.0
      %1670 = vmatpush1.msra.mxu0 0.0
      %1671 = vmatprep.subr.mxu0 0.0
      %1672 = vmatpush1.msra.mxu0 0.0
      %1673 = vmatprep.subr.mxu0 0.0
      %1674 = vmatpush1.msra.mxu0 0.0
      %1675 = vmatprep.subr.mxu0 0.0
      %1676 = vmatpush1.msra.mxu0 0.0
      %1677 = vmatprep.subr.mxu0 0.0
      %1678 = vmatpush1.msra.mxu0 0.0
      %1679 = vmatprep.subr.mxu0 0.0
      %1680 = vmatpush1.msra.mxu0 0.0
      %1681 = vmatprep.subr.mxu0 0.0
      %1682 = vmatpush1.msra.mxu0 0.0
      %1683 = vmatprep.subr.mxu0 0.0
      %1684 = vmatpush1.msra.mxu0 0.0
      %1685 = vmatprep.subr.mxu0 0.0
      %1686 = vmatpush1.msra.mxu0 0.0
      %1687 = vmatprep.mubr.f32.mxu0 0.0
      %1688 = vmatmul.mubr.f32.gmra.mrb[0].mxu0 %v1621
      %v1689 = vpop.f32.mrb[0].mxu0
      %v1690 = vadd.f32 %v964, %v1689
      %v1691 = vpop.f32.mrb[0].mxu0
      %1692 = vdwg.mxu0
      %v1693 = vsel %vm1304, %v1375, -inf
      %1694 = vmax.xlane.f32.xlu0 %v1693
      %v1695 = vpop.xlane.xlu0 %1694
      %v1696 = vsel %vm1304, %v1480, -inf
      %1697 = vmax.xlane.f32.xlu0 %v1696
      %v1698 = vpop.xlane.xlu0 %1697
      %v1699 = vsel %vm1304, %v1585, -inf
      %1700 = vmax.xlane.f32.xlu0 %v1699
      %v1701 = vpop.xlane.xlu0 %1700
      %v1702 = vsel %vm1304, %v1690, -inf
      %1703 = vmax.xlane.f32.xlu0 %v1702
      %v1704 = vpop.xlane.xlu0 %1703
      %v1705 = vsub.f32 %v1375, %v1695
      %v1706 = vsub.f32 %v1480, %v1698
      %v1707 = vsub.f32 %v1585, %v1701
      %v1708 = vsub.f32 %v1690, %v1704
      %v1709 = vmul.f32 %v1705, 1.442695
      %v1710 = vpow.pop %v1709
      %v1711 = vmul.f32 %v1706, 1.442695
      %v1712 = vpow.pop %v1711
      %v1713 = vmul.f32 %v1707, 1.442695
      %v1714 = vpow.pop %v1713
      %v1715 = vmul.f32 %v1708, 1.442695
      %v1716 = vpow.pop %v1715
      %v1717 = vsel %vm1304, %v1710, 0.0
      %1718 = vadd.xlane.f32.xlu0 %v1717
      %v1719 = vpop.xlane.xlu0 %1718
      %v1720 = vsel %vm1304, %v1712, 0.0
      %1721 = vadd.xlane.f32.xlu0 %v1720
      %v1722 = vpop.xlane.xlu0 %1721
      %v1723 = vsel %vm1304, %v1714, 0.0
      %1724 = vadd.xlane.f32.xlu0 %v1723
      %v1725 = vpop.xlane.xlu0 %1724
      %v1726 = vsel %vm1304, %v1716, 0.0
      %1727 = vadd.xlane.f32.xlu0 %v1726
      %v1728 = vpop.xlane.xlu0 %1727
      %v1729 = vrcp.pop %v1719
      %v1730 = vrcp.pop %v1722
      %v1731 = vrcp.pop %v1725
      %v1732 = vrcp.pop %v1728
      %v1733 = vmul.f32 %v1710, %v1729
      %v1734 = vmul.f32 %v1712, %v1730
      %v1735 = vmul.f32 %v1714, %v1731
      %v1736 = vmul.f32 %v1716, %v1732
      %v1738 = vsel %vm1304, %v1733, 0
      %v1741 = vsel %vm1304, %v1250, 0
      %1743 = vmatprep.subr.mxu0 0.0
      %1744 = vmatpush1.xpose.msra.mxu0 %v1741
      %1745 = vmatprep.subr.mxu0 0.0
      %1746 = vmatpush1.xpose.msra.mxu0 0.0
      %1747 = vmatprep.subr.mxu0 0.0
      %1748 = vmatpush1.xpose.msra.mxu0 0.0
      %1749 = vmatprep.subr.mxu0 0.0
      %1750 = vmatpush1.xpose.msra.mxu0 0.0
      %1751 = vmatprep.subr.mxu0 0.0
      %1752 = vmatpush1.xpose.msra.mxu0 0.0
      %1753 = vmatprep.subr.mxu0 0.0
      %1754 = vmatpush1.xpose.msra.mxu0 0.0
      %1755 = vmatprep.subr.mxu0 0.0
      %1756 = vmatpush1.xpose.msra.mxu0 0.0
      %1757 = vmatprep.subr.mxu0 0.0
      %1758 = vmatpush1.xpose.msra.mxu0 0.0
      %1759 = vmatprep.subr.mxu0 0.0
      %1760 = vmatpush1.xpose.msra.mxu0 0.0
      %1761 = vmatprep.subr.mxu0 0.0
      %1762 = vmatpush1.xpose.msra.mxu0 0.0
      %1763 = vmatprep.subr.mxu0 0.0
      %1764 = vmatpush1.xpose.msra.mxu0 0.0
      %1765 = vmatprep.subr.mxu0 0.0
      %1766 = vmatpush1.xpose.msra.mxu0 0.0
      %1767 = vmatprep.subr.mxu0 0.0
      %1768 = vmatpush1.xpose.msra.mxu0 0.0
      %1769 = vmatprep.subr.mxu0 0.0
      %1770 = vmatpush1.xpose.msra.mxu0 0.0
      %1771 = vmatprep.subr.mxu0 0.0
      %1772 = vmatpush1.xpose.msra.mxu0 0.0
      %1773 = vmatprep.subr.mxu0 0.0
      %1774 = vmatpush1.xpose.msra.mxu0 0.0
      %1775 = vmatprep.subr.mxu0 0.0
      %1776 = vmatpush1.xpose.msra.mxu0 0.0
      %1777 = vmatprep.subr.mxu0 0.0
      %1778 = vmatpush1.xpose.msra.mxu0 0.0
      %1779 = vmatprep.subr.mxu0 0.0
      %1780 = vmatpush1.xpose.msra.mxu0 0.0
      %1781 = vmatprep.subr.mxu0 0.0
      %1782 = vmatpush1.xpose.msra.mxu0 0.0
      %1783 = vmatprep.subr.mxu0 0.0
      %1784 = vmatpush1.xpose.msra.mxu0 0.0
      %1785 = vmatprep.subr.mxu0 0.0
      %1786 = vmatpush1.xpose.msra.mxu0 0.0
      %1787 = vmatprep.subr.mxu0 0.0
      %1788 = vmatpush1.xpose.msra.mxu0 0.0
      %1789 = vmatprep.subr.mxu0 0.0
      %1790 = vmatpush1.xpose.msra.mxu0 0.0
      %1791 = vmatprep.subr.mxu0 0.0
      %1792 = vmatpush1.xpose.msra.mxu0 0.0
      %1793 = vmatprep.subr.mxu0 0.0
      %1794 = vmatpush1.xpose.msra.mxu0 0.0
      %1795 = vmatprep.subr.mxu0 0.0
      %1796 = vmatpush1.xpose.msra.mxu0 0.0
      %1797 = vmatprep.subr.mxu0 0.0
      %1798 = vmatpush1.xpose.msra.mxu0 0.0
      %1799 = vmatprep.subr.mxu0 0.0
      %1800 = vmatpush1.xpose.msra.mxu0 0.0
      %1801 = vmatprep.subr.mxu0 0.0
      %1802 = vmatpush1.xpose.msra.mxu0 0.0
      %1803 = vmatprep.subr.mxu0 0.0
      %1804 = vmatpush1.xpose.msra.mxu0 0.0
      %1805 = vmatprep.subr.mxu0 0.0
      %1806 = vmatpush1.xpose.msra.mxu0 0.0
      %1807 = vmatprep.mubr.f32.mxu0 0.0
      %1808 = vmatmul.mubr.f32.gmra.mrb[0].mxu0 %v1738
      %v1809 = vpop.f32.mrb[0].mxu0
      %v1810 = vadd.f32 0.0, %v1809
      %v1811 = vpop.f32.mrb[0].mxu0
      %1812 = vdwg.mxu0
      %v1814 = vsel %vm1304, %v1734, 0
      %v1817 = vsel %vm1304, %v1255, 0
      %1819 = vmatprep.subr.mxu0 0.0
      %1820 = vmatpush1.xpose.msra.mxu0 %v1817
      %1821 = vmatprep.subr.mxu0 0.0
      %1822 = vmatpush1.xpose.msra.mxu0 0.0
      %1823 = vmatprep.subr.mxu0 0.0
      %1824 = vmatpush1.xpose.msra.mxu0 0.0
      %1825 = vmatprep.subr.mxu0 0.0
      %1826 = vmatpush1.xpose.msra.mxu0 0.0
      %1827 = vmatprep.subr.mxu0 0.0
      %1828 = vmatpush1.xpose.msra.mxu0 0.0
      %1829 = vmatprep.subr.mxu0 0.0
      %1830 = vmatpush1.xpose.msra.mxu0 0.0
      %1831 = vmatprep.subr.mxu0 0.0
      %1832 = vmatpush1.xpose.msra.mxu0 0.0
      %1833 = vmatprep.subr.mxu0 0.0
      %1834 = vmatpush1.xpose.msra.mxu0 0.0
      %1835 = vmatprep.subr.mxu0 0.0
      %1836 = vmatpush1.xpose.msra.mxu0 0.0
      %1837 = vmatprep.subr.mxu0 0.0
      %1838 = vmatpush1.xpose.msra.mxu0 0.0
      %1839 = vmatprep.subr.mxu0 0.0
      %1840 = vmatpush1.xpose.msra.mxu0 0.0
      %1841 = vmatprep.subr.mxu0 0.0
      %1842 = vmatpush1.xpose.msra.mxu0 0.0
      %1843 = vmatprep.subr.mxu0 0.0
      %1844 = vmatpush1.xpose.msra.mxu0 0.0
      %1845 = vmatprep.subr.mxu0 0.0
      %1846 = vmatpush1.xpose.msra.mxu0 0.0
      %1847 = vmatprep.subr.mxu0 0.0
      %1848 = vmatpush1.xpose.msra.mxu0 0.0
      %1849 = vmatprep.subr.mxu0 0.0
      %1850 = vmatpush1.xpose.msra.mxu0 0.0
      %1851 = vmatprep.subr.mxu0 0.0
      %1852 = vmatpush1.xpose.msra.mxu0 0.0
      %1853 = vmatprep.subr.mxu0 0.0
      %1854 = vmatpush1.xpose.msra.mxu0 0.0
      %1855 = vmatprep.subr.mxu0 0.0
      %1856 = vmatpush1.xpose.msra.mxu0 0.0
      %1857 = vmatprep.subr.mxu0 0.0
      %1858 = vmatpush1.xpose.msra.mxu0 0.0
      %1859 = vmatprep.subr.mxu0 0.0
      %1860 = vmatpush1.xpose.msra.mxu0 0.0
      %1861 = vmatprep.subr.mxu0 0.0
      %1862 = vmatpush1.xpose.msra.mxu0 0.0
      %1863 = vmatprep.subr.mxu0 0.0
      %1864 = vmatpush1.xpose.msra.mxu0 0.0
      %1865 = vmatprep.subr.mxu0 0.0
      %1866 = vmatpush1.xpose.msra.mxu0 0.0
      %1867 = vmatprep.subr.mxu0 0.0
      %1868 = vmatpush1.xpose.msra.mxu0 0.0
      %1869 = vmatprep.subr.mxu0 0.0
      %1870 = vmatpush1.xpose.msra.mxu0 0.0
      %1871 = vmatprep.subr.mxu0 0.0
      %1872 = vmatpush1.xpose.msra.mxu0 0.0
      %1873 = vmatprep.subr.mxu0 0.0
      %1874 = vmatpush1.xpose.msra.mxu0 0.0
      %1875 = vmatprep.subr.mxu0 0.0
      %1876 = vmatpush1.xpose.msra.mxu0 0.0
      %1877 = vmatprep.subr.mxu0 0.0
      %1878 = vmatpush1.xpose.msra.mxu0 0.0
      %1879 = vmatprep.subr.mxu0 0.0
      %1880 = vmatpush1.xpose.msra.mxu0 0.0
      %1881 = vmatprep.subr.mxu0 0.0
      %1882 = vmatpush1.xpose.msra.mxu0 0.0
      %1883 = vmatprep.mubr.f32.mxu0 0.0
      %1884 = vmatmul.mubr.f32.gmra.mrb[0].mxu0 %v1814
      %v1885 = vpop.f32.mrb[0].mxu0
      %v1886 = vadd.f32 0.0, %v1885
      %v1887 = vpop.f32.mrb[0].mxu0
      %1888 = vdwg.mxu0
      %v1890 = vsel %vm1304, %v1735, 0
      %v1893 = vsel %vm1304, %v1260, 0
      %1895 = vmatprep.subr.mxu0 0.0
      %1896 = vmatpush1.xpose.msra.mxu0 %v1893
      %1897 = vmatprep.subr.mxu0 0.0
      %1898 = vmatpush1.xpose.msra.mxu0 0.0
      %1899 = vmatprep.subr.mxu0 0.0
      %1900 = vmatpush1.xpose.msra.mxu0 0.0
      %1901 = vmatprep.subr.mxu0 0.0
      %1902 = vmatpush1.xpose.msra.mxu0 0.0
      %1903 = vmatprep.subr.mxu0 0.0
      %1904 = vmatpush1.xpose.msra.mxu0 0.0
      %1905 = vmatprep.subr.mxu0 0.0
      %1906 = vmatpush1.xpose.msra.mxu0 0.0
      %1907 = vmatprep.subr.mxu0 0.0
      %1908 = vmatpush1.xpose.msra.mxu0 0.0
      %1909 = vmatprep.subr.mxu0 0.0
      %1910 = vmatpush1.xpose.msra.mxu0 0.0
      %1911 = vmatprep.subr.mxu0 0.0
      %1912 = vmatpush1.xpose.msra.mxu0 0.0
      %1913 = vmatprep.subr.mxu0 0.0
      %1914 = vmatpush1.xpose.msra.mxu0 0.0
      %1915 = vmatprep.subr.mxu0 0.0
      %1916 = vmatpush1.xpose.msra.mxu0 0.0
      %1917 = vmatprep.subr.mxu0 0.0
      %1918 = vmatpush1.xpose.msra.mxu0 0.0
      %1919 = vmatprep.subr.mxu0 0.0
      %1920 = vmatpush1.xpose.msra.mxu0 0.0
      %1921 = vmatprep.subr.mxu0 0.0
      %1922 = vmatpush1.xpose.msra.mxu0 0.0
      %1923 = vmatprep.subr.mxu0 0.0
      %1924 = vmatpush1.xpose.msra.mxu0 0.0
      %1925 = vmatprep.subr.mxu0 0.0
      %1926 = vmatpush1.xpose.msra.mxu0 0.0
      %1927 = vmatprep.subr.mxu0 0.0
      %1928 = vmatpush1.xpose.msra.mxu0 0.0
      %1929 = vmatprep.subr.mxu0 0.0
      %1930 = vmatpush1.xpose.msra.mxu0 0.0
      %1931 = vmatprep.subr.mxu0 0.0
      %1932 = vmatpush1.xpose.msra.mxu0 0.0
      %1933 = vmatprep.subr.mxu0 0.0
      %1934 = vmatpush1.xpose.msra.mxu0 0.0
      %1935 = vmatprep.subr.mxu0 0.0
      %1936 = vmatpush1.xpose.msra.mxu0 0.0
      %1937 = vmatprep.subr.mxu0 0.0
      %1938 = vmatpush1.xpose.msra.mxu0 0.0
      %1939 = vmatprep.subr.mxu0 0.0
      %1940 = vmatpush1.xpose.msra.mxu0 0.0
      %1941 = vmatprep.subr.mxu0 0.0
      %1942 = vmatpush1.xpose.msra.mxu0 0.0
      %1943 = vmatprep.subr.mxu0 0.0
      %1944 = vmatpush1.xpose.msra.mxu0 0.0
      %1945 = vmatprep.subr.mxu0 0.0
      %1946 = vmatpush1.xpose.msra.mxu0 0.0
      %1947 = vmatprep.subr.mxu0 0.0
      %1948 = vmatpush1.xpose.msra.mxu0 0.0
      %1949 = vmatprep.subr.mxu0 0.0
      %1950 = vmatpush1.xpose.msra.mxu0 0.0
      %1951 = vmatprep.subr.mxu0 0.0
      %1952 = vmatpush1.xpose.msra.mxu0 0.0
      %1953 = vmatprep.subr.mxu0 0.0
      %1954 = vmatpush1.xpose.msra.mxu0 0.0
      %1955 = vmatprep.subr.mxu0 0.0
      %1956 = vmatpush1.xpose.msra.mxu0 0.0
      %1957 = vmatprep.subr.mxu0 0.0
      %1958 = vmatpush1.xpose.msra.mxu0 0.0
      %1959 = vmatprep.mubr.f32.mxu0 0.0
      %1960 = vmatmul.mubr.f32.gmra.mrb[0].mxu0 %v1890
      %v1961 = vpop.f32.mrb[0].mxu0
      %v1962 = vadd.f32 0.0, %v1961
      %v1963 = vpop.f32.mrb[0].mxu0
      %1964 = vdwg.mxu0
      %v1966 = vsel %vm1304, %v1736, 0
      %v1969 = vsel %vm1304, %v1265, 0
      %1971 = vmatprep.subr.mxu0 0.0
      %1972 = vmatpush1.xpose.msra.mxu0 %v1969
      %1973 = vmatprep.subr.mxu0 0.0
      %1974 = vmatpush1.xpose.msra.mxu0 0.0
      %1975 = vmatprep.subr.mxu0 0.0
      %1976 = vmatpush1.xpose.msra.mxu0 0.0
      %1977 = vmatprep.subr.mxu0 0.0
      %1978 = vmatpush1.xpose.msra.mxu0 0.0
      %1979 = vmatprep.subr.mxu0 0.0
      %1980 = vmatpush1.xpose.msra.mxu0 0.0
      %1981 = vmatprep.subr.mxu0 0.0
      %1982 = vmatpush1.xpose.msra.mxu0 0.0
      %1983 = vmatprep.subr.mxu0 0.0
      %1984 = vmatpush1.xpose.msra.mxu0 0.0
      %1985 = vmatprep.subr.mxu0 0.0
      %1986 = vmatpush1.xpose.msra.mxu0 0.0
      %1987 = vmatprep.subr.mxu0 0.0
      %1988 = vmatpush1.xpose.msra.mxu0 0.0
      %1989 = vmatprep.subr.mxu0 0.0
      %1990 = vmatpush1.xpose.msra.mxu0 0.0
      %1991 = vmatprep.subr.mxu0 0.0
      %1992 = vmatpush1.xpose.msra.mxu0 0.0
      %1993 = vmatprep.subr.mxu0 0.0
      %1994 = vmatpush1.xpose.msra.mxu0 0.0
      %1995 = vmatprep.subr.mxu0 0.0
      %1996 = vmatpush1.xpose.msra.mxu0 0.0
      %1997 = vmatprep.subr.mxu0 0.0
      %1998 = vmatpush1.xpose.msra.mxu0 0.0
      %1999 = vmatprep.subr.mxu0 0.0
      %2000 = vmatpush1.xpose.msra.mxu0 0.0
      %2001 = vmatprep.subr.mxu0 0.0
      %2002 = vmatpush1.xpose.msra.mxu0 0.0
      %2003 = vmatprep.subr.mxu0 0.0
      %2004 = vmatpush1.xpose.msra.mxu0 0.0
      %2005 = vmatprep.subr.mxu0 0.0
      %2006 = vmatpush1.xpose.msra.mxu0 0.0
      %2007 = vmatprep.subr.mxu0 0.0
      %2008 = vmatpush1.xpose.msra.mxu0 0.0
      %2009 = vmatprep.subr.mxu0 0.0
      %2010 = vmatpush1.xpose.msra.mxu0 0.0
      %2011 = vmatprep.subr.mxu0 0.0
      %2012 = vmatpush1.xpose.msra.mxu0 0.0
      %2013 = vmatprep.subr.mxu0 0.0
      %2014 = vmatpush1.xpose.msra.mxu0 0.0
      %2015 = vmatprep.subr.mxu0 0.0
      %2016 = vmatpush1.xpose.msra.mxu0 0.0
      %2017 = vmatprep.subr.mxu0 0.0
      %2018 = vmatpush1.xpose.msra.mxu0 0.0
      %2019 = vmatprep.subr.mxu0 0.0
      %2020 = vmatpush1.xpose.msra.mxu0 0.0
      %2021 = vmatprep.subr.mxu0 0.0
      %2022 = vmatpush1.xpose.msra.mxu0 0.0
      %2023 = vmatprep.subr.mxu0 0.0
      %2024 = vmatpush1.xpose.msra.mxu0 0.0
      %2025 = vmatprep.subr.mxu0 0.0
      %2026 = vmatpush1.xpose.msra.mxu0 0.0
      %2027 = vmatprep.subr.mxu0 0.0
      %2028 = vmatpush1.xpose.msra.mxu0 0.0
      %2029 = vmatprep.subr.mxu0 0.0
      %2030 = vmatpush1.xpose.msra.mxu0 0.0
      %2031 = vmatprep.subr.mxu0 0.0
      %2032 = vmatpush1.xpose.msra.mxu0 0.0
      %2033 = vmatprep.subr.mxu0 0.0
      %2034 = vmatpush1.xpose.msra.mxu0 0.0
      %2035 = vmatprep.mubr.f32.mxu0 0.0
      %2036 = vmatmul.mubr.f32.gmra.mrb[0].mxu0 %v1966
      %v2037 = vpop.f32.mrb[0].mxu0
      %v2038 = vadd.f32 0.0, %v2037
      %v2039 = vpop.f32.mrb[0].mxu0
      %2040 = vdwg.mxu0
      %v2041 = vld [vmem:[%s8] sm:$0xff]
      %v2042 = vld [vmem:[%s8 + $0x8] sm:$0xff]
      %v2043 = vld [vmem:[%s8 + $0x10] sm:$0xff]
      %v2044 = vld [vmem:[%s8 + $0x18] sm:$0xff]
      %v2046 = vsel %vm1304, %v1810, 0
      %2048 = vmatprep.subr.mxu0 0.0
      %2049 = vmatpush1.msra.mxu0 %v2041
      %2050 = vmatprep.subr.mxu0 0.0
      %2051 = vmatpush1.msra.mxu0 0.0
      %2052 = vmatprep.subr.mxu0 0.0
      %2053 = vmatpush1.msra.mxu0 0.0
      %2054 = vmatprep.subr.mxu0 0.0
      %2055 = vmatpush1.msra.mxu0 0.0
      %2056 = vmatprep.subr.mxu0 0.0
      %2057 = vmatpush1.msra.mxu0 0.0
      %2058 = vmatprep.subr.mxu0 0.0
      %2059 = vmatpush1.msra.mxu0 0.0
      %2060 = vmatprep.subr.mxu0 0.0
      %2061 = vmatpush1.msra.mxu0 0.0
      %2062 = vmatprep.subr.mxu0 0.0
      %2063 = vmatpush1.msra.mxu0 0.0
      %2064 = vmatprep.subr.mxu0 0.0
      %2065 = vmatpush1.msra.mxu0 0.0
      %2066 = vmatprep.subr.mxu0 0.0
      %2067 = vmatpush1.msra.mxu0 0.0
      %2068 = vmatprep.subr.mxu0 0.0
      %2069 = vmatpush1.msra.mxu0 0.0
      %2070 = vmatprep.subr.mxu0 0.0
      %2071 = vmatpush1.msra.mxu0 0.0
      %2072 = vmatprep.subr.mxu0 0.0
      %2073 = vmatpush1.msra.mxu0 0.0
      %2074 = vmatprep.subr.mxu0 0.0
      %2075 = vmatpush1.msra.mxu0 0.0
      %2076 = vmatprep.subr.mxu0 0.0
      %2077 = vmatpush1.msra.mxu0 0.0
      %2078 = vmatprep.subr.mxu0 0.0
      %2079 = vmatpush1.msra.mxu0 0.0
      %2080 = vmatprep.subr.mxu0 0.0
      %2081 = vmatpush1.msra.mxu0 0.0
      %2082 = vmatprep.subr.mxu0 0.0
      %2083 = vmatpush1.msra.mxu0 0.0
      %2084 = vmatprep.subr.mxu0 0.0
      %2085 = vmatpush1.msra.mxu0 0.0
      %2086 = vmatprep.subr.mxu0 0.0
      %2087 = vmatpush1.msra.mxu0 0.0
      %2088 = vmatprep.subr.mxu0 0.0
      %2089 = vmatpush1.msra.mxu0 0.0
      %2090 = vmatprep.subr.mxu0 0.0
      %2091 = vmatpush1.msra.mxu0 0.0
      %2092 = vmatprep.subr.mxu0 0.0
      %2093 = vmatpush1.msra.mxu0 0.0
      %2094 = vmatprep.subr.mxu0 0.0
      %2095 = vmatpush1.msra.mxu0 0.0
      %2096 = vmatprep.subr.mxu0 0.0
      %2097 = vmatpush1.msra.mxu0 0.0
      %2098 = vmatprep.subr.mxu0 0.0
      %2099 = vmatpush1.msra.mxu0 0.0
      %2100 = vmatprep.subr.mxu0 0.0
      %2101 = vmatpush1.msra.mxu0 0.0
      %2102 = vmatprep.subr.mxu0 0.0
      %2103 = vmatpush1.msra.mxu0 0.0
      %2104 = vmatprep.subr.mxu0 0.0
      %2105 = vmatpush1.msra.mxu0 0.0
      %2106 = vmatprep.subr.mxu0 0.0
      %2107 = vmatpush1.msra.mxu0 0.0
      %2108 = vmatprep.subr.mxu0 0.0
      %2109 = vmatpush1.msra.mxu0 0.0
      %2110 = vmatprep.subr.mxu0 0.0
      %2111 = vmatpush1.msra.mxu0 0.0
      %2112 = vmatprep.mubr.f32.mxu0 0.0
      %2113 = vmatmul.mubr.f32.gmra.mrb[0].mxu0 %v2046
      %v2114 = vpop.f32.mrb[0].mxu0
      %v2115 = vadd.f32 0.0, %v2114
      %v2116 = vpop.f32.mrb[0].mxu0
      %2117 = vdwg.mxu0
      %v2119 = vsel %vm1304, %v1886, 0
      %2121 = vmatprep.subr.mxu0 0.0
      %2122 = vmatpush1.msra.mxu0 %v2042
      %2123 = vmatprep.subr.mxu0 0.0
      %2124 = vmatpush1.msra.mxu0 0.0
      %2125 = vmatprep.subr.mxu0 0.0
      %2126 = vmatpush1.msra.mxu0 0.0
      %2127 = vmatprep.subr.mxu0 0.0
      %2128 = vmatpush1.msra.mxu0 0.0
      %2129 = vmatprep.subr.mxu0 0.0
      %2130 = vmatpush1.msra.mxu0 0.0
      %2131 = vmatprep.subr.mxu0 0.0
      %2132 = vmatpush1.msra.mxu0 0.0
      %2133 = vmatprep.subr.mxu0 0.0
      %2134 = vmatpush1.msra.mxu0 0.0
      %2135 = vmatprep.subr.mxu0 0.0
      %2136 = vmatpush1.msra.mxu0 0.0
      %2137 = vmatprep.subr.mxu0 0.0
      %2138 = vmatpush1.msra.mxu0 0.0
      %2139 = vmatprep.subr.mxu0 0.0
      %2140 = vmatpush1.msra.mxu0 0.0
      %2141 = vmatprep.subr.mxu0 0.0
      %2142 = vmatpush1.msra.mxu0 0.0
      %2143 = vmatprep.subr.mxu0 0.0
      %2144 = vmatpush1.msra.mxu0 0.0
      %2145 = vmatprep.subr.mxu0 0.0
      %2146 = vmatpush1.msra.mxu0 0.0
      %2147 = vmatprep.subr.mxu0 0.0
      %2148 = vmatpush1.msra.mxu0 0.0
      %2149 = vmatprep.subr.mxu0 0.0
      %2150 = vmatpush1.msra.mxu0 0.0
      %2151 = vmatprep.subr.mxu0 0.0
      %2152 = vmatpush1.msra.mxu0 0.0
      %2153 = vmatprep.subr.mxu0 0.0
      %2154 = vmatpush1.msra.mxu0 0.0
      %2155 = vmatprep.subr.mxu0 0.0
      %2156 = vmatpush1.msra.mxu0 0.0
      %2157 = vmatprep.subr.mxu0 0.0
      %2158 = vmatpush1.msra.mxu0 0.0
      %2159 = vmatprep.subr.mxu0 0.0
      %2160 = vmatpush1.msra.mxu0 0.0
      %2161 = vmatprep.subr.mxu0 0.0
      %2162 = vmatpush1.msra.mxu0 0.0
      %2163 = vmatprep.subr.mxu0 0.0
      %2164 = vmatpush1.msra.mxu0 0.0
      %2165 = vmatprep.subr.mxu0 0.0
      %2166 = vmatpush1.msra.mxu0 0.0
      %2167 = vmatprep.subr.mxu0 0.0
      %2168 = vmatpush1.msra.mxu0 0.0
      %2169 = vmatprep.subr.mxu0 0.0
      %2170 = vmatpush1.msra.mxu0 0.0
      %2171 = vmatprep.subr.mxu0 0.0
      %2172 = vmatpush1.msra.mxu0 0.0
      %2173 = vmatprep.subr.mxu0 0.0
      %2174 = vmatpush1.msra.mxu0 0.0
      %2175 = vmatprep.subr.mxu0 0.0
      %2176 = vmatpush1.msra.mxu0 0.0
      %2177 = vmatprep.subr.mxu0 0.0
      %2178 = vmatpush1.msra.mxu0 0.0
      %2179 = vmatprep.subr.mxu0 0.0
      %2180 = vmatpush1.msra.mxu0 0.0
      %2181 = vmatprep.subr.mxu0 0.0
      %2182 = vmatpush1.msra.mxu0 0.0
      %2183 = vmatprep.subr.mxu0 0.0
      %2184 = vmatpush1.msra.mxu0 0.0
      %2185 = vmatprep.mubr.f32.mxu0 0.0
      %2186 = vmatmul.mubr.f32.gmra.mrb[0].mxu0 %v2119
      %v2187 = vpop.f32.mrb[0].mxu0
      %v2188 = vadd.f32 0.0, %v2187
      %v2189 = vpop.f32.mrb[0].mxu0
      %2190 = vdwg.mxu0
      %v2192 = vsel %vm1304, %v1962, 0
      %2194 = vmatprep.subr.mxu0 0.0
      %2195 = vmatpush1.msra.mxu0 %v2043
      %2196 = vmatprep.subr.mxu0 0.0
      %2197 = vmatpush1.msra.mxu0 0.0
      %2198 = vmatprep.subr.mxu0 0.0
      %2199 = vmatpush1.msra.mxu0 0.0
      %2200 = vmatprep.subr.mxu0 0.0
      %2201 = vmatpush1.msra.mxu0 0.0
      %2202 = vmatprep.subr.mxu0 0.0
      %2203 = vmatpush1.msra.mxu0 0.0
      %2204 = vmatprep.subr.mxu0 0.0
      %2205 = vmatpush1.msra.mxu0 0.0
      %2206 = vmatprep.subr.mxu0 0.0
      %2207 = vmatpush1.msra.mxu0 0.0
      %2208 = vmatprep.subr.mxu0 0.0
      %2209 = vmatpush1.msra.mxu0 0.0
      %2210 = vmatprep.subr.mxu0 0.0
      %2211 = vmatpush1.msra.mxu0 0.0
      %2212 = vmatprep.subr.mxu0 0.0
      %2213 = vmatpush1.msra.mxu0 0.0
      %2214 = vmatprep.subr.mxu0 0.0
      %2215 = vmatpush1.msra.mxu0 0.0
      %2216 = vmatprep.subr.mxu0 0.0
      %2217 = vmatpush1.msra.mxu0 0.0
      %2218 = vmatprep.subr.mxu0 0.0
      %2219 = vmatpush1.msra.mxu0 0.0
      %2220 = vmatprep.subr.mxu0 0.0
      %2221 = vmatpush1.msra.mxu0 0.0
      %2222 = vmatprep.subr.mxu0 0.0
      %2223 = vmatpush1.msra.mxu0 0.0
      %2224 = vmatprep.subr.mxu0 0.0
      %2225 = vmatpush1.msra.mxu0 0.0
      %2226 = vmatprep.subr.mxu0 0.0
      %2227 = vmatpush1.msra.mxu0 0.0
      %2228 = vmatprep.subr.mxu0 0.0
      %2229 = vmatpush1.msra.mxu0 0.0
      %2230 = vmatprep.subr.mxu0 0.0
      %2231 = vmatpush1.msra.mxu0 0.0
      %2232 = vmatprep.subr.mxu0 0.0
      %2233 = vmatpush1.msra.mxu0 0.0
      %2234 = vmatprep.subr.mxu0 0.0
      %2235 = vmatpush1.msra.mxu0 0.0
      %2236 = vmatprep.subr.mxu0 0.0
      %2237 = vmatpush1.msra.mxu0 0.0
      %2238 = vmatprep.subr.mxu0 0.0
      %2239 = vmatpush1.msra.mxu0 0.0
      %2240 = vmatprep.subr.mxu0 0.0
      %2241 = vmatpush1.msra.mxu0 0.0
      %2242 = vmatprep.subr.mxu0 0.0
      %2243 = vmatpush1.msra.mxu0 0.0
      %2244 = vmatprep.subr.mxu0 0.0
      %2245 = vmatpush1.msra.mxu0 0.0
      %2246 = vmatprep.subr.mxu0 0.0
      %2247 = vmatpush1.msra.mxu0 0.0
      %2248 = vmatprep.subr.mxu0 0.0
      %2249 = vmatpush1.msra.mxu0 0.0
      %2250 = vmatprep.subr.mxu0 0.0
      %2251 = vmatpush1.msra.mxu0 0.0
      %2252 = vmatprep.subr.mxu0 0.0
      %2253 = vmatpush1.msra.mxu0 0.0
      %2254 = vmatprep.subr.mxu0 0.0
      %2255 = vmatpush1.msra.mxu0 0.0
      %2256 = vmatprep.subr.mxu0 0.0
      %2257 = vmatpush1.msra.mxu0 0.0
      %2258 = vmatprep.mubr.f32.mxu0 0.0
      %2259 = vmatmul.mubr.f32.gmra.mrb[0].mxu0 %v2192
      %v2260 = vpop.f32.mrb[0].mxu0
      %v2261 = vadd.f32 0.0, %v2260
      %v2262 = vpop.f32.mrb[0].mxu0
      %2263 = vdwg.mxu0
      %v2265 = vsel %vm1304, %v2038, 0
      %2267 = vmatprep.subr.mxu0 0.0
      %2268 = vmatpush1.msra.mxu0 %v2044
      %2269 = vmatprep.subr.mxu0 0.0
      %2270 = vmatpush1.msra.mxu0 0.0
      %2271 = vmatprep.subr.mxu0 0.0
      %2272 = vmatpush1.msra.mxu0 0.0
      %2273 = vmatprep.subr.mxu0 0.0
      %2274 = vmatpush1.msra.mxu0 0.0
      %2275 = vmatprep.subr.mxu0 0.0
      %2276 = vmatpush1.msra.mxu0 0.0
      %2277 = vmatprep.subr.mxu0 0.0
      %2278 = vmatpush1.msra.mxu0 0.0
      %2279 = vmatprep.subr.mxu0 0.0
      %2280 = vmatpush1.msra.mxu0 0.0
      %2281 = vmatprep.subr.mxu0 0.0
      %2282 = vmatpush1.msra.mxu0 0.0
      %2283 = vmatprep.subr.mxu0 0.0
      %2284 = vmatpush1.msra.mxu0 0.0
      %2285 = vmatprep.subr.mxu0 0.0
      %2286 = vmatpush1.msra.mxu0 0.0
      %2287 = vmatprep.subr.mxu0 0.0
      %2288 = vmatpush1.msra.mxu0 0.0
      %2289 = vmatprep.subr.mxu0 0.0
      %2290 = vmatpush1.msra.mxu0 0.0
      %2291 = vmatprep.subr.mxu0 0.0
      %2292 = vmatpush1.msra.mxu0 0.0
      %2293 = vmatprep.subr.mxu0 0.0
      %2294 = vmatpush1.msra.mxu0 0.0
      %2295 = vmatprep.subr.mxu0 0.0
      %2296 = vmatpush1.msra.mxu0 0.0
      %2297 = vmatprep.subr.mxu0 0.0
      %2298 = vmatpush1.msra.mxu0 0.0
      %2299 = vmatprep.subr.mxu0 0.0
      %2300 = vmatpush1.msra.mxu0 0.0
      %2301 = vmatprep.subr.mxu0 0.0
      %2302 = vmatpush1.msra.mxu0 0.0
      %2303 = vmatprep.subr.mxu0 0.0
      %2304 = vmatpush1.msra.mxu0 0.0
      %2305 = vmatprep.subr.mxu0 0.0
      %2306 = vmatpush1.msra.mxu0 0.0
      %2307 = vmatprep.subr.mxu0 0.0
      %2308 = vmatpush1.msra.mxu0 0.0
      %2309 = vmatprep.subr.mxu0 0.0
      %2310 = vmatpush1.msra.mxu0 0.0
      %2311 = vmatprep.subr.mxu0 0.0
      %2312 = vmatpush1.msra.mxu0 0.0
      %2313 = vmatprep.subr.mxu0 0.0
      %2314 = vmatpush1.msra.mxu0 0.0
      %2315 = vmatprep.subr.mxu0 0.0
      %2316 = vmatpush1.msra.mxu0 0.0
      %2317 = vmatprep.subr.mxu0 0.0
      %2318 = vmatpush1.msra.mxu0 0.0
      %2319 = vmatprep.subr.mxu0 0.0
      %2320 = vmatpush1.msra.mxu0 0.0
      %2321 = vmatprep.subr.mxu0 0.0
      %2322 = vmatpush1.msra.mxu0 0.0
      %2323 = vmatprep.subr.mxu0 0.0
      %2324 = vmatpush1.msra.mxu0 0.0
      %2325 = vmatprep.subr.mxu0 0.0
      %2326 = vmatpush1.msra.mxu0 0.0
      %2327 = vmatprep.subr.mxu0 0.0
      %2328 = vmatpush1.msra.mxu0 0.0
      %2329 = vmatprep.subr.mxu0 0.0
      %2330 = vmatpush1.msra.mxu0 0.0
      %2331 = vmatprep.mubr.f32.mxu0 0.0
      %2332 = vmatmul.mubr.f32.gmra.mrb[0].mxu0 %v2265
      %v2333 = vpop.f32.mrb[0].mxu0
      %v2334 = vadd.f32 0.0, %v2333
      %v2335 = vpop.f32.mrb[0].mxu0
      %2336 = vdwg.mxu0
      %v2337 = vsel %vm967, %v2115, 0.0
      %v2338 = vsel %vm967, %v2188, 0.0
      %v2339 = vadd.f32 %v2337, %v2338
      %v2340 = vsel %vm967, %v2261, 0.0
      %v2341 = vadd.f32 %v2339, %v2340
      %v2342 = vsel %vm967, %v2334, 0.0
      %v2343 = vadd.f32 %v2341, %v2342
      %v2344 = vld [vmem:[%s9] sm:$0x1]
      %v2346 = vlaneseq
      %v2347 = vshrl.u32 %v2346, 7
      %v2348 = vsub.s32 0, %v2347
      %v2349 = vrot.slane %v2344, %v2348
      %v2351 = vadd.f32 %v2343, %v2349
      %v2352 = vadd.f32 %v960, %v2351
      %v2353 = vld [vmem:[%s10] sm:$0x1]
      %v2354 = vld [vmem:[%s11] sm:$0x1]
      %v2355 = vsel %vm967, %v2352, 0.0
      %2356 = vadd.xlane.f32.xlu0 %v2355
      %v2357 = vpop.xlane.xlu0 %2356
      %v2358 = vmul.f32 %v2357, %v971
      %v2359 = vsub.f32 %v2352, %v2358
      %v2360 = vmul.f32 %v2359, %v2359
      %v2361 = vsel %vm967, %v2360, 0.0
      %2362 = vadd.xlane.f32.xlu0 %v2361
      %v2363 = vpop.xlane.xlu0 %2362
      %v2364 = vmul.f32 %v2363, %v971
      %v2365 = vadd.f32 %v2364, 1e-06
      %v2366 = vrsqrt.pop %v2365
      %v2367 = vmul.f32 %v2359, %v2366
      %v2369 = vlaneseq
      %v2370 = vshrl.u32 %v2369, 7
      %v2371 = vsub.s32 0, %v2370
      %v2372 = vrot.slane %v2353, %v2371
      %v2374 = vmul.f32 %v2367, %v2372
      %v2376 = vlaneseq
      %v2377 = vshrl.u32 %v2376, 7
      %v2378 = vsub.s32 0, %v2377
      %v2379 = vrot.slane %v2354, %v2378
      %v2381 = vadd.f32 %v2374, %v2379
      %v2382 = vld [vmem:[%s12] sm:$0xff]
      %v2383 = vld [vmem:[%s12 + $0x8] sm:$0xff]
      %v2384 = vld [vmem:[%s12 + $0x10] sm:$0xff]
      %v2385 = vld [vmem:[%s12 + $0x18] sm:$0xff]
      %v2386 = vld [vmem:[%s13] sm:$0x1]
      %v2388 = vlaneseq
      %v2389 = vshrl.u32 %v2388, 7
      %v2390 = vsub.s32 0, %v2389
      %v2391 = vrot.slane %v2386, %v2390
      %v2394 = vsel %vm967, %v2381, 0
      %2396 = vmatprep.subr.mxu0 0.0
      %2397 = vmatpush1.msra.mxu0 %v2382
      %2398 = vmatprep.subr.mxu0 0.0
      %2399 = vmatpush1.msra.mxu0 %v2383
      %2400 = vmatprep.subr.mxu0 0.0
      %2401 = vmatpush1.msra.mxu0 %v2384
      %2402 = vmatprep.subr.mxu0 0.0
      %2403 = vmatpush1.msra.mxu0 %v2385
      %2404 = vmatprep.subr.mxu0 0.0
      %2405 = vmatpush1.msra.mxu0 0.0
      %2406 = vmatprep.subr.mxu0 0.0
      %2407 = vmatpush1.msra.mxu0 0.0
      %2408 = vmatprep.subr.mxu0 0.0
      %2409 = vmatpush1.msra.mxu0 0.0
      %2410 = vmatprep.subr.mxu0 0.0
      %2411 = vmatpush1.msra.mxu0 0.0
      %2412 = vmatprep.subr.mxu0 0.0
      %2413 = vmatpush1.msra.mxu0 0.0
      %2414 = vmatprep.subr.mxu0 0.0
      %2415 = vmatpush1.msra.mxu0 0.0
      %2416 = vmatprep.subr.mxu0 0.0
      %2417 = vmatpush1.msra.mxu0 0.0
      %2418 = vmatprep.subr.mxu0 0.0
      %2419 = vmatpush1.msra.mxu0 0.0
      %2420 = vmatprep.subr.mxu0 0.0
      %2421 = vmatpush1.msra.mxu0 0.0
      %2422 = vmatprep.subr.mxu0 0.0
      %2423 = vmatpush1.msra.mxu0 0.0
      %2424 = vmatprep.subr.mxu0 0.0
      %2425 = vmatpush1.msra.mxu0 0.0
      %2426 = vmatprep.subr.mxu0 0.0
      %2427 = vmatpush1.msra.mxu0 0.0
      %2428 = vmatprep.subr.mxu0 0.0
      %2429 = vmatpush1.msra.mxu0 0.0
      %2430 = vmatprep.subr.mxu0 0.0
      %2431 = vmatpush1.msra.mxu0 0.0
      %2432 = vmatprep.subr.mxu0 0.0
      %2433 = vmatpush1.msra.mxu0 0.0
      %2434 = vmatprep.subr.mxu0 0.0
      %2435 = vmatpush1.msra.mxu0 0.0
      %2436 = vmatprep.subr.mxu0 0.0
      %2437 = vmatpush1.msra.mxu0 0.0
      %2438 = vmatprep.subr.mxu0 0.0
      %2439 = vmatpush1.msra.mxu0 0.0
      %2440 = vmatprep.subr.mxu0 0.0
      %2441 = vmatpush1.msra.mxu0 0.0
      %2442 = vmatprep.subr.mxu0 0.0
      %2443 = vmatpush1.msra.mxu0 0.0
      %2444 = vmatprep.subr.mxu0 0.0
      %2445 = vmatpush1.msra.mxu0 0.0
      %2446 = vmatprep.subr.mxu0 0.0
      %2447 = vmatpush1.msra.mxu0 0.0
      %2448 = vmatprep.subr.mxu0 0.0
      %2449 = vmatpush1.msra.mxu0 0.0
      %2450 = vmatprep.subr.mxu0 0.0
      %2451 = vmatpush1.msra.mxu0 0.0
      %2452 = vmatprep.subr.mxu0 0.0
      %2453 = vmatpush1.msra.mxu0 0.0
      %2454 = vmatprep.subr.mxu0 0.0
      %2455 = vmatpush1.msra.mxu0 0.0
      %2456 = vmatprep.subr.mxu0 0.0
      %2457 = vmatpush1.msra.mxu0 0.0
      %2458 = vmatprep.subr.mxu0 0.0
      %2459 = vmatpush1.msra.mxu0 0.0
      %2460 = vmatprep.mubr.f32.mxu0 0.0
      %2461 = vmatmul.mubr.f32.gmra.mrb[0].mxu0 %v2394
      %v2462 = vpop.f32.mrb[0].mxu0
      %v2463 = vadd.f32 %v2391, %v2462
      %v2464 = vpop.f32.mrb[0].mxu0
      %2465 = vdwg.mxu0
      %v2466 = vmul.f32 %v2463, 0.5
      %v2467 = vmul.f32 %v2463, 0.70710677
      %v2468 = verf.f32.pop %v2467
      %v2469 = vadd.f32 %v2468, 1.0
      %v2470 = vmul.f32 %v2466, %v2469
      %v2471 = vld [vmem:[%s14] sm:$0xff]
      %v2472 = vld [vmem:[%s14 + $0x8] sm:$0xff]
      %v2473 = vld [vmem:[%s14 + $0x10] sm:$0xff]
      %v2474 = vld [vmem:[%s14 + $0x18] sm:$0xff]
      %v2475 = vld [vmem:[%s14 + $0x20] sm:$0xff]
      %v2476 = vld [vmem:[%s14 + $0x28] sm:$0xff]
      %v2477 = vld [vmem:[%s14 + $0x30] sm:$0xff]
      %v2478 = vld [vmem:[%s14 + $0x38] sm:$0xff]
      %v2479 = vld [vmem:[%s15] sm:$0x1]
      %v2481 = vlaneseq
      %v2482 = vshrl.u32 %v2481, 7
      %v2483 = vsub.s32 0, %v2482
      %v2484 = vrot.slane %v2479, %v2483
      %vm2486 = vcmask 523264
      %v2488 = vsel %vm2486, %v2470, 0
      %2490 = vmatprep.subr.mxu0 0.0
      %2491 = vmatpush1.msra.mxu0 %v2471
      %2492 = vmatprep.subr.mxu0 0.0
      %2493 = vmatpush1.msra.mxu0 %v2472
      %2494 = vmatprep.subr.mxu0 0.0
      %2495 = vmatpush1.msra.mxu0 %v2473
      %2496 = vmatprep.subr.mxu0 0.0
      %2497 = vmatpush1.msra.mxu0 %v2474
      %2498 = vmatprep.subr.mxu0 0.0
      %2499 = vmatpush1.msra.mxu0 %v2475
      %2500 = vmatprep.subr.mxu0 0.0
      %2501 = vmatpush1.msra.mxu0 %v2476
      %2502 = vmatprep.subr.mxu0 0.0
      %2503 = vmatpush1.msra.mxu0 %v2477
      %2504 = vmatprep.subr.mxu0 0.0
      %2505 = vmatpush1.msra.mxu0 %v2478
      %2506 = vmatprep.subr.mxu0 0.0
      %2507 = vmatpush1.msra.mxu0 0.0
      %2508 = vmatprep.subr.mxu0 0.0
      %2509 = vmatpush1.msra.mxu0 0.0
      %2510 = vmatprep.subr.mxu0 0.0
      %2511 = vmatpush1.msra.mxu0 0.0
      %2512 = vmatprep.subr.mxu0 0.0
      %2513 = vmatpush1.msra.mxu0 0.0
      %2514 = vmatprep.subr.mxu0 0.0
      %2515 = vmatpush1.msra.mxu0 0.0
      %2516 = vmatprep.subr.mxu0 0.0
      %2517 = vmatpush1.msra.mxu0 0.0
      %2518 = vmatprep.subr.mxu0 0.0
      %2519 = vmatpush1.msra.mxu0 0.0
      %2520 = vmatprep.subr.mxu0 0.0
      %2521 = vmatpush1.msra.mxu0 0.0
      %2522 = vmatprep.subr.mxu0 0.0
      %2523 = vmatpush1.msra.mxu0 0.0
      %2524 = vmatprep.subr.mxu0 0.0
      %2525 = vmatpush1.msra.mxu0 0.0
      %2526 = vmatprep.subr.mxu0 0.0
      %2527 = vmatpush1.msra.mxu0 0.0
      %2528 = vmatprep.subr.mxu0 0.0
      %2529 = vmatpush1.msra.mxu0 0.0
      %2530 = vmatprep.subr.mxu0 0.0
      %2531 = vmatpush1.msra.mxu0 0.0
      %2532 = vmatprep.subr.mxu0 0.0
      %2533 = vmatpush1.msra.mxu0 0.0
      %2534 = vmatprep.subr.mxu0 0.0
      %2535 = vmatpush1.msra.mxu0 0.0
      %2536 = vmatprep.subr.mxu0 0.0
      %2537 = vmatpush1.msra.mxu0 0.0
      %2538 = vmatprep.subr.mxu0 0.0
      %2539 = vmatpush1.msra.mxu0 0.0
      %2540 = vmatprep.subr.mxu0 0.0
      %2541 = vmatpush1.msra.mxu0 0.0
      %2542 = vmatprep.subr.mxu0 0.0
      %2543 = vmatpush1.msra.mxu0 0.0
      %2544 = vmatprep.subr.mxu0 0.0
      %2545 = vmatpush1.msra.mxu0 0.0
      %2546 = vmatprep.subr.mxu0 0.0
      %2547 = vmatpush1.msra.mxu0 0.0
      %2548 = vmatprep.subr.mxu0 0.0
      %2549 = vmatpush1.msra.mxu0 0.0
      %2550 = vmatprep.subr.mxu0 0.0
      %2551 = vmatpush1.msra.mxu0 0.0
      %2552 = vmatprep.subr.mxu0 0.0
      %2553 = vmatpush1.msra.mxu0 0.0
      %2554 = vmatprep.mubr.f32.mxu0 0.0
      %2555 = vmatmul.mubr.f32.gmra.mrb[0].mxu0 %v2488
      %v2556 = vpop.f32.mrb[0].mxu0
      %v2557 = vadd.f32 %v2484, %v2556
      %v2558 = vpop.f32.mrb[0].mxu0
      %2559 = vdwg.mxu0
      %v2560 = vadd.f32 %v2352, %v2557
      %v2561 = vld [vmem:[%s16] sm:$0x1]
      %v2562 = vld [vmem:[%s17] sm:$0x1]
      %vm2563 = vcmask 253952
      %v2564 = vsel %vm2563, %v2560, 0.0
      %2565 = vadd.xlane.f32.xlu0 %v2564
      %v2566 = vpop.xlane.xlu0 %2565
      %v2567 = vmul.f32 %v2566, %v971
      %v2568 = vsub.f32 %v2560, %v2567
      %v2569 = vmul.f32 %v2568, %v2568
      %v2570 = vsel %vm2563, %v2569, 0.0
      %2571 = vadd.xlane.f32.xlu0 %v2570
      %v2572 = vpop.xlane.xlu0 %2571
      %v2573 = vmul.f32 %v2572, %v971
      %v2574 = vadd.f32 %v2573, 1e-06
      %v2575 = vrsqrt.pop %v2574
      %v2576 = vmul.f32 %v2568, %v2575
      %v2577 = vmul.f32 %v2576, %v2561
      %v2578 = vadd.f32 %v2577, %v2562
      %v2579 = vld [vmem:[%s18] sm:$0xff]
      %v2580 = vld [vmem:[%s18 + $0x8] sm:$0xff]
      %v2581 = vld [vmem:[%s18 + $0x10] sm:$0xff]
      %v2582 = vld [vmem:[%s18 + $0x18] sm:$0xff]
      %v2583 = vld [vmem:[%s19] sm:$0x1]
      %v2585 = vsel %vm967, %v2578, 0
      %2587 = vmatprep.subr.mxu0 0.0
      %2588 = vmatpush1.msra.mxu0 %v2579
      %2589 = vmatprep.subr.mxu0 0.0
      %2590 = vmatpush1.msra.mxu0 %v2580
      %2591 = vmatprep.subr.mxu0 0.0
      %2592 = vmatpush1.msra.mxu0 %v2581
      %2593 = vmatprep.subr.mxu0 0.0
      %2594 = vmatpush1.msra.mxu0 %v2582
      %2595 = vmatprep.subr.mxu0 0.0
      %2596 = vmatpush1.msra.mxu0 0.0
      %2597 = vmatprep.subr.mxu0 0.0
      %2598 = vmatpush1.msra.mxu0 0.0
      %2599 = vmatprep.subr.mxu0 0.0
      %2600 = vmatpush1.msra.mxu0 0.0
      %2601 = vmatprep.subr.mxu0 0.0
      %2602 = vmatpush1.msra.mxu0 0.0
      %2603 = vmatprep.subr.mxu0 0.0
      %2604 = vmatpush1.msra.mxu0 0.0
      %2605 = vmatprep.subr.mxu0 0.0
      %2606 = vmatpush1.msra.mxu0 0.0
      %2607 = vmatprep.subr.mxu0 0.0
      %2608 = vmatpush1.msra.mxu0 0.0
      %2609 = vmatprep.subr.mxu0 0.0
      %2610 = vmatpush1.msra.mxu0 0.0
      %2611 = vmatprep.subr.mxu0 0.0
      %2612 = vmatpush1.msra.mxu0 0.0
      %2613 = vmatprep.subr.mxu0 0.0
      %2614 = vmatpush1.msra.mxu0 0.0
      %2615 = vmatprep.subr.mxu0 0.0
      %2616 = vmatpush1.msra.mxu0 0.0
      %2617 = vmatprep.subr.mxu0 0.0
      %2618 = vmatpush1.msra.mxu0 0.0
      %2619 = vmatprep.subr.mxu0 0.0
      %2620 = vmatpush1.msra.mxu0 0.0
      %2621 = vmatprep.subr.mxu0 0.0
      %2622 = vmatpush1.msra.mxu0 0.0
      %2623 = vmatprep.subr.mxu0 0.0
      %2624 = vmatpush1.msra.mxu0 0.0
      %2625 = vmatprep.subr.mxu0 0.0
      %2626 = vmatpush1.msra.mxu0 0.0
      %2627 = vmatprep.subr.mxu0 0.0
      %2628 = vmatpush1.msra.mxu0 0.0
      %2629 = vmatprep.subr.mxu0 0.0
      %2630 = vmatpush1.msra.mxu0 0.0
      %2631 = vmatprep.subr.mxu0 0.0
      %2632 = vmatpush1.msra.mxu0 0.0
      %2633 = vmatprep.subr.mxu0 0.0
      %2634 = vmatpush1.msra.mxu0 0.0
      %2635 = vmatprep.subr.mxu0 0.0
      %2636 = vmatpush1.msra.mxu0 0.0
      %2637 = vmatprep.subr.mxu0 0.0
      %2638 = vmatpush1.msra.mxu0 0.0
      %2639 = vmatprep.subr.mxu0 0.0
      %2640 = vmatpush1.msra.mxu0 0.0
      %2641 = vmatprep.subr.mxu0 0.0
      %2642 = vmatpush1.msra.mxu0 0.0
      %2643 = vmatprep.subr.mxu0 0.0
      %2644 = vmatpush1.msra.mxu0 0.0
      %2645 = vmatprep.subr.mxu0 0.0
      %2646 = vmatpush1.msra.mxu0 0.0
      %2647 = vmatprep.subr.mxu0 0.0
      %2648 = vmatpush1.msra.mxu0 0.0
      %2649 = vmatprep.subr.mxu0 0.0
      %2650 = vmatpush1.msra.mxu0 0.0
      %2651 = vmatprep.mubr.f32.mxu0 0.0
      %2652 = vmatmul.mubr.f32.gmra.mrb[0].mxu0 %v2585
      %v2653 = vpop.f32.mrb[0].mxu0
      %v2654 = vadd.f32 %v2583, %v2653
      %v2655 = vpop.f32.mrb[0].mxu0
      %2656 = vdwg.mxu0
      %s2657 = scalar_lea.vmem %s4, 1
      %v2658 = vld [vmem:[%s2657] sm:$0x1]
      %s2659 = scalar_lea.vmem %s5, 1
      %v2660 = vld [vmem:[%s2659] sm:$0x1]
      %v2661 = vsel %vm967, %v2560, 0.0
      %2662 = vadd.xlane.f32.xlu0 %v2661
      %v2663 = vpop.xlane.xlu0 %2662
      %v2664 = vmul.f32 %v2663, %v971
      %v2665 = vsub.f32 %v2560, %v2664
      %v2666 = vmul.f32 %v2665, %v2665
      %v2667 = vsel %vm967, %v2666, 0.0
      %2668 = vadd.xlane.f32.xlu0 %v2667
      %v2669 = vpop.xlane.xlu0 %2668
      %v2670 = vmul.f32 %v2669, %v971
      %v2671 = vadd.f32 %v2670, 1e-06
      %v2672 = vrsqrt.pop %v2671
      %v2673 = vmul.f32 %v2665, %v2672
      %v2675 = vlaneseq
      %v2676 = vshrl.u32 %v2675, 7
      %v2677 = vsub.s32 0, %v2676
      %v2678 = vrot.slane %v2658, %v2677
      %v2680 = vmul.f32 %v2673, %v2678
      %v2682 = vlaneseq
      %v2683 = vshrl.u32 %v2682, 7
      %v2684 = vsub.s32 0, %v2683
      %v2685 = vrot.slane %v2660, %v2684
      %v2687 = vadd.f32 %v2680, %v2685
      %s2688 = scalar_lea.vmem %s6, 32
      %v2689 = vld [vmem:[%s2688] sm:$0xff]
      %v2690 = vld [vmem:[%s2688 + $0x8] sm:$0xff]
      %v2691 = vld [vmem:[%s2688 + $0x10] sm:$0xff]
      %v2692 = vld [vmem:[%s2688 + $0x18] sm:$0xff]
      %s2693 = scalar_lea.vmem %s7, 96
      %v2694 = vld [vmem:[%s2693] sm:$0xff]
      %v2695 = vld [vmem:[%s2693 + $0x8] sm:$0xff]
      %v2696 = vld [vmem:[%s2693 + $0x10] sm:$0xff]
      %v2697 = vld [vmem:[%s2693 + $0x18] sm:$0xff]
      %v2698 = vld [vmem:[%s2693 + $0x20] sm:$0xff]
      %v2699 = vld [vmem:[%s2693 + $0x28] sm:$0xff]
      %v2700 = vld [vmem:[%s2693 + $0x30] sm:$0xff]
      %v2701 = vld [vmem:[%s2693 + $0x38] sm:$0xff]
      %v2702 = vld [vmem:[%s2693 + $0x40] sm:$0xff]
      %v2703 = vld [vmem:[%s2693 + $0x48] sm:$0xff]
      %v2704 = vld [vmem:[%s2693 + $0x50] sm:$0xff]
      %v2705 = vld [vmem:[%s2693 + $0x58] sm:$0xff]
      %2707 = vset.pattern.permute.xlu0 0
      %2708 = vperm.xlu0 %2707, %v2694
      %v2709 = vpop.permute.xlu0 %2708
      %2712 = vset.pattern.permute.xlu0 0
      %2713 = vperm.xlu0 %2712, %v2695
      %v2714 = vpop.permute.xlu0 %2713
      %2717 = vset.pattern.permute.xlu0 0
      %2718 = vperm.xlu0 %2717, %v2696
      %v2719 = vpop.permute.xlu0 %2718
      %2722 = vset.pattern.permute.xlu0 0
      %2723 = vperm.xlu0 %2722, %v2697
      %v2724 = vpop.permute.xlu0 %2723
      %2727 = vset.pattern.permute.xlu0 0
      %2728 = vperm.xlu0 %2727, %v2698
      %v2729 = vpop.permute.xlu0 %2728
      %2732 = vset.pattern.permute.xlu0 0
      %2733 = vperm.xlu0 %2732, %v2699
      %v2734 = vpop.permute.xlu0 %2733
      %2737 = vset.pattern.permute.xlu0 0
      %2738 = vperm.xlu0 %2737, %v2700
      %v2739 = vpop.permute.xlu0 %2738
      %2742 = vset.pattern.permute.xlu0 0
      %2743 = vperm.xlu0 %2742, %v2701
      %v2744 = vpop.permute.xlu0 %2743
      %2747 = vset.pattern.permute.xlu0 0
      %2748 = vperm.xlu0 %2747, %v2702
      %v2749 = vpop.permute.xlu0 %2748
      %2752 = vset.pattern.permute.xlu0 0
      %2753 = vperm.xlu0 %2752, %v2703
      %v2754 = vpop.permute.xlu0 %2753
      %2757 = vset.pattern.permute.xlu0 0
      %2758 = vperm.xlu0 %2757, %v2704
      %v2759 = vpop.permute.xlu0 %2758
      %2762 = vset.pattern.permute.xlu0 0
      %2763 = vperm.xlu0 %2762, %v2705
      %v2764 = vpop.permute.xlu0 %2763
      %2766 = vxpose.xlu0.b32.start [1/16] %v2689, 128
      %2767 = vxpose.xlu0.b32.cont [2/16] %v2690, 128
      %2768 = vxpose.xlu0.b32.cont [3/16] %v2691, 128
      %2769 = vxpose.xlu0.b32.cont [4/16] %v2692, 128
      %2770 = vxpose.xlu0.b32.cont [5/16] 0.0, 128
      %2771 = vxpose.xlu0.b32.cont [6/16] 0.0, 128
      %2772 = vxpose.xlu0.b32.cont [7/16] 0.0, 128
      %2773 = vxpose.xlu0.b32.cont [8/16] 0.0, 128
      %2774 = vxpose.xlu0.b32.cont [9/16] 0.0, 128
      %2775 = vxpose.xlu0.b32.cont [10/16] 0.0, 128
      %2776 = vxpose.xlu0.b32.cont [11/16] 0.0, 128
      %2777 = vxpose.xlu0.b32.cont [12/16] 0.0, 128
      %2778 = vxpose.xlu0.b32.cont [13/16] 0.0, 128
      %2779 = vxpose.xlu0.b32.cont [14/16] 0.0, 128
      %2780 = vxpose.xlu0.b32.cont [15/16] 0.0, 128
      %2781 = vxpose.xlu0.b32.end [16/16] 0.0, 128
      %v2782 = vpop.trf.xlu0
      %v2783 = vpop.trf.xlu0
      %v2784 = vpop.trf.xlu0
      %v2785 = vpop.trf.xlu0
      %v2786 = vpop.trf.xlu0
      %v2787 = vpop.trf.xlu0
      %v2788 = vpop.trf.xlu0
      %v2789 = vpop.trf.xlu0
      %v2790 = vpop.trf.xlu0
      %v2791 = vpop.trf.xlu0
      %v2792 = vpop.trf.xlu0
      %v2793 = vpop.trf.xlu0
      %v2794 = vpop.trf.xlu0
      %v2795 = vpop.trf.xlu0
      %v2796 = vpop.trf.xlu0
      %v2797 = vpop.trf.xlu0
      %v2799 = vsel %vm967, %v2782, 0
      %v2802 = vsel %vm967, %v2783, 0
      %v2805 = vsel %vm967, %v2784, 0
      %v2808 = vsel %vm967, %v2785, 0
      %v2811 = vsel %vm967, %v2786, 0
      %v2814 = vsel %vm967, %v2787, 0
      %v2817 = vsel %vm967, %v2788, 0
      %v2820 = vsel %vm967, %v2789, 0
      %v2823 = vsel %vm967, %v2790, 0
      %v2826 = vsel %vm967, %v2791, 0
      %v2829 = vsel %vm967, %v2792, 0
      %v2832 = vsel %vm967, %v2793, 0
      %v2835 = vsel %vm967, %v2687, 0
      %2837 = vmatprep.subr.mxu0 0.0
      %2838 = vmatpush1.xpose.msra.mxu0 %v2835
      %2839 = vmatprep.subr.mxu0 0.0
      %2840 = vmatpush1.xpose.msra.mxu0 0.0
      %2841 = vmatprep.subr.mxu0 0.0
      %2842 = vmatpush1.xpose.msra.mxu0 0.0
      %2843 = vmatprep.subr.mxu0 0.0
      %2844 = vmatpush1.xpose.msra.mxu0 0.0
      %2845 = vmatprep.subr.mxu0 0.0
      %2846 = vmatpush1.xpose.msra.mxu0 0.0
      %2847 = vmatprep.subr.mxu0 0.0
      %2848 = vmatpush1.xpose.msra.mxu0 0.0
      %2849 = vmatprep.subr.mxu0 0.0
      %2850 = vmatpush1.xpose.msra.mxu0 0.0
      %2851 = vmatprep.subr.mxu0 0.0
      %2852 = vmatpush1.xpose.msra.mxu0 0.0
      %2853 = vmatprep.subr.mxu0 0.0
      %2854 = vmatpush1.xpose.msra.mxu0 0.0
      %2855 = vmatprep.subr.mxu0 0.0
      %2856 = vmatpush1.xpose.msra.mxu0 0.0
      %2857 = vmatprep.subr.mxu0 0.0
      %2858 = vmatpush1.xpose.msra.mxu0 0.0
      %2859 = vmatprep.subr.mxu0 0.0
      %2860 = vmatpush1.xpose.msra.mxu0 0.0
      %2861 = vmatprep.subr.mxu0 0.0
      %2862 = vmatpush1.xpose.msra.mxu0 0.0
      %2863 = vmatprep.subr.mxu0 0.0
      %2864 = vmatpush1.xpose.msra.mxu0 0.0
      %2865 = vmatprep.subr.mxu0 0.0
      %2866 = vmatpush1.xpose.msra.mxu0 0.0
      %2867 = vmatprep.subr.mxu0 0.0
      %2868 = vmatpush1.xpose.msra.mxu0 0.0
      %2869 = vmatprep.subr.mxu0 0.0
      %2870 = vmatpush1.xpose.msra.mxu0 0.0
      %2871 = vmatprep.subr.mxu0 0.0
      %2872 = vmatpush1.xpose.msra.mxu0 0.0
      %2873 = vmatprep.subr.mxu0 0.0
      %2874 = vmatpush1.xpose.msra.mxu0 0.0
      %2875 = vmatprep.subr.mxu0 0.0
      %2876 = vmatpush1.xpose.msra.mxu0 0.0
      %2877 = vmatprep.subr.mxu0 0.0
      %2878 = vmatpush1.xpose.msra.mxu0 0.0
      %2879 = vmatprep.subr.mxu0 0.0
      %2880 = vmatpush1.xpose.msra.mxu0 0.0
      %2881 = vmatprep.subr.mxu0 0.0
      %2882 = vmatpush1.xpose.msra.mxu0 0.0
      %2883 = vmatprep.subr.mxu0 0.0
      %2884 = vmatpush1.xpose.msra.mxu0 0.0
      %2885 = vmatprep.subr.mxu0 0.0
      %2886 = vmatpush1.xpose.msra.mxu0 0.0
      %2887 = vmatprep.subr.mxu0 0.0
      %2888 = vmatpush1.xpose.msra.mxu0 0.0
      %2889 = vmatprep.subr.mxu0 0.0
      %2890 = vmatpush1.xpose.msra.mxu0 0.0
      %2891 = vmatprep.subr.mxu0 0.0
      %2892 = vmatpush1.xpose.msra.mxu0 0.0
      %2893 = vmatprep.subr.mxu0 0.0
      %2894 = vmatpush1.xpose.msra.mxu0 0.0
      %2895 = vmatprep.subr.mxu0 0.0
      %2896 = vmatpush1.xpose.msra.mxu0 0.0
      %2897 = vmatprep.subr.mxu0 0.0
      %2898 = vmatpush1.xpose.msra.mxu0 0.0
      %2899 = vmatprep.subr.mxu0 0.0
      %2900 = vmatpush1.xpose.msra.mxu0 0.0
      %2901 = vmatprep.mubr.f32.mxu0 0.0
      %2902 = vmatmul.mubr.f32.gmra.mrb[0].mxu0 %v2799
      %v2903 = vpop.f32.mrb[0].mxu0
      %v2904 = vadd.f32 %v2709, %v2903
      %v2905 = vpop.f32.mrb[0].mxu0
      %2906 = vmatprep.mubr.f32.mxu0 0.0
      %2907 = vmatmul.mubr.f32.gmra.mrb[0].mxu0 %v2802
      %v2908 = vpop.f32.mrb[0].mxu0
      %v2909 = vadd.f32 %v2714, %v2908
      %v2910 = vpop.f32.mrb[0].mxu0
      %2911 = vmatprep.mubr.f32.mxu0 0.0
      %2912 = vmatmul.mubr.f32.gmra.mrb[0].mxu0 %v2805
      %v2913 = vpop.f32.mrb[0].mxu0
      %v2914 = vadd.f32 %v2719, %v2913
      %v2915 = vpop.f32.mrb[0].mxu0
      %2916 = vmatprep.mubr.f32.mxu0 0.0
      %2917 = vmatmul.mubr.f32.gmra.mrb[0].mxu0 %v2808
      %v2918 = vpop.f32.mrb[0].mxu0
      %v2919 = vadd.f32 %v2724, %v2918
      %v2920 = vpop.f32.mrb[0].mxu0
      %2921 = vmatprep.mubr.f32.mxu0 0.0
      %2922 = vmatmul.mubr.f32.gmra.mrb[0].mxu0 %v2811
      %v2923 = vpop.f32.mrb[0].mxu0
      %v2924 = vadd.f32 %v2729, %v2923
      %v2925 = vpop.f32.mrb[0].mxu0
      %2926 = vmatprep.mubr.f32.mxu0 0.0
      %2927 = vmatmul.mubr.f32.gmra.mrb[0].mxu0 %v2814
      %v2928 = vpop.f32.mrb[0].mxu0
      %v2929 = vadd.f32 %v2734, %v2928
      %v2930 = vpop.f32.mrb[0].mxu0
      %2931 = vmatprep.mubr.f32.mxu0 0.0
      %2932 = vmatmul.mubr.f32.gmra.mrb[0].mxu0 %v2817
      %v2933 = vpop.f32.mrb[0].mxu0
      %v2934 = vadd.f32 %v2739, %v2933
      %v2935 = vpop.f32.mrb[0].mxu0
      %2936 = vmatprep.mubr.f32.mxu0 0.0
      %2937 = vmatmul.mubr.f32.gmra.mrb[0].mxu0 %v2820
      %v2938 = vpop.f32.mrb[0].mxu0
      %v2939 = vadd.f32 %v2744, %v2938
      %v2940 = vpop.f32.mrb[0].mxu0
      %2941 = vmatprep.mubr.f32.mxu0 0.0
      %2942 = vmatmul.mubr.f32.gmra.mrb[0].mxu0 %v2823
      %v2943 = vpop.f32.mrb[0].mxu0
      %v2944 = vadd.f32 %v2749, %v2943
      %v2945 = vpop.f32.mrb[0].mxu0
      %2946 = vmatprep.mubr.f32.mxu0 0.0
      %2947 = vmatmul.mubr.f32.gmra.mrb[0].mxu0 %v2826
      %v2948 = vpop.f32.mrb[0].mxu0
      %v2949 = vadd.f32 %v2754, %v2948
      %v2950 = vpop.f32.mrb[0].mxu0
      %2951 = vmatprep.mubr.f32.mxu0 0.0
      %2952 = vmatmul.mubr.f32.gmra.mrb[0].mxu0 %v2829
      %v2953 = vpop.f32.mrb[0].mxu0
      %v2954 = vadd.f32 %v2759, %v2953
      %v2955 = vpop.f32.mrb[0].mxu0
      %2956 = vmatprep.mubr.f32.mxu0 0.0
      %2957 = vmatmul.mubr.f32.gmra.mrb[0].mxu0 %v2832
      %v2958 = vpop.f32.mrb[0].mxu0
      %v2959 = vadd.f32 %v2764, %v2958
      %v2960 = vpop.f32.mrb[0].mxu0
      %2961 = vdwg.mxu0
      %v2962 = vmul.f32 %v2904, 0.35355338
      %v2963 = vmul.f32 %v2909, 0.35355338
      %v2964 = vmul.f32 %v2914, 0.35355338
      %v2965 = vmul.f32 %v2919, 0.35355338
      %2966 = vxpose.xlu0.b32.start [1/16] %v2962, 128
      %2967 = vxpose.xlu0.b32.cont [2/16] 0.0, 128
      %2968 = vxpose.xlu0.b32.cont [3/16] 0.0, 128
      %2969 = vxpose.xlu0.b32.cont [4/16] 0.0, 128
      %2970 = vxpose.xlu0.b32.cont [5/16] 0.0, 128
      %2971 = vxpose.xlu0.b32.cont [6/16] 0.0, 128
      %2972 = vxpose.xlu0.b32.cont [7/16] 0.0, 128
      %2973 = vxpose.xlu0.b32.cont [8/16] 0.0, 128
      %2974 = vxpose.xlu0.b32.cont [9/16] 0.0, 128
      %2975 = vxpose.xlu0.b32.cont [10/16] 0.0, 128
      %2976 = vxpose.xlu0.b32.cont [11/16] 0.0, 128
      %2977 = vxpose.xlu0.b32.cont [12/16] 0.0, 128
      %2978 = vxpose.xlu0.b32.cont [13/16] 0.0, 128
      %2979 = vxpose.xlu0.b32.cont [14/16] 0.0, 128
      %2980 = vxpose.xlu0.b32.cont [15/16] 0.0, 128
      %2981 = vxpose.xlu0.b32.end [16/16] 0.0, 128
      %v2982 = vpop.trf.xlu0
      %v2983 = vpop.trf.xlu0
      %v2984 = vpop.trf.xlu0
      %v2985 = vpop.trf.xlu0
      %v2986 = vpop.trf.xlu0
      %v2987 = vpop.trf.xlu0
      %v2988 = vpop.trf.xlu0
      %v2989 = vpop.trf.xlu0
      %v2990 = vpop.trf.xlu0
      %v2991 = vpop.trf.xlu0
      %v2992 = vpop.trf.xlu0
      %v2993 = vpop.trf.xlu0
      %v2994 = vpop.trf.xlu0
      %v2995 = vpop.trf.xlu0
      %v2996 = vpop.trf.xlu0
      %v2997 = vpop.trf.xlu0
      %v2999 = vsel %vm1304, %v2982, 0
      %3001 = vmatprep.subr.mxu0 0.0
      %3002 = vmatpush1.msra.mxu0 %v2924
      %3003 = vmatprep.subr.mxu0 0.0
      %3004 = vmatpush1.msra.mxu0 0.0
      %3005 = vmatprep.subr.mxu0 0.0
      %3006 = vmatpush1.msra.mxu0 0.0
      %3007 = vmatprep.subr.mxu0 0.0
      %3008 = vmatpush1.msra.mxu0 0.0
      %3009 = vmatprep.subr.mxu0 0.0
      %3010 = vmatpush1.msra.mxu0 0.0
      %3011 = vmatprep.subr.mxu0 0.0
      %3012 = vmatpush1.msra.mxu0 0.0
      %3013 = vmatprep.subr.mxu0 0.0
      %3014 = vmatpush1.msra.mxu0 0.0
      %3015 = vmatprep.subr.mxu0 0.0
      %3016 = vmatpush1.msra.mxu0 0.0
      %3017 = vmatprep.subr.mxu0 0.0
      %3018 = vmatpush1.msra.mxu0 0.0
      %3019 = vmatprep.subr.mxu0 0.0
      %3020 = vmatpush1.msra.mxu0 0.0
      %3021 = vmatprep.subr.mxu0 0.0
      %3022 = vmatpush1.msra.mxu0 0.0
      %3023 = vmatprep.subr.mxu0 0.0
      %3024 = vmatpush1.msra.mxu0 0.0
      %3025 = vmatprep.subr.mxu0 0.0
      %3026 = vmatpush1.msra.mxu0 0.0
      %3027 = vmatprep.subr.mxu0 0.0
      %3028 = vmatpush1.msra.mxu0 0.0
      %3029 = vmatprep.subr.mxu0 0.0
      %3030 = vmatpush1.msra.mxu0 0.0
      %3031 = vmatprep.subr.mxu0 0.0
      %3032 = vmatpush1.msra.mxu0 0.0
      %3033 = vmatprep.subr.mxu0 0.0
      %3034 = vmatpush1.msra.mxu0 0.0
      %3035 = vmatprep.subr.mxu0 0.0
      %3036 = vmatpush1.msra.mxu0 0.0
      %3037 = vmatprep.subr.mxu0 0.0
      %3038 = vmatpush1.msra.mxu0 0.0
      %3039 = vmatprep.subr.mxu0 0.0
      %3040 = vmatpush1.msra.mxu0 0.0
      %3041 = vmatprep.subr.mxu0 0.0
      %3042 = vmatpush1.msra.mxu0 0.0
      %3043 = vmatprep.subr.mxu0 0.0
      %3044 = vmatpush1.msra.mxu0 0.0
      %3045 = vmatprep.subr.mxu0 0.0
      %3046 = vmatpush1.msra.mxu0 0.0
      %3047 = vmatprep.subr.mxu0 0.0
      %3048 = vmatpush1.msra.mxu0 0.0
      %3049 = vmatprep.subr.mxu0 0.0
      %3050 = vmatpush1.msra.mxu0 0.0
      %3051 = vmatprep.subr.mxu0 0.0
      %3052 = vmatpush1.msra.mxu0 0.0
      %3053 = vmatprep.subr.mxu0 0.0
      %3054 = vmatpush1.msra.mxu0 0.0
      %3055 = vmatprep.subr.mxu0 0.0
      %3056 = vmatpush1.msra.mxu0 0.0
      %3057 = vmatprep.subr.mxu0 0.0
      %3058 = vmatpush1.msra.mxu0 0.0
      %3059 = vmatprep.subr.mxu0 0.0
      %3060 = vmatpush1.msra.mxu0 0.0
      %3061 = vmatprep.subr.mxu0 0.0
      %3062 = vmatpush1.msra.mxu0 0.0
      %3063 = vmatprep.subr.mxu0 0.0
      %3064 = vmatpush1.msra.mxu0 0.0
      %3065 = vmatprep.mubr.f32.mxu0 0.0
      %3066 = vmatmul.mubr.f32.gmra.mrb[0].mxu0 %v2999
      %v3067 = vpop.f32.mrb[0].mxu0
      %v3068 = vadd.f32 %v964, %v3067
      %v3069 = vpop.f32.mrb[0].mxu0
      %3070 = vdwg.mxu0
      %3071 = vxpose.xlu0.b32.start [1/16] %v2963, 128
      %3072 = vxpose.xlu0.b32.cont [2/16] 0.0, 128
      %3073 = vxpose.xlu0.b32.cont [3/16] 0.0, 128
      %3074 = vxpose.xlu0.b32.cont [4/16] 0.0, 128
      %3075 = vxpose.xlu0.b32.cont [5/16] 0.0, 128
      %3076 = vxpose.xlu0.b32.cont [6/16] 0.0, 128
      %3077 = vxpose.xlu0.b32.cont [7/16] 0.0, 128
      %3078 = vxpose.xlu0.b32.cont [8/16] 0.0, 128
      %3079 = vxpose.xlu0.b32.cont [9/16] 0.0, 128
      %3080 = vxpose.xlu0.b32.cont [10/16] 0.0, 128
      %3081 = vxpose.xlu0.b32.cont [11/16] 0.0, 128
      %3082 = vxpose.xlu0.b32.cont [12/16] 0.0, 128
      %3083 = vxpose.xlu0.b32.cont [13/16] 0.0, 128
      %3084 = vxpose.xlu0.b32.cont [14/16] 0.0, 128
      %3085 = vxpose.xlu0.b32.cont [15/16] 0.0, 128
      %3086 = vxpose.xlu0.b32.end [16/16] 0.0, 128
      %v3087 = vpop.trf.xlu0
      %v3088 = vpop.trf.xlu0
      %v3089 = vpop.trf.xlu0
      %v3090 = vpop.trf.xlu0
      %v3091 = vpop.trf.xlu0
      %v3092 = vpop.trf.xlu0
      %v3093 = vpop.trf.xlu0
      %v3094 = vpop.trf.xlu0
      %v3095 = vpop.trf.xlu0
      %v3096 = vpop.trf.xlu0
      %v3097 = vpop.trf.xlu0
      %v3098 = vpop.trf.xlu0
      %v3099 = vpop.trf.xlu0
      %v3100 = vpop.trf.xlu0
      %v3101 = vpop.trf.xlu0
      %v3102 = vpop.trf.xlu0
      %v3104 = vsel %vm1304, %v3087, 0
      %3106 = vmatprep.subr.mxu0 0.0
      %3107 = vmatpush1.msra.mxu0 %v2929
      %3108 = vmatprep.subr.mxu0 0.0
      %3109 = vmatpush1.msra.mxu0 0.0
      %3110 = vmatprep.subr.mxu0 0.0
      %3111 = vmatpush1.msra.mxu0 0.0
      %3112 = vmatprep.subr.mxu0 0.0
      %3113 = vmatpush1.msra.mxu0 0.0
      %3114 = vmatprep.subr.mxu0 0.0
      %3115 = vmatpush1.msra.mxu0 0.0
      %3116 = vmatprep.subr.mxu0 0.0
      %3117 = vmatpush1.msra.mxu0 0.0
      %3118 = vmatprep.subr.mxu0 0.0
      %3119 = vmatpush1.msra.mxu0 0.0
      %3120 = vmatprep.subr.mxu0 0.0
      %3121 = vmatpush1.msra.mxu0 0.0
      %3122 = vmatprep.subr.mxu0 0.0
      %3123 = vmatpush1.msra.mxu0 0.0
      %3124 = vmatprep.subr.mxu0 0.0
      %3125 = vmatpush1.msra.mxu0 0.0
      %3126 = vmatprep.subr.mxu0 0.0
      %3127 = vmatpush1.msra.mxu0 0.0
      %3128 = vmatprep.subr.mxu0 0.0
      %3129 = vmatpush1.msra.mxu0 0.0
      %3130 = vmatprep.subr.mxu0 0.0
      %3131 = vmatpush1.msra.mxu0 0.0
      %3132 = vmatprep.subr.mxu0 0.0
      %3133 = vmatpush1.msra.mxu0 0.0
      %3134 = vmatprep.subr.mxu0 0.0
      %3135 = vmatpush1.msra.mxu0 0.0
      %3136 = vmatprep.subr.mxu0 0.0
      %3137 = vmatpush1.msra.mxu0 0.0
      %3138 = vmatprep.subr.mxu0 0.0
      %3139 = vmatpush1.msra.mxu0 0.0
      %3140 = vmatprep.subr.mxu0 0.0
      %3141 = vmatpush1.msra.mxu0 0.0
      %3142 = vmatprep.subr.mxu0 0.0
      %3143 = vmatpush1.msra.mxu0 0.0
      %3144 = vmatprep.subr.mxu0 0.0
      %3145 = vmatpush1.msra.mxu0 0.0
      %3146 = vmatprep.subr.mxu0 0.0
      %3147 = vmatpush1.msra.mxu0 0.0
      %3148 = vmatprep.subr.mxu0 0.0
      %3149 = vmatpush1.msra.mxu0 0.0
      %3150 = vmatprep.subr.mxu0 0.0
      %3151 = vmatpush1.msra.mxu0 0.0
      %3152 = vmatprep.subr.mxu0 0.0
      %3153 = vmatpush1.msra.mxu0 0.0
      %3154 = vmatprep.subr.mxu0 0.0
      %3155 = vmatpush1.msra.mxu0 0.0
      %3156 = vmatprep.subr.mxu0 0.0
      %3157 = vmatpush1.msra.mxu0 0.0
      %3158 = vmatprep.subr.mxu0 0.0
      %3159 = vmatpush1.msra.mxu0 0.0
      %3160 = vmatprep.subr.mxu0 0.0
      %3161 = vmatpush1.msra.mxu0 0.0
      %3162 = vmatprep.subr.mxu0 0.0
      %3163 = vmatpush1.msra.mxu0 0.0
      %3164 = vmatprep.subr.mxu0 0.0
      %3165 = vmatpush1.msra.mxu0 0.0
      %3166 = vmatprep.subr.mxu0 0.0
      %3167 = vmatpush1.msra.mxu0 0.0
      %3168 = vmatprep.subr.mxu0 0.0
      %3169 = vmatpush1.msra.mxu0 0.0
      %3170 = vmatprep.mubr.f32.mxu0 0.0
      %3171 = vmatmul.mubr.f32.gmra.mrb[0].mxu0 %v3104
      %v3172 = vpop.f32.mrb[0].mxu0
      %v3173 = vadd.f32 %v964, %v3172
      %v3174 = vpop.f32.mrb[0].mxu0
      %3175 = vdwg.mxu0
      %3176 = vxpose.xlu0.b32.start [1/16] %v2964, 128
      %3177 = vxpose.xlu0.b32.cont [2/16] 0.0, 128
      %3178 = vxpose.xlu0.b32.cont [3/16] 0.0, 128
      %3179 = vxpose.xlu0.b32.cont [4/16] 0.0, 128
      %3180 = vxpose.xlu0.b32.cont [5/16] 0.0, 128
      %3181 = vxpose.xlu0.b32.cont [6/16] 0.0, 128
      %3182 = vxpose.xlu0.b32.cont [7/16] 0.0, 128
      %3183 = vxpose.xlu0.b32.cont [8/16] 0.0, 128
      %3184 = vxpose.xlu0.b32.cont [9/16] 0.0, 128
      %3185 = vxpose.xlu0.b32.cont [10/16] 0.0, 128
      %3186 = vxpose.xlu0.b32.cont [11/16] 0.0, 128
      %3187 = vxpose.xlu0.b32.cont [12/16] 0.0, 128
      %3188 = vxpose.xlu0.b32.cont [13/16] 0.0, 128
      %3189 = vxpose.xlu0.b32.cont [14/16] 0.0, 128
      %3190 = vxpose.xlu0.b32.cont [15/16] 0.0, 128
      %3191 = vxpose.xlu0.b32.end [16/16] 0.0, 128
      %v3192 = vpop.trf.xlu0
      %v3193 = vpop.trf.xlu0
      %v3194 = vpop.trf.xlu0
      %v3195 = vpop.trf.xlu0
      %v3196 = vpop.trf.xlu0
      %v3197 = vpop.trf.xlu0
      %v3198 = vpop.trf.xlu0
      %v3199 = vpop.trf.xlu0
      %v3200 = vpop.trf.xlu0
      %v3201 = vpop.trf.xlu0
      %v3202 = vpop.trf.xlu0
      %v3203 = vpop.trf.xlu0
      %v3204 = vpop.trf.xlu0
      %v3205 = vpop.trf.xlu0
      %v3206 = vpop.trf.xlu0
      %v3207 = vpop.trf.xlu0
      %v3209 = vsel %vm1304, %v3192, 0
      %3211 = vmatprep.subr.mxu0 0.0
      %3212 = vmatpush1.msra.mxu0 %v2934
      %3213 = vmatprep.subr.mxu0 0.0
      %3214 = vmatpush1.msra.mxu0 0.0
      %3215 = vmatprep.subr.mxu0 0.0
      %3216 = vmatpush1.msra.mxu0 0.0
      %3217 = vmatprep.subr.mxu0 0.0
      %3218 = vmatpush1.msra.mxu0 0.0
      %3219 = vmatprep.subr.mxu0 0.0
      %3220 = vmatpush1.msra.mxu0 0.0
      %3221 = vmatprep.subr.mxu0 0.0
      %3222 = vmatpush1.msra.mxu0 0.0
      %3223 = vmatprep.subr.mxu0 0.0
      %3224 = vmatpush1.msra.mxu0 0.0
      %3225 = vmatprep.subr.mxu0 0.0
      %3226 = vmatpush1.msra.mxu0 0.0
      %3227 = vmatprep.subr.mxu0 0.0
      %3228 = vmatpush1.msra.mxu0 0.0
      %3229 = vmatprep.subr.mxu0 0.0
      %3230 = vmatpush1.msra.mxu0 0.0
      %3231 = vmatprep.subr.mxu0 0.0
      %3232 = vmatpush1.msra.mxu0 0.0
      %3233 = vmatprep.subr.mxu0 0.0
      %3234 = vmatpush1.msra.mxu0 0.0
      %3235 = vmatprep.subr.mxu0 0.0
      %3236 = vmatpush1.msra.mxu0 0.0
      %3237 = vmatprep.subr.mxu0 0.0
      %3238 = vmatpush1.msra.mxu0 0.0
      %3239 = vmatprep.subr.mxu0 0.0
      %3240 = vmatpush1.msra.mxu0 0.0
      %3241 = vmatprep.subr.mxu0 0.0
      %3242 = vmatpush1.msra.mxu0 0.0
      %3243 = vmatprep.subr.mxu0 0.0
      %3244 = vmatpush1.msra.mxu0 0.0
      %3245 = vmatprep.subr.mxu0 0.0
      %3246 = vmatpush1.msra.mxu0 0.0
      %3247 = vmatprep.subr.mxu0 0.0
      %3248 = vmatpush1.msra.mxu0 0.0
      %3249 = vmatprep.subr.mxu0 0.0
      %3250 = vmatpush1.msra.mxu0 0.0
      %3251 = vmatprep.subr.mxu0 0.0
      %3252 = vmatpush1.msra.mxu0 0.0
      %3253 = vmatprep.subr.mxu0 0.0
      %3254 = vmatpush1.msra.mxu0 0.0
      %3255 = vmatprep.subr.mxu0 0.0
      %3256 = vmatpush1.msra.mxu0 0.0
      %3257 = vmatprep.subr.mxu0 0.0
      %3258 = vmatpush1.msra.mxu0 0.0
      %3259 = vmatprep.subr.mxu0 0.0
      %3260 = vmatpush1.msra.mxu0 0.0
      %3261 = vmatprep.subr.mxu0 0.0
      %3262 = vmatpush1.msra.mxu0 0.0
      %3263 = vmatprep.subr.mxu0 0.0
      %3264 = vmatpush1.msra.mxu0 0.0
      %3265 = vmatprep.subr.mxu0 0.0
      %3266 = vmatpush1.msra.mxu0 0.0
      %3267 = vmatprep.subr.mxu0 0.0
      %3268 = vmatpush1.msra.mxu0 0.0
      %3269 = vmatprep.subr.mxu0 0.0
      %3270 = vmatpush1.msra.mxu0 0.0
      %3271 = vmatprep.subr.mxu0 0.0
      %3272 = vmatpush1.msra.mxu0 0.0
      %3273 = vmatprep.subr.mxu0 0.0
      %3274 = vmatpush1.msra.mxu0 0.0
      %3275 = vmatprep.mubr.f32.mxu0 0.0
      %3276 = vmatmul.mubr.f32.gmra.mrb[0].mxu0 %v3209
      %v3277 = vpop.f32.mrb[0].mxu0
      %v3278 = vadd.f32 %v964, %v3277
      %v3279 = vpop.f32.mrb[0].mxu0
      %3280 = vdwg.mxu0
      %3281 = vxpose.xlu0.b32.start [1/16] %v2965, 128
      %3282 = vxpose.xlu0.b32.cont [2/16] 0.0, 128
      %3283 = vxpose.xlu0.b32.cont [3/16] 0.0, 128
      %3284 = vxpose.xlu0.b32.cont [4/16] 0.0, 128
      %3285 = vxpose.xlu0.b32.cont [5/16] 0.0, 128
      %3286 = vxpose.xlu0.b32.cont [6/16] 0.0, 128
      %3287 = vxpose.xlu0.b32.cont [7/16] 0.0, 128
      %3288 = vxpose.xlu0.b32.cont [8/16] 0.0, 128
      %3289 = vxpose.xlu0.b32.cont [9/16] 0.0, 128
      %3290 = vxpose.xlu0.b32.cont [10/16] 0.0, 128
      %3291 = vxpose.xlu0.b32.cont [11/16] 0.0, 128
      %3292 = vxpose.xlu0.b32.cont [12/16] 0.0, 128
      %3293 = vxpose.xlu0.b32.cont [13/16] 0.0, 128
      %3294 = vxpose.xlu0.b32.cont [14/16] 0.0, 128
      %3295 = vxpose.xlu0.b32.cont [15/16] 0.0, 128
      %3296 = vxpose.xlu0.b32.end [16/16] 0.0, 128
      %v3297 = vpop.trf.xlu0
      %v3298 = vpop.trf.xlu0
      %v3299 = vpop.trf.xlu0
      %v3300 = vpop.trf.xlu0
      %v3301 = vpop.trf.xlu0
      %v3302 = vpop.trf.xlu0
      %v3303 = vpop.trf.xlu0
      %v3304 = vpop.trf.xlu0
      %v3305 = vpop.trf.xlu0
      %v3306 = vpop.trf.xlu0
      %v3307 = vpop.trf.xlu0
      %v3308 = vpop.trf.xlu0
      %v3309 = vpop.trf.xlu0
      %v3310 = vpop.trf.xlu0
      %v3311 = vpop.trf.xlu0
      %v3312 = vpop.trf.xlu0
      %v3314 = vsel %vm1304, %v3297, 0
      %3316 = vmatprep.subr.mxu0 0.0
      %3317 = vmatpush1.msra.mxu0 %v2939
      %3318 = vmatprep.subr.mxu0 0.0
      %3319 = vmatpush1.msra.mxu0 0.0
      %3320 = vmatprep.subr.mxu0 0.0
      %3321 = vmatpush1.msra.mxu0 0.0
      %3322 = vmatprep.subr.mxu0 0.0
      %3323 = vmatpush1.msra.mxu0 0.0
      %3324 = vmatprep.subr.mxu0 0.0
      %3325 = vmatpush1.msra.mxu0 0.0
      %3326 = vmatprep.subr.mxu0 0.0
      %3327 = vmatpush1.msra.mxu0 0.0
      %3328 = vmatprep.subr.mxu0 0.0
      %3329 = vmatpush1.msra.mxu0 0.0
      %3330 = vmatprep.subr.mxu0 0.0
      %3331 = vmatpush1.msra.mxu0 0.0
      %3332 = vmatprep.subr.mxu0 0.0
      %3333 = vmatpush1.msra.mxu0 0.0
      %3334 = vmatprep.subr.mxu0 0.0
      %3335 = vmatpush1.msra.mxu0 0.0
      %3336 = vmatprep.subr.mxu0 0.0
      %3337 = vmatpush1.msra.mxu0 0.0
      %3338 = vmatprep.subr.mxu0 0.0
      %3339 = vmatpush1.msra.mxu0 0.0
      %3340 = vmatprep.subr.mxu0 0.0
      %3341 = vmatpush1.msra.mxu0 0.0
      %3342 = vmatprep.subr.mxu0 0.0
      %3343 = vmatpush1.msra.mxu0 0.0
      %3344 = vmatprep.subr.mxu0 0.0
      %3345 = vmatpush1.msra.mxu0 0.0
      %3346 = vmatprep.subr.mxu0 0.0
      %3347 = vmatpush1.msra.mxu0 0.0
      %3348 = vmatprep.subr.mxu0 0.0
      %3349 = vmatpush1.msra.mxu0 0.0
      %3350 = vmatprep.subr.mxu0 0.0
      %3351 = vmatpush1.msra.mxu0 0.0
      %3352 = vmatprep.subr.mxu0 0.0
      %3353 = vmatpush1.msra.mxu0 0.0
      %3354 = vmatprep.subr.mxu0 0.0
      %3355 = vmatpush1.msra.mxu0 0.0
      %3356 = vmatprep.subr.mxu0 0.0
      %3357 = vmatpush1.msra.mxu0 0.0
      %3358 = vmatprep.subr.mxu0 0.0
      %3359 = vmatpush1.msra.mxu0 0.0
      %3360 = vmatprep.subr.mxu0 0.0
      %3361 = vmatpush1.msra.mxu0 0.0
      %3362 = vmatprep.subr.mxu0 0.0
      %3363 = vmatpush1.msra.mxu0 0.0
      %3364 = vmatprep.subr.mxu0 0.0
      %3365 = vmatpush1.msra.mxu0 0.0
      %3366 = vmatprep.subr.mxu0 0.0
      %3367 = vmatpush1.msra.mxu0 0.0
      %3368 = vmatprep.subr.mxu0 0.0
      %3369 = vmatpush1.msra.mxu0 0.0
      %3370 = vmatprep.subr.mxu0 0.0
      %3371 = vmatpush1.msra.mxu0 0.0
      %3372 = vmatprep.subr.mxu0 0.0
      %3373 = vmatpush1.msra.mxu0 0.0
      %3374 = vmatprep.subr.mxu0 0.0
      %3375 = vmatpush1.msra.mxu0 0.0
      %3376 = vmatprep.subr.mxu0 0.0
      %3377 = vmatpush1.msra.mxu0 0.0
      %3378 = vmatprep.subr.mxu0 0.0
      %3379 = vmatpush1.msra.mxu0 0.0
      %3380 = vmatprep.mubr.f32.mxu0 0.0
      %3381 = vmatmul.mubr.f32.gmra.mrb[0].mxu0 %v3314
      %v3382 = vpop.f32.mrb[0].mxu0
      %v3383 = vadd.f32 %v964, %v3382
      %v3384 = vpop.f32.mrb[0].mxu0
      %3385 = vdwg.mxu0
      %v3386 = vsel %vm1304, %v3068, -inf
      %3387 = vmax.xlane.f32.xlu0 %v3386
      %v3388 = vpop.xlane.xlu0 %3387
      %v3389 = vsel %vm1304, %v3173, -inf
      %3390 = vmax.xlane.f32.xlu0 %v3389
      %v3391 = vpop.xlane.xlu0 %3390
      %v3392 = vsel %vm1304, %v3278, -inf
      %3393 = vmax.xlane.f32.xlu0 %v3392
      %v3394 = vpop.xlane.xlu0 %3393
      %v3395 = vsel %vm1304, %v3383, -inf
      %3396 = vmax.xlane.f32.xlu0 %v3395
      %v3397 = vpop.xlane.xlu0 %3396
      %v3398 = vsub.f32 %v3068, %v3388
      %v3399 = vsub.f32 %v3173, %v3391
      %v3400 = vsub.f32 %v3278, %v3394
      %v3401 = vsub.f32 %v3383, %v3397
      %v3402 = vmul.f32 %v3398, 1.442695
      %v3403 = vpow.pop %v3402
      %v3404 = vmul.f32 %v3399, 1.442695
      %v3405 = vpow.pop %v3404
      %v3406 = vmul.f32 %v3400, 1.442695
      %v3407 = vpow.pop %v3406
      %v3408 = vmul.f32 %v3401, 1.442695
      %v3409 = vpow.pop %v3408
      %v3410 = vsel %vm1304, %v3403, 0.0
      %3411 = vadd.xlane.f32.xlu0 %v3410
      %v3412 = vpop.xlane.xlu0 %3411
      %v3413 = vsel %vm1304, %v3405, 0.0
      %3414 = vadd.xlane.f32.xlu0 %v3413
      %v3415 = vpop.xlane.xlu0 %3414
      %v3416 = vsel %vm1304, %v3407, 0.0
      %3417 = vadd.xlane.f32.xlu0 %v3416
      %v3418 = vpop.xlane.xlu0 %3417
      %v3419 = vsel %vm1304, %v3409, 0.0
      %3420 = vadd.xlane.f32.xlu0 %v3419
      %v3421 = vpop.xlane.xlu0 %3420
      %v3422 = vrcp.pop %v3412
      %v3423 = vrcp.pop %v3415
      %v3424 = vrcp.pop %v3418
      %v3425 = vrcp.pop %v3421
      %v3426 = vmul.f32 %v3403, %v3422
      %v3427 = vmul.f32 %v3405, %v3423
      %v3428 = vmul.f32 %v3407, %v3424
      %v3429 = vmul.f32 %v3409, %v3425
      %v3431 = vsel %vm1304, %v3426, 0
      %v3434 = vsel %vm1304, %v2944, 0
      %3436 = vmatprep.subr.mxu0 0.0
      %3437 = vmatpush1.xpose.msra.mxu0 %v3434
      %3438 = vmatprep.subr.mxu0 0.0
      %3439 = vmatpush1.xpose.msra.mxu0 0.0
      %3440 = vmatprep.subr.mxu0 0.0
      %3441 = vmatpush1.xpose.msra.mxu0 0.0
      %3442 = vmatprep.subr.mxu0 0.0
      %3443 = vmatpush1.xpose.msra.mxu0 0.0
      %3444 = vmatprep.subr.mxu0 0.0
      %3445 = vmatpush1.xpose.msra.mxu0 0.0
      %3446 = vmatprep.subr.mxu0 0.0
      %3447 = vmatpush1.xpose.msra.mxu0 0.0
      %3448 = vmatprep.subr.mxu0 0.0
      %3449 = vmatpush1.xpose.msra.mxu0 0.0
      %3450 = vmatprep.subr.mxu0 0.0
      %3451 = vmatpush1.xpose.msra.mxu0 0.0
      %3452 = vmatprep.subr.mxu0 0.0
      %3453 = vmatpush1.xpose.msra.mxu0 0.0
      %3454 = vmatprep.subr.mxu0 0.0
      %3455 = vmatpush1.xpose.msra.mxu0 0.0
      %3456 = vmatprep.subr.mxu0 0.0
      %3457 = vmatpush1.xpose.msra.mxu0 0.0
      %3458 = vmatprep.subr.mxu0 0.0
      %3459 = vmatpush1.xpose.msra.mxu0 0.0
      %3460 = vmatprep.subr.mxu0 0.0
      %3461 = vmatpush1.xpose.msra.mxu0 0.0
      %3462 = vmatprep.subr.mxu0 0.0
      %3463 = vmatpush1.xpose.msra.mxu0 0.0
      %3464 = vmatprep.subr.mxu0 0.0
      %3465 = vmatpush1.xpose.msra.mxu0 0.0
      %3466 = vmatprep.subr.mxu0 0.0
      %3467 = vmatpush1.xpose.msra.mxu0 0.0
      %3468 = vmatprep.subr.mxu0 0.0
      %3469 = vmatpush1.xpose.msra.mxu0 0.0
      %3470 = vmatprep.subr.mxu0 0.0
      %3471 = vmatpush1.xpose.msra.mxu0 0.0
      %3472 = vmatprep.subr.mxu0 0.0
      %3473 = vmatpush1.xpose.msra.mxu0 0.0
      %3474 = vmatprep.subr.mxu0 0.0
      %3475 = vmatpush1.xpose.msra.mxu0 0.0
      %3476 = vmatprep.subr.mxu0 0.0
      %3477 = vmatpush1.xpose.msra.mxu0 0.0
      %3478 = vmatprep.subr.mxu0 0.0
      %3479 = vmatpush1.xpose.msra.mxu0 0.0
      %3480 = vmatprep.subr.mxu0 0.0
      %3481 = vmatpush1.xpose.msra.mxu0 0.0
      %3482 = vmatprep.subr.mxu0 0.0
      %3483 = vmatpush1.xpose.msra.mxu0 0.0
      %3484 = vmatprep.subr.mxu0 0.0
      %3485 = vmatpush1.xpose.msra.mxu0 0.0
      %3486 = vmatprep.subr.mxu0 0.0
      %3487 = vmatpush1.xpose.msra.mxu0 0.0
      %3488 = vmatprep.subr.mxu0 0.0
      %3489 = vmatpush1.xpose.msra.mxu0 0.0
      %3490 = vmatprep.subr.mxu0 0.0
      %3491 = vmatpush1.xpose.msra.mxu0 0.0
      %3492 = vmatprep.subr.mxu0 0.0
      %3493 = vmatpush1.xpose.msra.mxu0 0.0
      %3494 = vmatprep.subr.mxu0 0.0
      %3495 = vmatpush1.xpose.msra.mxu0 0.0
      %3496 = vmatprep.subr.mxu0 0.0
      %3497 = vmatpush1.xpose.msra.mxu0 0.0
      %3498 = vmatprep.subr.mxu0 0.0
      %3499 = vmatpush1.xpose.msra.mxu0 0.0
      %3500 = vmatprep.mubr.f32.mxu0 0.0
      %3501 = vmatmul.mubr.f32.gmra.mrb[0].mxu0 %v3431
      %v3502 = vpop.f32.mrb[0].mxu0
      %v3503 = vadd.f32 0.0, %v3502
      %v3504 = vpop.f32.mrb[0].mxu0
      %3505 = vdwg.mxu0
      %v3507 = vsel %vm1304, %v3427, 0
      %v3510 = vsel %vm1304, %v2949, 0
      %3512 = vmatprep.subr.mxu0 0.0
      %3513 = vmatpush1.xpose.msra.mxu0 %v3510
      %3514 = vmatprep.subr.mxu0 0.0
      %3515 = vmatpush1.xpose.msra.mxu0 0.0
      %3516 = vmatprep.subr.mxu0 0.0
      %3517 = vmatpush1.xpose.msra.mxu0 0.0
      %3518 = vmatprep.subr.mxu0 0.0
      %3519 = vmatpush1.xpose.msra.mxu0 0.0
      %3520 = vmatprep.subr.mxu0 0.0
      %3521 = vmatpush1.xpose.msra.mxu0 0.0
      %3522 = vmatprep.subr.mxu0 0.0
      %3523 = vmatpush1.xpose.msra.mxu0 0.0
      %3524 = vmatprep.subr.mxu0 0.0
      %3525 = vmatpush1.xpose.msra.mxu0 0.0
      %3526 = vmatprep.subr.mxu0 0.0
      %3527 = vmatpush1.xpose.msra.mxu0 0.0
      %3528 = vmatprep.subr.mxu0 0.0
      %3529 = vmatpush1.xpose.msra.mxu0 0.0
      %3530 = vmatprep.subr.mxu0 0.0
      %3531 = vmatpush1.xpose.msra.mxu0 0.0
      %3532 = vmatprep.subr.mxu0 0.0
      %3533 = vmatpush1.xpose.msra.mxu0 0.0
      %3534 = vmatprep.subr.mxu0 0.0
      %3535 = vmatpush1.xpose.msra.mxu0 0.0
      %3536 = vmatprep.subr.mxu0 0.0
      %3537 = vmatpush1.xpose.msra.mxu0 0.0
      %3538 = vmatprep.subr.mxu0 0.0
      %3539 = vmatpush1.xpose.msra.mxu0 0.0
      %3540 = vmatprep.subr.mxu0 0.0
      %3541 = vmatpush1.xpose.msra.mxu0 0.0
      %3542 = vmatprep.subr.mxu0 0.0
      %3543 = vmatpush1.xpose.msra.mxu0 0.0
      %3544 = vmatprep.subr.mxu0 0.0
      %3545 = vmatpush1.xpose.msra.mxu0 0.0
      %3546 = vmatprep.subr.mxu0 0.0
      %3547 = vmatpush1.xpose.msra.mxu0 0.0
      %3548 = vmatprep.subr.mxu0 0.0
      %3549 = vmatpush1.xpose.msra.mxu0 0.0
      %3550 = vmatprep.subr.mxu0 0.0
      %3551 = vmatpush1.xpose.msra.mxu0 0.0
      %3552 = vmatprep.subr.mxu0 0.0
      %3553 = vmatpush1.xpose.msra.mxu0 0.0
      %3554 = vmatprep.subr.mxu0 0.0
      %3555 = vmatpush1.xpose.msra.mxu0 0.0
      %3556 = vmatprep.subr.mxu0 0.0
      %3557 = vmatpush1.xpose.msra.mxu0 0.0
      %3558 = vmatprep.subr.mxu0 0.0
      %3559 = vmatpush1.xpose.msra.mxu0 0.0
      %3560 = vmatprep.subr.mxu0 0.0
      %3561 = vmatpush1.xpose.msra.mxu0 0.0
      %3562 = vmatprep.subr.mxu0 0.0
      %3563 = vmatpush1.xpose.msra.mxu0 0.0
      %3564 = vmatprep.subr.mxu0 0.0
      %3565 = vmatpush1.xpose.msra.mxu0 0.0
      %3566 = vmatprep.subr.mxu0 0.0
      %3567 = vmatpush1.xpose.msra.mxu0 0.0
      %3568 = vmatprep.subr.mxu0 0.0
      %3569 = vmatpush1.xpose.msra.mxu0 0.0
      %3570 = vmatprep.subr.mxu0 0.0
      %3571 = vmatpush1.xpose.msra.mxu0 0.0
      %3572 = vmatprep.subr.mxu0 0.0
      %3573 = vmatpush1.xpose.msra.mxu0 0.0
      %3574 = vmatprep.subr.mxu0 0.0
      %3575 = vmatpush1.xpose.msra.mxu0 0.0
      %3576 = vmatprep.mubr.f32.mxu0 0.0
      %3577 = vmatmul.mubr.f32.gmra.mrb[0].mxu0 %v3507
      %v3578 = vpop.f32.mrb[0].mxu0
      %v3579 = vadd.f32 0.0, %v3578
      %v3580 = vpop.f32.mrb[0].mxu0
      %3581 = vdwg.mxu0
      %v3583 = vsel %vm1304, %v3428, 0
      %v3586 = vsel %vm1304, %v2954, 0
      %3588 = vmatprep.subr.mxu0 0.0
      %3589 = vmatpush1.xpose.msra.mxu0 %v3586
      %3590 = vmatprep.subr.mxu0 0.0
      %3591 = vmatpush1.xpose.msra.mxu0 0.0
      %3592 = vmatprep.subr.mxu0 0.0
      %3593 = vmatpush1.xpose.msra.mxu0 0.0
      %3594 = vmatprep.subr.mxu0 0.0
      %3595 = vmatpush1.xpose.msra.mxu0 0.0
      %3596 = vmatprep.subr.mxu0 0.0
      %3597 = vmatpush1.xpose.msra.mxu0 0.0
      %3598 = vmatprep.subr.mxu0 0.0
      %3599 = vmatpush1.xpose.msra.mxu0 0.0
      %3600 = vmatprep.subr.mxu0 0.0
      %3601 = vmatpush1.xpose.msra.mxu0 0.0
      %3602 = vmatprep.subr.mxu0 0.0
      %3603 = vmatpush1.xpose.msra.mxu0 0.0
      %3604 = vmatprep.subr.mxu0 0.0
      %3605 = vmatpush1.xpose.msra.mxu0 0.0
      %3606 = vmatprep.subr.mxu0 0.0
      %3607 = vmatpush1.xpose.msra.mxu0 0.0
      %3608 = vmatprep.subr.mxu0 0.0
      %3609 = vmatpush1.xpose.msra.mxu0 0.0
      %3610 = vmatprep.subr.mxu0 0.0
      %3611 = vmatpush1.xpose.msra.mxu0 0.0
      %3612 = vmatprep.subr.mxu0 0.0
      %3613 = vmatpush1.xpose.msra.mxu0 0.0
      %3614 = vmatprep.subr.mxu0 0.0
      %3615 = vmatpush1.xpose.msra.mxu0 0.0
      %3616 = vmatprep.subr.mxu0 0.0
      %3617 = vmatpush1.xpose.msra.mxu0 0.0
      %3618 = vmatprep.subr.mxu0 0.0
      %3619 = vmatpush1.xpose.msra.mxu0 0.0
      %3620 = vmatprep.subr.mxu0 0.0
      %3621 = vmatpush1.xpose.msra.mxu0 0.0
      %3622 = vmatprep.subr.mxu0 0.0
      %3623 = vmatpush1.xpose.msra.mxu0 0.0
      %3624 = vmatprep.subr.mxu0 0.0
      %3625 = vmatpush1.xpose.msra.mxu0 0.0
      %3626 = vmatprep.subr.mxu0 0.0
      %3627 = vmatpush1.xpose.msra.mxu0 0.0
      %3628 = vmatprep.subr.mxu0 0.0
      %3629 = vmatpush1.xpose.msra.mxu0 0.0
      %3630 = vmatprep.subr.mxu0 0.0
      %3631 = vmatpush1.xpose.msra.mxu0 0.0
      %3632 = vmatprep.subr.mxu0 0.0
      %3633 = vmatpush1.xpose.msra.mxu0 0.0
      %3634 = vmatprep.subr.mxu0 0.0
      %3635 = vmatpush1.xpose.msra.mxu0 0.0
      %3636 = vmatprep.subr.mxu0 0.0
      %3637 = vmatpush1.xpose.msra.mxu0 0.0
      %3638 = vmatprep.subr.mxu0 0.0
      %3639 = vmatpush1.xpose.msra.mxu0 0.0
      %3640 = vmatprep.subr.mxu0 0.0
      %3641 = vmatpush1.xpose.msra.mxu0 0.0
      %3642 = vmatprep.subr.mxu0 0.0
      %3643 = vmatpush1.xpose.msra.mxu0 0.0
      %3644 = vmatprep.subr.mxu0 0.0
      %3645 = vmatpush1.xpose.msra.mxu0 0.0
      %3646 = vmatprep.subr.mxu0 0.0
      %3647 = vmatpush1.xpose.msra.mxu0 0.0
      %3648 = vmatprep.subr.mxu0 0.0
      %3649 = vmatpush1.xpose.msra.mxu0 0.0
      %3650 = vmatprep.subr.mxu0 0.0
      %3651 = vmatpush1.xpose.msra.mxu0 0.0
      %3652 = vmatprep.mubr.f32.mxu0 0.0
      %3653 = vmatmul.mubr.f32.gmra.mrb[0].mxu0 %v3583
      %v3654 = vpop.f32.mrb[0].mxu0
      %v3655 = vadd.f32 0.0, %v3654
      %v3656 = vpop.f32.mrb[0].mxu0
      %3657 = vdwg.mxu0
      %v3659 = vsel %vm1304, %v3429, 0
      %v3662 = vsel %vm1304, %v2959, 0
      %3664 = vmatprep.subr.mxu0 0.0
      %3665 = vmatpush1.xpose.msra.mxu0 %v3662
      %3666 = vmatprep.subr.mxu0 0.0
      %3667 = vmatpush1.xpose.msra.mxu0 0.0
      %3668 = vmatprep.subr.mxu0 0.0
      %3669 = vmatpush1.xpose.msra.mxu0 0.0
      %3670 = vmatprep.subr.mxu0 0.0
      %3671 = vmatpush1.xpose.msra.mxu0 0.0
      %3672 = vmatprep.subr.mxu0 0.0
      %3673 = vmatpush1.xpose.msra.mxu0 0.0
      %3674 = vmatprep.subr.mxu0 0.0
      %3675 = vmatpush1.xpose.msra.mxu0 0.0
      %3676 = vmatprep.subr.mxu0 0.0
      %3677 = vmatpush1.xpose.msra.mxu0 0.0
      %3678 = vmatprep.subr.mxu0 0.0
      %3679 = vmatpush1.xpose.msra.mxu0 0.0
      %3680 = vmatprep.subr.mxu0 0.0
      %3681 = vmatpush1.xpose.msra.mxu0 0.0
      %3682 = vmatprep.subr.mxu0 0.0
      %3683 = vmatpush1.xpose.msra.mxu0 0.0
      %3684 = vmatprep.subr.mxu0 0.0
      %3685 = vmatpush1.xpose.msra.mxu0 0.0
      %3686 = vmatprep.subr.mxu0 0.0
      %3687 = vmatpush1.xpose.msra.mxu0 0.0
      %3688 = vmatprep.subr.mxu0 0.0
      %3689 = vmatpush1.xpose.msra.mxu0 0.0
      %3690 = vmatprep.subr.mxu0 0.0
      %3691 = vmatpush1.xpose.msra.mxu0 0.0
      %3692 = vmatprep.subr.mxu0 0.0
      %3693 = vmatpush1.xpose.msra.mxu0 0.0
      %3694 = vmatprep.subr.mxu0 0.0
      %3695 = vmatpush1.xpose.msra.mxu0 0.0
      %3696 = vmatprep.subr.mxu0 0.0
      %3697 = vmatpush1.xpose.msra.mxu0 0.0
      %3698 = vmatprep.subr.mxu0 0.0
      %3699 = vmatpush1.xpose.msra.mxu0 0.0
      %3700 = vmatprep.subr.mxu0 0.0
      %3701 = vmatpush1.xpose.msra.mxu0 0.0
      %3702 = vmatprep.subr.mxu0 0.0
      %3703 = vmatpush1.xpose.msra.mxu0 0.0
      %3704 = vmatprep.subr.mxu0 0.0
      %3705 = vmatpush1.xpose.msra.mxu0 0.0
      %3706 = vmatprep.subr.mxu0 0.0
      %3707 = vmatpush1.xpose.msra.mxu0 0.0
      %3708 = vmatprep.subr.mxu0 0.0
      %3709 = vmatpush1.xpose.msra.mxu0 0.0
      %3710 = vmatprep.subr.mxu0 0.0
      %3711 = vmatpush1.xpose.msra.mxu0 0.0
      %3712 = vmatprep.subr.mxu0 0.0
      %3713 = vmatpush1.xpose.msra.mxu0 0.0
      %3714 = vmatprep.subr.mxu0 0.0
      %3715 = vmatpush1.xpose.msra.mxu0 0.0
      %3716 = vmatprep.subr.mxu0 0.0
      %3717 = vmatpush1.xpose.msra.mxu0 0.0
      %3718 = vmatprep.subr.mxu0 0.0
      %3719 = vmatpush1.xpose.msra.mxu0 0.0
      %3720 = vmatprep.subr.mxu0 0.0
      %3721 = vmatpush1.xpose.msra.mxu0 0.0
      %3722 = vmatprep.subr.mxu0 0.0
      %3723 = vmatpush1.xpose.msra.mxu0 0.0
      %3724 = vmatprep.subr.mxu0 0.0
      %3725 = vmatpush1.xpose.msra.mxu0 0.0
      %3726 = vmatprep.subr.mxu0 0.0
      %3727 = vmatpush1.xpose.msra.mxu0 0.0
      %3728 = vmatprep.mubr.f32.mxu0 0.0
      %3729 = vmatmul.mubr.f32.gmra.mrb[0].mxu0 %v3659
      %v3730 = vpop.f32.mrb[0].mxu0
      %v3731 = vadd.f32 0.0, %v3730
      %v3732 = vpop.f32.mrb[0].mxu0
      %3733 = vdwg.mxu0
      %s3734 = scalar_lea.vmem %s8, 32
      %v3735 = vld [vmem:[%s3734] sm:$0xff]
      %v3736 = vld [vmem:[%s3734 + $0x8] sm:$0xff]
      %v3737 = vld [vmem:[%s3734 + $0x10] sm:$0xff]
      %v3738 = vld [vmem:[%s3734 + $0x18] sm:$0xff]
      %v3740 = vsel %vm1304, %v3503, 0
      %3742 = vmatprep.subr.mxu0 0.0
      %3743 = vmatpush1.msra.mxu0 %v3735
      %3744 = vmatprep.subr.mxu0 0.0
      %3745 = vmatpush1.msra.mxu0 0.0
      %3746 = vmatprep.subr.mxu0 0.0
      %3747 = vmatpush1.msra.mxu0 0.0
      %3748 = vmatprep.subr.mxu0 0.0
      %3749 = vmatpush1.msra.mxu0 0.0
      %3750 = vmatprep.subr.mxu0 0.0
      %3751 = vmatpush1.msra.mxu0 0.0
      %3752 = vmatprep.subr.mxu0 0.0
      %3753 = vmatpush1.msra.mxu0 0.0
      %3754 = vmatprep.subr.mxu0 0.0
      %3755 = vmatpush1.msra.mxu0 0.0
      %3756 = vmatprep.subr.mxu0 0.0
      %3757 = vmatpush1.msra.mxu0 0.0
      %3758 = vmatprep.subr.mxu0 0.0
      %3759 = vmatpush1.msra.mxu0 0.0
      %3760 = vmatprep.subr.mxu0 0.0
      %3761 = vmatpush1.msra.mxu0 0.0
      %3762 = vmatprep.subr.mxu0 0.0
      %3763 = vmatpush1.msra.mxu0 0.0
      %3764 = vmatprep.subr.mxu0 0.0
      %3765 = vmatpush1.msra.mxu0 0.0
      %3766 = vmatprep.subr.mxu0 0.0
      %3767 = vmatpush1.msra.mxu0 0.0
      %3768 = vmatprep.subr.mxu0 0.0
      %3769 = vmatpush1.msra.mxu0 0.0
      %3770 = vmatprep.subr.mxu0 0.0
      %3771 = vmatpush1.msra.mxu0 0.0
      %3772 = vmatprep.subr.mxu0 0.0
      %3773 = vmatpush1.msra.mxu0 0.0
      %3774 = vmatprep.subr.mxu0 0.0
      %3775 = vmatpush1.msra.mxu0 0.0
      %3776 = vmatprep.subr.mxu0 0.0
      %3777 = vmatpush1.msra.mxu0 0.0
      %3778 = vmatprep.subr.mxu0 0.0
      %3779 = vmatpush1.msra.mxu0 0.0
      %3780 = vmatprep.subr.mxu0 0.0
      %3781 = vmatpush1.msra.mxu0 0.0
      %3782 = vmatprep.subr.mxu0 0.0
      %3783 = vmatpush1.msra.mxu0 0.0
      %3784 = vmatprep.subr.mxu0 0.0
      %3785 = vmatpush1.msra.mxu0 0.0
      %3786 = vmatprep.subr.mxu0 0.0
      %3787 = vmatpush1.msra.mxu0 0.0
      %3788 = vmatprep.subr.mxu0 0.0
      %3789 = vmatpush1.msra.mxu0 0.0
      %3790 = vmatprep.subr.mxu0 0.0
      %3791 = vmatpush1.msra.mxu0 0.0
      %3792 = vmatprep.subr.mxu0 0.0
      %3793 = vmatpush1.msra.mxu0 0.0
      %3794 = vmatprep.subr.mxu0 0.0
      %3795 = vmatpush1.msra.mxu0 0.0
      %3796 = vmatprep.subr.mxu0 0.0
      %3797 = vmatpush1.msra.mxu0 0.0
      %3798 = vmatprep.subr.mxu0 0.0
      %3799 = vmatpush1.msra.mxu0 0.0
      %3800 = vmatprep.subr.mxu0 0.0
      %3801 = vmatpush1.msra.mxu0 0.0
      %3802 = vmatprep.subr.mxu0 0.0
      %3803 = vmatpush1.msra.mxu0 0.0
      %3804 = vmatprep.subr.mxu0 0.0
      %3805 = vmatpush1.msra.mxu0 0.0
      %3806 = vmatprep.mubr.f32.mxu0 0.0
      %3807 = vmatmul.mubr.f32.gmra.mrb[0].mxu0 %v3740
      %v3808 = vpop.f32.mrb[0].mxu0
      %v3809 = vadd.f32 0.0, %v3808
      %v3810 = vpop.f32.mrb[0].mxu0
      %3811 = vdwg.mxu0
      %v3813 = vsel %vm1304, %v3579, 0
      %3815 = vmatprep.subr.mxu0 0.0
      %3816 = vmatpush1.msra.mxu0 %v3736
      %3817 = vmatprep.subr.mxu0 0.0
      %3818 = vmatpush1.msra.mxu0 0.0
      %3819 = vmatprep.subr.mxu0 0.0
      %3820 = vmatpush1.msra.mxu0 0.0
      %3821 = vmatprep.subr.mxu0 0.0
      %3822 = vmatpush1.msra.mxu0 0.0
      %3823 = vmatprep.subr.mxu0 0.0
      %3824 = vmatpush1.msra.mxu0 0.0
      %3825 = vmatprep.subr.mxu0 0.0
      %3826 = vmatpush1.msra.mxu0 0.0
      %3827 = vmatprep.subr.mxu0 0.0
      %3828 = vmatpush1.msra.mxu0 0.0
      %3829 = vmatprep.subr.mxu0 0.0
      %3830 = vmatpush1.msra.mxu0 0.0
      %3831 = vmatprep.subr.mxu0 0.0
      %3832 = vmatpush1.msra.mxu0 0.0
      %3833 = vmatprep.subr.mxu0 0.0
      %3834 = vmatpush1.msra.mxu0 0.0
      %3835 = vmatprep.subr.mxu0 0.0
      %3836 = vmatpush1.msra.mxu0 0.0
      %3837 = vmatprep.subr.mxu0 0.0
      %3838 = vmatpush1.msra.mxu0 0.0
      %3839 = vmatprep.subr.mxu0 0.0
      %3840 = vmatpush1.msra.mxu0 0.0
      %3841 = vmatprep.subr.mxu0 0.0
      %3842 = vmatpush1.msra.mxu0 0.0
      %3843 = vmatprep.subr.mxu0 0.0
      %3844 = vmatpush1.msra.mxu0 0.0
      %3845 = vmatprep.subr.mxu0 0.0
      %3846 = vmatpush1.msra.mxu0 0.0
      %3847 = vmatprep.subr.mxu0 0.0
      %3848 = vmatpush1.msra.mxu0 0.0
      %3849 = vmatprep.subr.mxu0 0.0
      %3850 = vmatpush1.msra.mxu0 0.0
      %3851 = vmatprep.subr.mxu0 0.0
      %3852 = vmatpush1.msra.mxu0 0.0
      %3853 = vmatprep.subr.mxu0 0.0
      %3854 = vmatpush1.msra.mxu0 0.0
      %3855 = vmatprep.subr.mxu0 0.0
      %3856 = vmatpush1.msra.mxu0 0.0
      %3857 = vmatprep.subr.mxu0 0.0
      %3858 = vmatpush1.msra.mxu0 0.0
      %3859 = vmatprep.subr.mxu0 0.0
      %3860 = vmatpush1.msra.mxu0 0.0
      %3861 = vmatprep.subr.mxu0 0.0
      %3862 = vmatpush1.msra.mxu0 0.0
      %3863 = vmatprep.subr.mxu0 0.0
      %3864 = vmatpush1.msra.mxu0 0.0
      %3865 = vmatprep.subr.mxu0 0.0
      %3866 = vmatpush1.msra.mxu0 0.0
      %3867 = vmatprep.subr.mxu0 0.0
      %3868 = vmatpush1.msra.mxu0 0.0
      %3869 = vmatprep.subr.mxu0 0.0
      %3870 = vmatpush1.msra.mxu0 0.0
      %3871 = vmatprep.subr.mxu0 0.0
      %3872 = vmatpush1.msra.mxu0 0.0
      %3873 = vmatprep.subr.mxu0 0.0
      %3874 = vmatpush1.msra.mxu0 0.0
      %3875 = vmatprep.subr.mxu0 0.0
      %3876 = vmatpush1.msra.mxu0 0.0
      %3877 = vmatprep.subr.mxu0 0.0
      %3878 = vmatpush1.msra.mxu0 0.0
      %3879 = vmatprep.mubr.f32.mxu0 0.0
      %3880 = vmatmul.mubr.f32.gmra.mrb[0].mxu0 %v3813
      %v3881 = vpop.f32.mrb[0].mxu0
      %v3882 = vadd.f32 0.0, %v3881
      %v3883 = vpop.f32.mrb[0].mxu0
      %3884 = vdwg.mxu0
      %v3886 = vsel %vm1304, %v3655, 0
      %3888 = vmatprep.subr.mxu0 0.0
      %3889 = vmatpush1.msra.mxu0 %v3737
      %3890 = vmatprep.subr.mxu0 0.0
      %3891 = vmatpush1.msra.mxu0 0.0
      %3892 = vmatprep.subr.mxu0 0.0
      %3893 = vmatpush1.msra.mxu0 0.0
      %3894 = vmatprep.subr.mxu0 0.0
      %3895 = vmatpush1.msra.mxu0 0.0
      %3896 = vmatprep.subr.mxu0 0.0
      %3897 = vmatpush1.msra.mxu0 0.0
      %3898 = vmatprep.subr.mxu0 0.0
      %3899 = vmatpush1.msra.mxu0 0.0
      %3900 = vmatprep.subr.mxu0 0.0
      %3901 = vmatpush1.msra.mxu0 0.0
      %3902 = vmatprep.subr.mxu0 0.0
      %3903 = vmatpush1.msra.mxu0 0.0
      %3904 = vmatprep.subr.mxu0 0.0
      %3905 = vmatpush1.msra.mxu0 0.0
      %3906 = vmatprep.subr.mxu0 0.0
      %3907 = vmatpush1.msra.mxu0 0.0
      %3908 = vmatprep.subr.mxu0 0.0
      %3909 = vmatpush1.msra.mxu0 0.0
      %3910 = vmatprep.subr.mxu0 0.0
      %3911 = vmatpush1.msra.mxu0 0.0
      %3912 = vmatprep.subr.mxu0 0.0
      %3913 = vmatpush1.msra.mxu0 0.0
      %3914 = vmatprep.subr.mxu0 0.0
      %3915 = vmatpush1.msra.mxu0 0.0
      %3916 = vmatprep.subr.mxu0 0.0
      %3917 = vmatpush1.msra.mxu0 0.0
      %3918 = vmatprep.subr.mxu0 0.0
      %3919 = vmatpush1.msra.mxu0 0.0
      %3920 = vmatprep.subr.mxu0 0.0
      %3921 = vmatpush1.msra.mxu0 0.0
      %3922 = vmatprep.subr.mxu0 0.0
      %3923 = vmatpush1.msra.mxu0 0.0
      %3924 = vmatprep.subr.mxu0 0.0
      %3925 = vmatpush1.msra.mxu0 0.0
      %3926 = vmatprep.subr.mxu0 0.0
      %3927 = vmatpush1.msra.mxu0 0.0
      %3928 = vmatprep.subr.mxu0 0.0
      %3929 = vmatpush1.msra.mxu0 0.0
      %3930 = vmatprep.subr.mxu0 0.0
      %3931 = vmatpush1.msra.mxu0 0.0
      %3932 = vmatprep.subr.mxu0 0.0
      %3933 = vmatpush1.msra.mxu0 0.0
      %3934 = vmatprep.subr.mxu0 0.0
      %3935 = vmatpush1.msra.mxu0 0.0
      %3936 = vmatprep.subr.mxu0 0.0
      %3937 = vmatpush1.msra.mxu0 0.0
      %3938 = vmatprep.subr.mxu0 0.0
      %3939 = vmatpush1.msra.mxu0 0.0
      %3940 = vmatprep.subr.mxu0 0.0
      %3941 = vmatpush1.msra.mxu0 0.0
      %3942 = vmatprep.subr.mxu0 0.0
      %3943 = vmatpush1.msra.mxu0 0.0
      %3944 = vmatprep.subr.mxu0 0.0
      %3945 = vmatpush1.msra.mxu0 0.0
      %3946 = vmatprep.subr.mxu0 0.0
      %3947 = vmatpush1.msra.mxu0 0.0
      %3948 = vmatprep.subr.mxu0 0.0
      %3949 = vmatpush1.msra.mxu0 0.0
      %3950 = vmatprep.subr.mxu0 0.0
      %3951 = vmatpush1.msra.mxu0 0.0
      %3952 = vmatprep.mubr.f32.mxu0 0.0
      %3953 = vmatmul.mubr.f32.gmra.mrb[0].mxu0 %v3886
      %v3954 = vpop.f32.mrb[0].mxu0
      %v3955 = vadd.f32 0.0, %v3954
      %v3956 = vpop.f32.mrb[0].mxu0
      %3957 = vdwg.mxu0
      %v3959 = vsel %vm1304, %v3731, 0
      %3961 = vmatprep.subr.mxu0 0.0
      %3962 = vmatpush1.msra.mxu0 %v3738
      %3963 = vmatprep.subr.mxu0 0.0
      %3964 = vmatpush1.msra.mxu0 0.0
      %3965 = vmatprep.subr.mxu0 0.0
      %3966 = vmatpush1.msra.mxu0 0.0
      %3967 = vmatprep.subr.mxu0 0.0
      %3968 = vmatpush1.msra.mxu0 0.0
      %3969 = vmatprep.subr.mxu0 0.0
      %3970 = vmatpush1.msra.mxu0 0.0
      %3971 = vmatprep.subr.mxu0 0.0
      %3972 = vmatpush1.msra.mxu0 0.0
      %3973 = vmatprep.subr.mxu0 0.0
      %3974 = vmatpush1.msra.mxu0 0.0
      %3975 = vmatprep.subr.mxu0 0.0
      %3976 = vmatpush1.msra.mxu0 0.0
      %3977 = vmatprep.subr.mxu0 0.0
      %3978 = vmatpush1.msra.mxu0 0.0
      %3979 = vmatprep.subr.mxu0 0.0
      %3980 = vmatpush1.msra.mxu0 0.0
      %3981 = vmatprep.subr.mxu0 0.0
      %3982 = vmatpush1.msra.mxu0 0.0
      %3983 = vmatprep.subr.mxu0 0.0
      %3984 = vmatpush1.msra.mxu0 0.0
      %3985 = vmatprep.subr.mxu0 0.0
      %3986 = vmatpush1.msra.mxu0 0.0
      %3987 = vmatprep.subr.mxu0 0.0
      %3988 = vmatpush1.msra.mxu0 0.0
      %3989 = vmatprep.subr.mxu0 0.0
      %3990 = vmatpush1.msra.mxu0 0.0
      %3991 = vmatprep.subr.mxu0 0.0
      %3992 = vmatpush1.msra.mxu0 0.0
      %3993 = vmatprep.subr.mxu0 0.0
      %3994 = vmatpush1.msra.mxu0 0.0
      %3995 = vmatprep.subr.mxu0 0.0
      %3996 = vmatpush1.msra.mxu0 0.0
      %3997 = vmatprep.subr.mxu0 0.0
      %3998 = vmatpush1.msra.mxu0 0.0
      %3999 = vmatprep.subr.mxu0 0.0
      %4000 = vmatpush1.msra.mxu0 0.0
      %4001 = vmatprep.subr.mxu0 0.0
      %4002 = vmatpush1.msra.mxu0 0.0
      %4003 = vmatprep.subr.mxu0 0.0
      %4004 = vmatpush1.msra.mxu0 0.0
      %4005 = vmatprep.subr.mxu0 0.0
      %4006 = vmatpush1.msra.mxu0 0.0
      %4007 = vmatprep.subr.mxu0 0.0
      %4008 = vmatpush1.msra.mxu0 0.0
      %4009 = vmatprep.subr.mxu0 0.0
      %4010 = vmatpush1.msra.mxu0 0.0
      %4011 = vmatprep.subr.mxu0 0.0
      %4012 = vmatpush1.msra.mxu0 0.0
      %4013 = vmatprep.subr.mxu0 0.0
      %4014 = vmatpush1.msra.mxu0 0.0
      %4015 = vmatprep.subr.mxu0 0.0
      %4016 = vmatpush1.msra.mxu0 0.0
      %4017 = vmatprep.subr.mxu0 0.0
      %4018 = vmatpush1.msra.mxu0 0.0
      %4019 = vmatprep.subr.mxu0 0.0
      %4020 = vmatpush1.msra.mxu0 0.0
      %4021 = vmatprep.subr.mxu0 0.0
      %4022 = vmatpush1.msra.mxu0 0.0
      %4023 = vmatprep.subr.mxu0 0.0
      %4024 = vmatpush1.msra.mxu0 0.0
      %4025 = vmatprep.mubr.f32.mxu0 0.0
      %4026 = vmatmul.mubr.f32.gmra.mrb[0].mxu0 %v3959
      %v4027 = vpop.f32.mrb[0].mxu0
      %v4028 = vadd.f32 0.0, %v4027
      %v4029 = vpop.f32.mrb[0].mxu0
      %4030 = vdwg.mxu0
      %v4031 = vsel %vm967, %v3809, 0.0
      %v4032 = vsel %vm967, %v3882, 0.0
      %v4033 = vadd.f32 %v4031, %v4032
      %v4034 = vsel %vm967, %v3955, 0.0
      %v4035 = vadd.f32 %v4033, %v4034
      %v4036 = vsel %vm967, %v4028, 0.0
      %v4037 = vadd.f32 %v4035, %v4036
      %s4038 = scalar_lea.vmem %s9, 1
      %v4039 = vld [vmem:[%s4038] sm:$0x1]
      %v4041 = vlaneseq
      %v4042 = vshrl.u32 %v4041, 7
      %v4043 = vsub.s32 0, %v4042
      %v4044 = vrot.slane %v4039, %v4043
      %v4046 = vadd.f32 %v4037, %v4044
      %v4047 = vadd.f32 %v2560, %v4046
      %s4048 = scalar_lea.vmem %s10, 1
      %v4049 = vld [vmem:[%s4048] sm:$0x1]
      %s4050 = scalar_lea.vmem %s11, 1
      %v4051 = vld [vmem:[%s4050] sm:$0x1]
      %v4052 = vsel %vm967, %v4047, 0.0
      %4053 = vadd.xlane.f32.xlu0 %v4052
      %v4054 = vpop.xlane.xlu0 %4053
      %v4055 = vmul.f32 %v4054, %v971
      %v4056 = vsub.f32 %v4047, %v4055
      %v4057 = vmul.f32 %v4056, %v4056
      %v4058 = vsel %vm967, %v4057, 0.0
      %4059 = vadd.xlane.f32.xlu0 %v4058
      %v4060 = vpop.xlane.xlu0 %4059
      %v4061 = vmul.f32 %v4060, %v971
      %v4062 = vadd.f32 %v4061, 1e-06
      %v4063 = vrsqrt.pop %v4062
      %v4064 = vmul.f32 %v4056, %v4063
      %v4066 = vlaneseq
      %v4067 = vshrl.u32 %v4066, 7
      %v4068 = vsub.s32 0, %v4067
      %v4069 = vrot.slane %v4049, %v4068
      %v4071 = vmul.f32 %v4064, %v4069
      %v4073 = vlaneseq
      %v4074 = vshrl.u32 %v4073, 7
      %v4075 = vsub.s32 0, %v4074
      %v4076 = vrot.slane %v4051, %v4075
      %v4078 = vadd.f32 %v4071, %v4076
      %s4079 = scalar_lea.vmem %s12, 32
      %v4080 = vld [vmem:[%s4079] sm:$0xff]
      %v4081 = vld [vmem:[%s4079 + $0x8] sm:$0xff]
      %v4082 = vld [vmem:[%s4079 + $0x10] sm:$0xff]
      %v4083 = vld [vmem:[%s4079 + $0x18] sm:$0xff]
      %s4084 = scalar_lea.vmem %s13, 1
      %v4085 = vld [vmem:[%s4084] sm:$0x1]
      %v4087 = vlaneseq
      %v4088 = vshrl.u32 %v4087, 7
      %v4089 = vsub.s32 0, %v4088
      %v4090 = vrot.slane %v4085, %v4089
      %v4093 = vsel %vm967, %v4078, 0
      %4095 = vmatprep.subr.mxu0 0.0
      %4096 = vmatpush1.msra.mxu0 %v4080
      %4097 = vmatprep.subr.mxu0 0.0
      %4098 = vmatpush1.msra.mxu0 %v4081
      %4099 = vmatprep.subr.mxu0 0.0
      %4100 = vmatpush1.msra.mxu0 %v4082
      %4101 = vmatprep.subr.mxu0 0.0
      %4102 = vmatpush1.msra.mxu0 %v4083
      %4103 = vmatprep.subr.mxu0 0.0
      %4104 = vmatpush1.msra.mxu0 0.0
      %4105 = vmatprep.subr.mxu0 0.0
      %4106 = vmatpush1.msra.mxu0 0.0
      %4107 = vmatprep.subr.mxu0 0.0
      %4108 = vmatpush1.msra.mxu0 0.0
      %4109 = vmatprep.subr.mxu0 0.0
      %4110 = vmatpush1.msra.mxu0 0.0
      %4111 = vmatprep.subr.mxu0 0.0
      %4112 = vmatpush1.msra.mxu0 0.0
      %4113 = vmatprep.subr.mxu0 0.0
      %4114 = vmatpush1.msra.mxu0 0.0
      %4115 = vmatprep.subr.mxu0 0.0
      %4116 = vmatpush1.msra.mxu0 0.0
      %4117 = vmatprep.subr.mxu0 0.0
      %4118 = vmatpush1.msra.mxu0 0.0
      %4119 = vmatprep.subr.mxu0 0.0
      %4120 = vmatpush1.msra.mxu0 0.0
      %4121 = vmatprep.subr.mxu0 0.0
      %4122 = vmatpush1.msra.mxu0 0.0
      %4123 = vmatprep.subr.mxu0 0.0
      %4124 = vmatpush1.msra.mxu0 0.0
      %4125 = vmatprep.subr.mxu0 0.0
      %4126 = vmatpush1.msra.mxu0 0.0
      %4127 = vmatprep.subr.mxu0 0.0
      %4128 = vmatpush1.msra.mxu0 0.0
      %4129 = vmatprep.subr.mxu0 0.0
      %4130 = vmatpush1.msra.mxu0 0.0
      %4131 = vmatprep.subr.mxu0 0.0
      %4132 = vmatpush1.msra.mxu0 0.0
      %4133 = vmatprep.subr.mxu0 0.0
      %4134 = vmatpush1.msra.mxu0 0.0
      %4135 = vmatprep.subr.mxu0 0.0
      %4136 = vmatpush1.msra.mxu0 0.0
      %4137 = vmatprep.subr.mxu0 0.0
      %4138 = vmatpush1.msra.mxu0 0.0
      %4139 = vmatprep.subr.mxu0 0.0
      %4140 = vmatpush1.msra.mxu0 0.0
      %4141 = vmatprep.subr.mxu0 0.0
      %4142 = vmatpush1.msra.mxu0 0.0
      %4143 = vmatprep.subr.mxu0 0.0
      %4144 = vmatpush1.msra.mxu0 0.0
      %4145 = vmatprep.subr.mxu0 0.0
      %4146 = vmatpush1.msra.mxu0 0.0
      %4147 = vmatprep.subr.mxu0 0.0
      %4148 = vmatpush1.msra.mxu0 0.0
      %4149 = vmatprep.subr.mxu0 0.0
      %4150 = vmatpush1.msra.mxu0 0.0
      %4151 = vmatprep.subr.mxu0 0.0
      %4152 = vmatpush1.msra.mxu0 0.0
      %4153 = vmatprep.subr.mxu0 0.0
      %4154 = vmatpush1.msra.mxu0 0.0
      %4155 = vmatprep.subr.mxu0 0.0
      %4156 = vmatpush1.msra.mxu0 0.0
      %4157 = vmatprep.subr.mxu0 0.0
      %4158 = vmatpush1.msra.mxu0 0.0
      %4159 = vmatprep.mubr.f32.mxu0 0.0
      %4160 = vmatmul.mubr.f32.gmra.mrb[0].mxu0 %v4093
      %v4161 = vpop.f32.mrb[0].mxu0
      %v4162 = vadd.f32 %v4090, %v4161
      %v4163 = vpop.f32.mrb[0].mxu0
      %4164 = vdwg.mxu0
      %v4165 = vmul.f32 %v4162, 0.5
      %v4166 = vmul.f32 %v4162, 0.70710677
      %v4167 = verf.f32.pop %v4166
      %v4168 = vadd.f32 %v4167, 1.0
      %v4169 = vmul.f32 %v4165, %v4168
      %s4170 = scalar_lea.vmem %s14, 64
      %v4171 = vld [vmem:[%s4170] sm:$0xff]
      %v4172 = vld [vmem:[%s4170 + $0x8] sm:$0xff]
      %v4173 = vld [vmem:[%s4170 + $0x10] sm:$0xff]
      %v4174 = vld [vmem:[%s4170 + $0x18] sm:$0xff]
      %v4175 = vld [vmem:[%s4170 + $0x20] sm:$0xff]
      %v4176 = vld [vmem:[%s4170 + $0x28] sm:$0xff]
      %v4177 = vld [vmem:[%s4170 + $0x30] sm:$0xff]
      %v4178 = vld [vmem:[%s4170 + $0x38] sm:$0xff]
      %s4179 = scalar_lea.vmem %s15, 1
      %v4180 = vld [vmem:[%s4179] sm:$0x1]
      %v4182 = vlaneseq
      %v4183 = vshrl.u32 %v4182, 7
      %v4184 = vsub.s32 0, %v4183
      %v4185 = vrot.slane %v4180, %v4184
      %v4188 = vsel %vm2486, %v4169, 0
      %4190 = vmatprep.subr.mxu0 0.0
      %4191 = vmatpush1.msra.mxu0 %v4171
      %4192 = vmatprep.subr.mxu0 0.0
      %4193 = vmatpush1.msra.mxu0 %v4172
      %4194 = vmatprep.subr.mxu0 0.0
      %4195 = vmatpush1.msra.mxu0 %v4173
      %4196 = vmatprep.subr.mxu0 0.0
      %4197 = vmatpush1.msra.mxu0 %v4174
      %4198 = vmatprep.subr.mxu0 0.0
      %4199 = vmatpush1.msra.mxu0 %v4175
      %4200 = vmatprep.subr.mxu0 0.0
      %4201 = vmatpush1.msra.mxu0 %v4176
      %4202 = vmatprep.subr.mxu0 0.0
      %4203 = vmatpush1.msra.mxu0 %v4177
      %4204 = vmatprep.subr.mxu0 0.0
      %4205 = vmatpush1.msra.mxu0 %v4178
      %4206 = vmatprep.subr.mxu0 0.0
      %4207 = vmatpush1.msra.mxu0 0.0
      %4208 = vmatprep.subr.mxu0 0.0
      %4209 = vmatpush1.msra.mxu0 0.0
      %4210 = vmatprep.subr.mxu0 0.0
      %4211 = vmatpush1.msra.mxu0 0.0
      %4212 = vmatprep.subr.mxu0 0.0
      %4213 = vmatpush1.msra.mxu0 0.0
      %4214 = vmatprep.subr.mxu0 0.0
      %4215 = vmatpush1.msra.mxu0 0.0
      %4216 = vmatprep.subr.mxu0 0.0
      %4217 = vmatpush1.msra.mxu0 0.0
      %4218 = vmatprep.subr.mxu0 0.0
      %4219 = vmatpush1.msra.mxu0 0.0
      %4220 = vmatprep.subr.mxu0 0.0
      %4221 = vmatpush1.msra.mxu0 0.0
      %4222 = vmatprep.subr.mxu0 0.0
      %4223 = vmatpush1.msra.mxu0 0.0
      %4224 = vmatprep.subr.mxu0 0.0
      %4225 = vmatpush1.msra.mxu0 0.0
      %4226 = vmatprep.subr.mxu0 0.0
      %4227 = vmatpush1.msra.mxu0 0.0
      %4228 = vmatprep.subr.mxu0 0.0
      %4229 = vmatpush1.msra.mxu0 0.0
      %4230 = vmatprep.subr.mxu0 0.0
      %4231 = vmatpush1.msra.mxu0 0.0
      %4232 = vmatprep.subr.mxu0 0.0
      %4233 = vmatpush1.msra.mxu0 0.0
      %4234 = vmatprep.subr.mxu0 0.0
      %4235 = vmatpush1.msra.mxu0 0.0
      %4236 = vmatprep.subr.mxu0 0.0
      %4237 = vmatpush1.msra.mxu0 0.0
      %4238 = vmatprep.subr.mxu0 0.0
      %4239 = vmatpush1.msra.mxu0 0.0
      %4240 = vmatprep.subr.mxu0 0.0
      %4241 = vmatpush1.msra.mxu0 0.0
      %4242 = vmatprep.subr.mxu0 0.0
      %4243 = vmatpush1.msra.mxu0 0.0
      %4244 = vmatprep.subr.mxu0 0.0
      %4245 = vmatpush1.msra.mxu0 0.0
      %4246 = vmatprep.subr.mxu0 0.0
      %4247 = vmatpush1.msra.mxu0 0.0
      %4248 = vmatprep.subr.mxu0 0.0
      %4249 = vmatpush1.msra.mxu0 0.0
      %4250 = vmatprep.subr.mxu0 0.0
      %4251 = vmatpush1.msra.mxu0 0.0
      %4252 = vmatprep.subr.mxu0 0.0
      %4253 = vmatpush1.msra.mxu0 0.0
      %4254 = vmatprep.mubr.f32.mxu0 0.0
      %4255 = vmatmul.mubr.f32.gmra.mrb[0].mxu0 %v4188
      %v4256 = vpop.f32.mrb[0].mxu0
      %v4257 = vadd.f32 %v4185, %v4256
      %v4258 = vpop.f32.mrb[0].mxu0
      %4259 = vdwg.mxu0
      %v4260 = vadd.f32 %v4047, %v4257
      %s4261 = scalar_lea.vmem %s16, 1
      %v4262 = vld [vmem:[%s4261] sm:$0x1]
      %s4263 = scalar_lea.vmem %s17, 1
      %v4264 = vld [vmem:[%s4263] sm:$0x1]
      %v4265 = vsel %vm2563, %v4260, 0.0
      %4266 = vadd.xlane.f32.xlu0 %v4265
      %v4267 = vpop.xlane.xlu0 %4266
      %v4268 = vmul.f32 %v4267, %v971
      %v4269 = vsub.f32 %v4260, %v4268
      %v4270 = vmul.f32 %v4269, %v4269
      %v4271 = vsel %vm2563, %v4270, 0.0
      %4272 = vadd.xlane.f32.xlu0 %v4271
      %v4273 = vpop.xlane.xlu0 %4272
      %v4274 = vmul.f32 %v4273, %v971
      %v4275 = vadd.f32 %v4274, 1e-06
      %v4276 = vrsqrt.pop %v4275
      %v4277 = vmul.f32 %v4269, %v4276
      %v4278 = vmul.f32 %v4277, %v4262
      %v4279 = vadd.f32 %v4278, %v4264
      %s4280 = scalar_lea.vmem %s18, 32
      %v4281 = vld [vmem:[%s4280] sm:$0xff]
      %v4282 = vld [vmem:[%s4280 + $0x8] sm:$0xff]
      %v4283 = vld [vmem:[%s4280 + $0x10] sm:$0xff]
      %v4284 = vld [vmem:[%s4280 + $0x18] sm:$0xff]
      %s4285 = scalar_lea.vmem %s19, 1
      %v4286 = vld [vmem:[%s4285] sm:$0x1]
      %v4288 = vsel %vm967, %v4279, 0
      %4290 = vmatprep.subr.mxu0 0.0
      %4291 = vmatpush1.msra.mxu0 %v4281
      %4292 = vmatprep.subr.mxu0 0.0
      %4293 = vmatpush1.msra.mxu0 %v4282
      %4294 = vmatprep.subr.mxu0 0.0
      %4295 = vmatpush1.msra.mxu0 %v4283
      %4296 = vmatprep.subr.mxu0 0.0
      %4297 = vmatpush1.msra.mxu0 %v4284
      %4298 = vmatprep.subr.mxu0 0.0
      %4299 = vmatpush1.msra.mxu0 0.0
      %4300 = vmatprep.subr.mxu0 0.0
      %4301 = vmatpush1.msra.mxu0 0.0
      %4302 = vmatprep.subr.mxu0 0.0
      %4303 = vmatpush1.msra.mxu0 0.0
      %4304 = vmatprep.subr.mxu0 0.0
      %4305 = vmatpush1.msra.mxu0 0.0
      %4306 = vmatprep.subr.mxu0 0.0
      %4307 = vmatpush1.msra.mxu0 0.0
      %4308 = vmatprep.subr.mxu0 0.0
      %4309 = vmatpush1.msra.mxu0 0.0
      %4310 = vmatprep.subr.mxu0 0.0
      %4311 = vmatpush1.msra.mxu0 0.0
      %4312 = vmatprep.subr.mxu0 0.0
      %4313 = vmatpush1.msra.mxu0 0.0
      %4314 = vmatprep.subr.mxu0 0.0
      %4315 = vmatpush1.msra.mxu0 0.0
      %4316 = vmatprep.subr.mxu0 0.0
      %4317 = vmatpush1.msra.mxu0 0.0
      %4318 = vmatprep.subr.mxu0 0.0
      %4319 = vmatpush1.msra.mxu0 0.0
      %4320 = vmatprep.subr.mxu0 0.0
      %4321 = vmatpush1.msra.mxu0 0.0
      %4322 = vmatprep.subr.mxu0 0.0
      %4323 = vmatpush1.msra.mxu0 0.0
      %4324 = vmatprep.subr.mxu0 0.0
      %4325 = vmatpush1.msra.mxu0 0.0
      %4326 = vmatprep.subr.mxu0 0.0
      %4327 = vmatpush1.msra.mxu0 0.0
      %4328 = vmatprep.subr.mxu0 0.0
      %4329 = vmatpush1.msra.mxu0 0.0
      %4330 = vmatprep.subr.mxu0 0.0
      %4331 = vmatpush1.msra.mxu0 0.0
      %4332 = vmatprep.subr.mxu0 0.0
      %4333 = vmatpush1.msra.mxu0 0.0
      %4334 = vmatprep.subr.mxu0 0.0
      %4335 = vmatpush1.msra.mxu0 0.0
      %4336 = vmatprep.subr.mxu0 0.0
      %4337 = vmatpush1.msra.mxu0 0.0
      %4338 = vmatprep.subr.mxu0 0.0
      %4339 = vmatpush1.msra.mxu0 0.0
      %4340 = vmatprep.subr.mxu0 0.0
      %4341 = vmatpush1.msra.mxu0 0.0
      %4342 = vmatprep.subr.mxu0 0.0
      %4343 = vmatpush1.msra.mxu0 0.0
      %4344 = vmatprep.subr.mxu0 0.0
      %4345 = vmatpush1.msra.mxu0 0.0
      %4346 = vmatprep.subr.mxu0 0.0
      %4347 = vmatpush1.msra.mxu0 0.0
      %4348 = vmatprep.subr.mxu0 0.0
      %4349 = vmatpush1.msra.mxu0 0.0
      %4350 = vmatprep.subr.mxu0 0.0
      %4351 = vmatpush1.msra.mxu0 0.0
      %4352 = vmatprep.subr.mxu0 0.0
      %4353 = vmatpush1.msra.mxu0 0.0
      %4354 = vmatprep.mubr.f32.mxu0 0.0
      %4355 = vmatmul.mubr.f32.gmra.mrb[0].mxu0 %v4288
      %v4356 = vpop.f32.mrb[0].mxu0
      %v4357 = vadd.f32 %v4286, %v4356
      %v4358 = vpop.f32.mrb[0].mxu0
      %4359 = vdwg.mxu0
      %v4361 = vrot.slane %v4357, 7
      %v4363 = vsel %vm957, %v2654, %v4361
      %4364 = vst [vmem:[%s627] sm:$0x3] %v4363
      %p4365 = scmp.lt.s32.totalorder %s31, 1
      %s4366 = scalar_select %p4365, %s31, 1
      %s4367 = smul.addr %s4366, 2
      %s4368 = scalar_lea.vmem %s20, %s4367
      // Predicated region
      $region101: #{vit_forward.1} parent=99 // pred_check
        %p4369 = pneg %p474
      $region102: #{vit_forward.1} parent=99 // pred_check_branch
        %4371 = sbr.rel (%p4369) target = $region104
      $region103: #{vit_forward.1} parent=99 // pred_region
        _
      $region104: #{vit_forward.1} parent=99 // pred_fallthru
        _
    $region100: #{vit_forward.1} parent=5 // pred_fallthru
      _
    %p4372 = scmp.le.s32.totalorder 2, %s26
    // Predicated region
    $region105: #{vit_forward.1} parent=5 // pred_check
      %p4373 = pneg %p4372
    $region106: #{vit_forward.1} parent=5 // pred_check_branch
      %4375 = sbr.rel (%p4373) target = $region108
    $region107: #{vit_forward.1} parent=5 // pred_region
      %s4376 = ssub.s32 %s26, 2
      // Predicated region
      $region109: #{vit_forward.1} parent=107 // pred_check
        %p4377 = pneg %p480
      $region110: #{vit_forward.1} parent=107 // pred_check_branch
        %4379 = sbr.rel (%p4377) target = $region112
      $region111: #{vit_forward.1} parent=107 // pred_region
        %p4380 = scmp.lt.s32.totalorder %s32, 1
        %s4381 = scalar_select %p4380, %s32, 1
        %s4382 = smul.addr %s4381, 2
        %s4383 = scalar_lea.vmem %s20, %s4382
      $region112: #{vit_forward.1} parent=107 // pred_fallthru
        _
    $region108: #{vit_forward.1} parent=5 // pred_fallthru
      _
  $region6: #{vit_forward.1} parent=0 // loop_footer
    %s30 = sadd.s32 1, %s26
  $region7: #{vit_forward.1} parent=0 // loop_footer_branch
    %25 = sbr.rel target = $region3
  $region8: #{vit_forward.1} parent=0 // loop_exit
    _

</llo_original>
